<compile_context>
chip_gen: v6e
topology: v6e:2x2x1
jax: 0.10.0
libtpu: 0.0.40
codegen_flags: <defaults>
</compile_context>

<pallas_src>
import jax
import jax.numpy as jnp
from jax.experimental import pallas as pl
from jax.experimental.pallas import tpu as pltpu


def _softmax_kernel(x_ref, o_ref):
    # x_ref / o_ref: (TR, C) tile in VMEM; softmax over the last (lane) axis.
    # Internal math is always f32 (correct on v5e where VPU/EUP have no bf16).
    x = x_ref[...].astype(jnp.float32)
    m = jnp.max(x, axis=-1, keepdims=True)
    e = jnp.exp(x - m)
    s = jnp.sum(e, axis=-1, keepdims=True)
    # Approximate reciprocal runs on the (otherwise idle) EUP slot; one
    # Newton-Raphson refinement restores full f32 accuracy and avoids an
    # expensive f32 divide on the VPU.
    r = pl.reciprocal(s, approx=True)
    r = r * (2.0 - s * r)
    o_ref[...] = (e * r).astype(o_ref.dtype)


def _sublane_min(itemsize):
    # Minimum sublane tile per dtype: (8,128) f32, (16,128) bf16, (32,128) i8.
    return max(8, 32 // max(1, itemsize))


def _tensorcores_per_chip():
    """Best-effort TC count so each core gets enough pipeline steps."""
    try:
        kind = str(jax.devices()[0].device_kind).lower()
    except Exception:  # pragma: no cover - defensive
        return 1
    for tag in ("v7", "v4", "v5p"):
        if tag in kind:
            return 2
    return 1


def _choose_row_tile(R, C, itemsize, *, max_block_bytes, min_steps):
    """Row-tile that (a) respects the dtype sublane minimum, (b) fits the byte
    budget, (c) leaves >= min_steps grid steps, and (d) prefers exact divisors
    of R (no ragged last block) when one is close by."""
    sub = _sublane_min(itemsize)
    if R < sub:
        # Block equal to the full array extent is always legal.
        return R
    budget_rows = max(sub, max_block_bytes // (C * itemsize))
    steps_rows = max(sub, -(-R // min_steps))  # ceil(R / min_steps)
    tr = min(budget_rows, steps_rows, R)
    tr = max(sub, (tr // sub) * sub)
    # Prefer a divisor of R near tr so the last block is not ragged.
    lo = max(sub, tr - 512, tr // 2)
    for cand in range(tr, lo - 1, -sub):
        if R % cand == 0:
            return cand
    return tr  # ragged last block handled by the cdiv grid


def softmax_last_dim(x, *, max_block_bytes=2 << 20):
    """Softmax over the last dim of x (any leading dims), via a Pallas kernel.

    I/O dtype follows the input (bf16 callers halve HBM traffic); the
    reduction math inside the kernel is always performed in f32.
    """
    orig_shape = x.shape
    C = orig_shape[-1]
    R = 1
    for d in orig_shape[:-1]:
        R *= d
    x2 = x.reshape(R, C)

    itemsize = jnp.dtype(x.dtype).itemsize
    n_tc = _tensorcores_per_chip()
    min_steps = 4 * n_tc  # >= 4 pipeline steps per TensorCore
    tr = _choose_row_tile(
        R, C, itemsize, max_block_bytes=max_block_bytes, min_steps=min_steps
    )
    grid_steps = pl.cdiv(R, tr)

    # VMEM budget: double-buffered in/out tiles in the I/O dtype plus the
    # in-kernel f32 intermediates (upcast x, e, scaled output), with headroom.
    block_bytes = tr * C * itemsize
    f32_bytes = tr * C * 4
    needed = 4 * block_bytes + 3 * f32_bytes + (2 << 20)
    # Clamp to [16 MiB, 32 MiB]: valid on v5e's scoped default and safely
    # inside v7x's 64 MiB physical VMEM.
    vmem_limit = int(min(max(needed, 16 << 20), 32 << 20))

    out = pl.pallas_call(
        _softmax_kernel,
        out_shape=jax.ShapeDtypeStruct((R, C), x.dtype),
        grid_spec=pltpu.PrefetchScalarGridSpec(
            num_scalar_prefetch=0,
            grid=(grid_steps,),
            in_specs=[pl.BlockSpec((tr, C), lambda i: (i, 0))],
            out_specs=pl.BlockSpec((tr, C), lambda i: (i, 0)),
        ),
        compiler_params=pltpu.CompilerParams(
            dimension_semantics=("parallel",),
            vmem_limit_bytes=vmem_limit,
        ),
    )(x2)
    return out.reshape(orig_shape)


if __name__ == "__main__":
    key = jax.random.PRNGKey(0)
    # Shape implied by the PyTorch module: attention scores (1, 12, 384, 384)
    # -> R = 4608 rows, C = 384 lanes.  Tile selection picks tr = 1152 (4 grid
    # steps) on single-TC chips and tr = 576 (8 steps, 4 per core) on v7x.
    x = jax.random.normal(key, (1, 12, 384, 384), dtype=jnp.float32)

    y = jax.block_until_ready(softmax_last_dim(x))
    y_ref = jax.nn.softmax(x, axis=-1)
    assert y.shape == x.shape and y.dtype == x.dtype
    assert bool(jnp.allclose(y, y_ref, atol=1e-5, rtol=1e-5))

    # bf16 I/O path (halves HBM traffic; math stays f32 in-kernel, tile
    # respects the 16-row packed sublane minimum).
    xb = x.astype(jnp.bfloat16)
    yb = jax.block_until_ready(softmax_last_dim(xb))
    yb_ref = jax.nn.softmax(xb.astype(jnp.float32), axis=-1).astype(jnp.bfloat16)
    assert yb.dtype == jnp.bfloat16
    assert bool(
        jnp.allclose(
            yb.astype(jnp.float32), yb_ref.astype(jnp.float32), atol=2e-2, rtol=2e-2
        )
    )

    # Ragged row count (R = 500 not divisible by the tile) exercises the
    # cdiv grid / partial-last-block path.
    xr = jax.random.normal(jax.random.PRNGKey(1), (1, 5, 100, 384), dtype=jnp.float32)
    yr = jax.block_until_ready(softmax_last_dim(xr))
    assert bool(jnp.allclose(yr, jax.nn.softmax(xr, axis=-1), atol=1e-5, rtol=1e-5))

    print("KERNEL_OK")
</pallas_src>

<mosaic_0001>
module attributes {stable_mosaic.version = 11 : i64} {
  func.func @_softmax_kernel(%arg0: i32, %arg1: memref<1152x384xf32, #tpu.memory_space<vmem>>, %arg2: memref<1152x384xf32, #tpu.memory_space<vmem>>) attributes {dimension_semantics = [#tpu.dimension_semantics<parallel>], iteration_bounds = array<i64: 4>, scalar_prefetch = 0 : i64, scratch_operands = 0 : i64, tpu.core_type = #tpu.core_type<tc>, window_params = [{transform_indices = @transform_0, window_bounds = array<i64: 1152, 384>}, {transform_indices = @transform_1, window_bounds = array<i64: 1152, 384>}]} {
    %c0 = arith.constant 0 : index
    %c0_0 = arith.constant 0 : index
    %0 = vector.load %arg1[%c0, %c0_0] : memref<1152x384xf32, #tpu.memory_space<vmem>>, vector<1152x384xf32>
    %cst = arith.constant dense<0xFF800000> : vector<1152xf32>
    %1 = vector.multi_reduction <maximumf>, %0, %cst [1] : vector<1152x384xf32> to vector<1152xf32>
    %2 = vector.shape_cast %1 : vector<1152xf32> to vector<1152x1xf32>
    %3 = vector.broadcast %2 : vector<1152x1xf32> to vector<1152x384xf32>
    %4 = arith.subf %0, %3 : vector<1152x384xf32>
    %5 = math.exp %4 : vector<1152x384xf32>
    %cst_1 = arith.constant dense<0.000000e+00> : vector<1152xf32>
    %6 = vector.multi_reduction <add>, %5, %cst_1 [1] : vector<1152x384xf32> to vector<1152xf32>
    %7 = vector.shape_cast %6 : vector<1152xf32> to vector<1152x1xf32>
    %8 = tpu.reciprocal %7 {approx = true} : vector<1152x1xf32> -> vector<1152x1xf32>
    %9 = arith.mulf %7, %8 : vector<1152x1xf32>
    %cst_2 = arith.constant 2.000000e+00 : f32
    %10 = vector.broadcast %cst_2 : f32 to vector<1152x1xf32>
    %11 = arith.subf %10, %9 : vector<1152x1xf32>
    %12 = arith.mulf %8, %11 : vector<1152x1xf32>
    %13 = vector.broadcast %12 : vector<1152x1xf32> to vector<1152x384xf32>
    %14 = arith.mulf %5, %13 : vector<1152x384xf32>
    %c0_3 = arith.constant 0 : index
    %c0_4 = arith.constant 0 : index
    %15 = vector.load %arg2[%c0_3, %c0_4] : memref<1152x384xf32, #tpu.memory_space<vmem>>, vector<1152x384xf32>
    tpu.vector_store %arg2[%c0_3, %c0_4], %14 {strides = array<i32>} : memref<1152x384xf32, #tpu.memory_space<vmem>>, vector<1152x384xf32>,
    return
  }
  func.func @transform_0(%arg0: i32) -> (i32, i32) {
    %c0_i32 = arith.constant 0 : i32
    %c0_i32_0 = arith.constant 0 : i32
    return %arg0, %c0_i32 : i32, i32
  }
  func.func @transform_1(%arg0: i32) -> (i32, i32) {
    %c0_i32 = arith.constant 0 : i32
    %c0_i32_0 = arith.constant 0 : i32
    return %arg0, %c0_i32 : i32, i32
  }
}

</mosaic_0001>

<llo_original>
// kernel: tpu_custom_call.1
$region0: #{tpu_custom_call.1}
  #allocation0 [shape = 'u32[]', space=smem, size = 0x4, offset = 0x4, fixed_abs, tag = 'smem constant byte address 0x4 - core index']
  #allocation1 [shape = 'u32[144,128]{1,0:T(1,128)}', space=vmem, size = 0x12000, scoped, tag = 'internal scratch']
  %s0 = inlined_call_operand.hbm [shape: f32[4608,384], index: 0, kind: input, shape index: {}]
  %s1 = inlined_call_operand.hbm [shape: f32[4608,384], index: 1, kind: output, shape index: {}]
  %s2 = sld [smem:[#allocation0]]
  $region41: #{tpu_custom_call.1} parent=0
    _
  %s4 = ssub.s32 1, %s2
  %s5 = scalar_select 0, %s4, %s2
  $region1: #{tpu_custom_call.1} parent=0
    #allocation2 [shape = 'u8[3538944]{0}', space=vmem, size = 0x360000, scoped, tag = 'input window, operand 0']
    #allocation3 [shape = 's32[2]{0}', space=sflag, size = 0x8, scoped, tag = 'scoped memory for tpu_custom_call.1']
    #allocation4 [shape = 's32[2]{0}', space=sflag, size = 0x8, scoped, tag = 'scoped memory for tpu_custom_call.1']
    #allocation5 [shape = 'u8[3538944]{0}', space=vmem, size = 0x360000, scoped, tag = 'output window, operand 0']
    %6 = vsyncpa [#allocation3], 0
    %s7 = scalar_lea.sflag [#allocation3], 1
    %8 = vsyncpa %s7, 0
    %9 = vsyncpa [#allocation4], 0
    %s10 = scalar_lea.sflag [#allocation4], 1
    %11 = vsyncpa %s10, 0
    loop: start=0, step=1, limit=6
    $region2: #{tpu_custom_call.1} parent=1 // loop_pre_header
      _
    $region3: #{tpu_custom_call.1} parent=1 // loop_header
      %s13 = sphi 0, %s17
      %p14 = scmp.ge.s32.totalorder %s13, 6
      %s23 = sphi 0, %s25
      %s26 = sphi 0, %s23
      %s27 = sphi 0, %s26
      %s43 = sphi 0, %s27
      %s49 = sphi 0, %s51
      %s52 = sphi 0, %s49
      %s53 = sphi 0, %s52
      %s69 = sphi 0, %s53
    $region4: #{tpu_custom_call.1} parent=1 // loop_header_branch
      %16 = sbr.rel (%p14) target = $region8
    $region5: #{tpu_custom_call.1} parent=1 // loop_body
      %s18 = ssub.s32 %s13, 1
      %s19 = ssub.s32 %s13, 2
      %s20 = sadd.s32 %s13, 1
      %s21 = ssub.s32 %s13, %s20
      %p22 = scmp.eq.s32.totalorder %s21, 0
      %s24 = sadd.s32 %s23, 1
      %s25 = scalar_select %p22, %s23, %s24
      %p28 = pneg %p22
      %p29 = scmp.eq.s32.totalorder %s13, 3
      %p30 = por %p28, %p29
      %p31 = scmp.ne.s32.totalorder %s23, %s26
      %p32 = scmp.eq.s32.totalorder %s13, 0
      %p33 = por %p31, %p32
      %p34 = scmp.ne.s32.totalorder %s23, %s26
      %p35 = scmp.eq.s32.totalorder %s18, 3
      %p36 = por %p34, %p35
      %p37 = scmp.ne.s32.totalorder %s26, %s27
      %p38 = scmp.eq.s32.totalorder %s18, 0
      %p39 = por %p37, %p38
      %p40 = scmp.ne.s32.totalorder %s26, %s27
      %p41 = scmp.eq.s32.totalorder %s19, 3
      %p42 = por %p40, %p41
      %p44 = scmp.ne.s32.totalorder %s27, %s43
      %p45 = scmp.eq.s32.totalorder %s19, 0
      %p46 = por %p44, %p45
      %s47 = ssub.s32 %s13, %s20
      %p48 = scmp.eq.s32.totalorder %s47, 0
      %s50 = sadd.s32 %s49, 1
      %s51 = scalar_select %p48, %s49, %s50
      %p54 = pneg %p48
      %p55 = scmp.eq.s32.totalorder %s13, 3
      %p56 = por %p54, %p55
      %p57 = scmp.ne.s32.totalorder %s49, %s52
      %p58 = scmp.eq.s32.totalorder %s13, 0
      %p59 = por %p57, %p58
      %p60 = scmp.ne.s32.totalorder %s49, %s52
      %p61 = scmp.eq.s32.totalorder %s18, 3
      %p62 = por %p60, %p61
      %p63 = scmp.ne.s32.totalorder %s52, %s53
      %p64 = scmp.eq.s32.totalorder %s18, 0
      %p65 = por %p63, %p64
      %p66 = scmp.ne.s32.totalorder %s52, %s53
      %p67 = scmp.eq.s32.totalorder %s19, 3
      %p68 = por %p66, %p67
      %p70 = scmp.ne.s32.totalorder %s53, %s69
      %p71 = scmp.eq.s32.totalorder %s19, 0
      %p72 = por %p70, %p71
      %p73 = scmp.le.s32.totalorder 1, %s13
      %p74 = scmp.lt.s32.totalorder %s13, 5
      %p75 = pnand %p73, %p74
      %p76 = pneg %p75
      // Predicated region
      $region9: #{tpu_custom_call.1} parent=5 // pred_check
        _
      $region10: #{tpu_custom_call.1} parent=5 // pred_check_branch
        %78 = sbr.rel (%p75) target = $region12
      $region11: #{tpu_custom_call.1} parent=5 // pred_region
        %s79 = ssub.s32 %s13, 1
      $region12: #{tpu_custom_call.1} parent=5 // pred_fallthru
        _
      %p80 = scmp.lt.s32.totalorder %s13, 4
      // Predicated region
      $region13: #{tpu_custom_call.1} parent=5 // pred_check
        %p81 = pneg %p80
      $region14: #{tpu_custom_call.1} parent=5 // pred_check_branch
        %83 = sbr.rel (%p81) target = $region16
      $region15: #{tpu_custom_call.1} parent=5 // pred_region
        // Predicated region
        $region17: #{tpu_custom_call.1} parent=15 // pred_check
          %p84 = pneg %p33
        $region18: #{tpu_custom_call.1} parent=15 // pred_check_branch
          %86 = sbr.rel (%p84) target = $region20
        $region19: #{tpu_custom_call.1} parent=15 // pred_region
          %s87 = sand.u32 %s23, 1
          %s88 = scalar_lea.sflag [#allocation3], %s87
          %s89 = sand.u32 %s23, 1
          %s90 = smul.addr %s89, 3456
          %s91 = scalar_lea.vmem [#allocation2], %s90
          %s92 = smul.u32 144, %s13
          %s94 = ssub.s32 55296, 55296
          %95 = vsyncadd %s88, %s94
          %s96 = smul.addr %s92, 3
          %s97 = smul.addr %s96, 128
          %s98 = scalar_lea.hbm %s0, %s97
          %s99 = sshll.u32 %s91, 4
          %s100 = int_to_ptr.vmem [resolvable:$true] %s99
          %105 = dma.hbm_to_vmem [thread:$0]  %s98, 55296, %s100, %s88, 384, 384, 24
        $region20: #{tpu_custom_call.1} parent=15 // pred_fallthru
          _
      $region16: #{tpu_custom_call.1} parent=5 // pred_fallthru
        _
      %p106 = scmp.le.s32.totalorder 1, %s13
      %p107 = scmp.lt.s32.totalorder %s13, 5
      %p108 = pnand %p106, %p107
      %p109 = pneg %p108
      // Predicated region
      $region21: #{tpu_custom_call.1} parent=5 // pred_check
        _
      $region22: #{tpu_custom_call.1} parent=5 // pred_check_branch
        %111 = sbr.rel (%p108) target = $region24
      $region23: #{tpu_custom_call.1} parent=5 // pred_region
        %s112 = ssub.s32 %s13, 1
        %s113 = sand.u32 %s26, 1
        %s114 = scalar_lea.sflag [#allocation3], %s113
        %s115 = sand.u32 %s26, 1
        %s116 = smul.addr %s115, 3456
        %s117 = scalar_lea.vmem [#allocation2], %s116
        // Predicated region
        $region25: #{tpu_custom_call.1} parent=23 // pred_check
          %p118 = pneg %p39
        $region26: #{tpu_custom_call.1} parent=23 // pred_check_branch
          %120 = sbr.rel (%p118) target = $region28
        $region27: #{tpu_custom_call.1} parent=23 // pred_region
          %121 = dma.done %s114, 55296
        $region28: #{tpu_custom_call.1} parent=23 // pred_fallthru
          _
        %s122 = sand.u32 %s26, 1
        %s123 = scalar_lea.sflag [#allocation3], %s122
        %s124 = sand.u32 %s26, 1
        %s125 = smul.addr %s124, 3456
        %s126 = scalar_lea.vmem [#allocation2], %s125
        %p127 = pneg %p39
        %p128 = pneg %p36
        %p129 = pneg %p65
        %p130 = pneg %p62
        %s131 = sand.u32 %s52, 1
        %s132 = scalar_lea.sflag [#allocation4], %s131
        %s133 = sand.u32 %s52, 1
        %s134 = smul.addr %s133, 3456
        %s135 = scalar_lea.vmem [#allocation5], %s134
        %s136 = smul.u32 144, %s18
        %s137 = smul.u32 144, %s18
        %v138 = vld [vmem:[%s117] sm:$0xff]
        %v139 = vld [vmem:[%s117 + $0x8] sm:$0xff]
        %v140 = vld [vmem:[%s117 + $0x10] sm:$0xff]
        %v141 = vld [vmem:[%s117 + $0x18] sm:$0xff]
        %v142 = vld [vmem:[%s117 + $0x20] sm:$0xff]
        %v143 = vld [vmem:[%s117 + $0x28] sm:$0xff]
        %v144 = vld [vmem:[%s117 + $0x30] sm:$0xff]
        %v145 = vld [vmem:[%s117 + $0x38] sm:$0xff]
        %v146 = vld [vmem:[%s117 + $0x40] sm:$0xff]
        %v147 = vld [vmem:[%s117 + $0x48] sm:$0xff]
        %v148 = vld [vmem:[%s117 + $0x50] sm:$0xff]
        %v149 = vld [vmem:[%s117 + $0x58] sm:$0xff]
        %v150 = vld [vmem:[%s117 + $0x60] sm:$0xff]
        %v151 = vld [vmem:[%s117 + $0x68] sm:$0xff]
        %v152 = vld [vmem:[%s117 + $0x70] sm:$0xff]
        %v153 = vld [vmem:[%s117 + $0x78] sm:$0xff]
        %v154 = vld [vmem:[%s117 + $0x80] sm:$0xff]
        %v155 = vld [vmem:[%s117 + $0x88] sm:$0xff]
        %v156 = vld [vmem:[%s117 + $0x90] sm:$0xff]
        %v157 = vld [vmem:[%s117 + $0x98] sm:$0xff]
        %v158 = vld [vmem:[%s117 + $0xa0] sm:$0xff]
        %v159 = vld [vmem:[%s117 + $0xa8] sm:$0xff]
        %v160 = vld [vmem:[%s117 + $0xb0] sm:$0xff]
        %v161 = vld [vmem:[%s117 + $0xb8] sm:$0xff]
        %v162 = vld [vmem:[%s117 + $0xc0] sm:$0xff]
        %v163 = vld [vmem:[%s117 + $0xc8] sm:$0xff]
        %v164 = vld [vmem:[%s117 + $0xd0] sm:$0xff]
        %v165 = vld [vmem:[%s117 + $0xd8] sm:$0xff]
        %v166 = vld [vmem:[%s117 + $0xe0] sm:$0xff]
        %v167 = vld [vmem:[%s117 + $0xe8] sm:$0xff]
        %v168 = vld [vmem:[%s117 + $0xf0] sm:$0xff]
        %v169 = vld [vmem:[%s117 + $0xf8] sm:$0xff]
        %v170 = vld [vmem:[%s117 + $0x100] sm:$0xff]
        %v171 = vld [vmem:[%s117 + $0x108] sm:$0xff]
        %v172 = vld [vmem:[%s117 + $0x110] sm:$0xff]
        %v173 = vld [vmem:[%s117 + $0x118] sm:$0xff]
        %v174 = vld [vmem:[%s117 + $0x120] sm:$0xff]
        %v175 = vld [vmem:[%s117 + $0x128] sm:$0xff]
        %v176 = vld [vmem:[%s117 + $0x130] sm:$0xff]
        %v177 = vld [vmem:[%s117 + $0x138] sm:$0xff]
        %v178 = vld [vmem:[%s117 + $0x140] sm:$0xff]
        %v179 = vld [vmem:[%s117 + $0x148] sm:$0xff]
        %v180 = vld [vmem:[%s117 + $0x150] sm:$0xff]
        %v181 = vld [vmem:[%s117 + $0x158] sm:$0xff]
        %v182 = vld [vmem:[%s117 + $0x160] sm:$0xff]
        %v183 = vld [vmem:[%s117 + $0x168] sm:$0xff]
        %v184 = vld [vmem:[%s117 + $0x170] sm:$0xff]
        %v185 = vld [vmem:[%s117 + $0x178] sm:$0xff]
        %v186 = vld [vmem:[%s117 + $0x180] sm:$0xff]
        %v187 = vld [vmem:[%s117 + $0x188] sm:$0xff]
        %v188 = vld [vmem:[%s117 + $0x190] sm:$0xff]
        %v189 = vld [vmem:[%s117 + $0x198] sm:$0xff]
        %v190 = vld [vmem:[%s117 + $0x1a0] sm:$0xff]
        %v191 = vld [vmem:[%s117 + $0x1a8] sm:$0xff]
        %v192 = vld [vmem:[%s117 + $0x1b0] sm:$0xff]
        %v193 = vld [vmem:[%s117 + $0x1b8] sm:$0xff]
        %v194 = vld [vmem:[%s117 + $0x1c0] sm:$0xff]
        %v195 = vld [vmem:[%s117 + $0x1c8] sm:$0xff]
        %v196 = vld [vmem:[%s117 + $0x1d0] sm:$0xff]
        %v197 = vld [vmem:[%s117 + $0x1d8] sm:$0xff]
        %v198 = vld [vmem:[%s117 + $0x1e0] sm:$0xff]
        %v199 = vld [vmem:[%s117 + $0x1e8] sm:$0xff]
        %v200 = vld [vmem:[%s117 + $0x1f0] sm:$0xff]
        %v201 = vld [vmem:[%s117 + $0x1f8] sm:$0xff]
        %v202 = vld [vmem:[%s117 + $0x200] sm:$0xff]
        %v203 = vld [vmem:[%s117 + $0x208] sm:$0xff]
        %v204 = vld [vmem:[%s117 + $0x210] sm:$0xff]
        %v205 = vld [vmem:[%s117 + $0x218] sm:$0xff]
        %v206 = vld [vmem:[%s117 + $0x220] sm:$0xff]
        %v207 = vld [vmem:[%s117 + $0x228] sm:$0xff]
        %v208 = vld [vmem:[%s117 + $0x230] sm:$0xff]
        %v209 = vld [vmem:[%s117 + $0x238] sm:$0xff]
        %v210 = vld [vmem:[%s117 + $0x240] sm:$0xff]
        %v211 = vld [vmem:[%s117 + $0x248] sm:$0xff]
        %v212 = vld [vmem:[%s117 + $0x250] sm:$0xff]
        %v213 = vld [vmem:[%s117 + $0x258] sm:$0xff]
        %v214 = vld [vmem:[%s117 + $0x260] sm:$0xff]
        %v215 = vld [vmem:[%s117 + $0x268] sm:$0xff]
        %v216 = vld [vmem:[%s117 + $0x270] sm:$0xff]
        %v217 = vld [vmem:[%s117 + $0x278] sm:$0xff]
        %v218 = vld [vmem:[%s117 + $0x280] sm:$0xff]
        %v219 = vld [vmem:[%s117 + $0x288] sm:$0xff]
        %v220 = vld [vmem:[%s117 + $0x290] sm:$0xff]
        %v221 = vld [vmem:[%s117 + $0x298] sm:$0xff]
        %v222 = vld [vmem:[%s117 + $0x2a0] sm:$0xff]
        %v223 = vld [vmem:[%s117 + $0x2a8] sm:$0xff]
        %v224 = vld [vmem:[%s117 + $0x2b0] sm:$0xff]
        %v225 = vld [vmem:[%s117 + $0x2b8] sm:$0xff]
        %v226 = vld [vmem:[%s117 + $0x2c0] sm:$0xff]
        %v227 = vld [vmem:[%s117 + $0x2c8] sm:$0xff]
        %v228 = vld [vmem:[%s117 + $0x2d0] sm:$0xff]
        %v229 = vld [vmem:[%s117 + $0x2d8] sm:$0xff]
        %v230 = vld [vmem:[%s117 + $0x2e0] sm:$0xff]
        %v231 = vld [vmem:[%s117 + $0x2e8] sm:$0xff]
        %v232 = vld [vmem:[%s117 + $0x2f0] sm:$0xff]
        %v233 = vld [vmem:[%s117 + $0x2f8] sm:$0xff]
        %v234 = vld [vmem:[%s117 + $0x300] sm:$0xff]
        %v235 = vld [vmem:[%s117 + $0x308] sm:$0xff]
        %v236 = vld [vmem:[%s117 + $0x310] sm:$0xff]
        %v237 = vld [vmem:[%s117 + $0x318] sm:$0xff]
        %v238 = vld [vmem:[%s117 + $0x320] sm:$0xff]
        %v239 = vld [vmem:[%s117 + $0x328] sm:$0xff]
        %v240 = vld [vmem:[%s117 + $0x330] sm:$0xff]
        %v241 = vld [vmem:[%s117 + $0x338] sm:$0xff]
        %v242 = vld [vmem:[%s117 + $0x340] sm:$0xff]
        %v243 = vld [vmem:[%s117 + $0x348] sm:$0xff]
        %v244 = vld [vmem:[%s117 + $0x350] sm:$0xff]
        %v245 = vld [vmem:[%s117 + $0x358] sm:$0xff]
        %v246 = vld [vmem:[%s117 + $0x360] sm:$0xff]
        %v247 = vld [vmem:[%s117 + $0x368] sm:$0xff]
        %v248 = vld [vmem:[%s117 + $0x370] sm:$0xff]
        %v249 = vld [vmem:[%s117 + $0x378] sm:$0xff]
        %v250 = vld [vmem:[%s117 + $0x380] sm:$0xff]
        %v251 = vld [vmem:[%s117 + $0x388] sm:$0xff]
        %v252 = vld [vmem:[%s117 + $0x390] sm:$0xff]
        %v253 = vld [vmem:[%s117 + $0x398] sm:$0xff]
        %v254 = vld [vmem:[%s117 + $0x3a0] sm:$0xff]
        %v255 = vld [vmem:[%s117 + $0x3a8] sm:$0xff]
        %v256 = vld [vmem:[%s117 + $0x3b0] sm:$0xff]
        %v257 = vld [vmem:[%s117 + $0x3b8] sm:$0xff]
        %v258 = vld [vmem:[%s117 + $0x3c0] sm:$0xff]
        %v259 = vld [vmem:[%s117 + $0x3c8] sm:$0xff]
        %v260 = vld [vmem:[%s117 + $0x3d0] sm:$0xff]
        %v261 = vld [vmem:[%s117 + $0x3d8] sm:$0xff]
        %v262 = vld [vmem:[%s117 + $0x3e0] sm:$0xff]
        %v263 = vld [vmem:[%s117 + $0x3e8] sm:$0xff]
        %v264 = vld [vmem:[%s117 + $0x3f0] sm:$0xff]
        %v265 = vld [vmem:[%s117 + $0x3f8] sm:$0xff]
        %v266 = vld [vmem:[%s117 + $0x400] sm:$0xff]
        %v267 = vld [vmem:[%s117 + $0x408] sm:$0xff]
        %v268 = vld [vmem:[%s117 + $0x410] sm:$0xff]
        %v269 = vld [vmem:[%s117 + $0x418] sm:$0xff]
        %v270 = vld [vmem:[%s117 + $0x420] sm:$0xff]
        %v271 = vld [vmem:[%s117 + $0x428] sm:$0xff]
        %v272 = vld [vmem:[%s117 + $0x430] sm:$0xff]
        %v273 = vld [vmem:[%s117 + $0x438] sm:$0xff]
        %v274 = vld [vmem:[%s117 + $0x440] sm:$0xff]
        %v275 = vld [vmem:[%s117 + $0x448] sm:$0xff]
        %v276 = vld [vmem:[%s117 + $0x450] sm:$0xff]
        %v277 = vld [vmem:[%s117 + $0x458] sm:$0xff]
        %v278 = vld [vmem:[%s117 + $0x460] sm:$0xff]
        %v279 = vld [vmem:[%s117 + $0x468] sm:$0xff]
        %v280 = vld [vmem:[%s117 + $0x470] sm:$0xff]
        %v281 = vld [vmem:[%s117 + $0x478] sm:$0xff]
        %v282 = vld [vmem:[%s117 + $0x480] sm:$0xff]
        %v283 = vld [vmem:[%s117 + $0x488] sm:$0xff]
        %v284 = vld [vmem:[%s117 + $0x490] sm:$0xff]
        %v285 = vld [vmem:[%s117 + $0x498] sm:$0xff]
        %v286 = vld [vmem:[%s117 + $0x4a0] sm:$0xff]
        %v287 = vld [vmem:[%s117 + $0x4a8] sm:$0xff]
        %v288 = vld [vmem:[%s117 + $0x4b0] sm:$0xff]
        %v289 = vld [vmem:[%s117 + $0x4b8] sm:$0xff]
        %v290 = vld [vmem:[%s117 + $0x4c0] sm:$0xff]
        %v291 = vld [vmem:[%s117 + $0x4c8] sm:$0xff]
        %v292 = vld [vmem:[%s117 + $0x4d0] sm:$0xff]
        %v293 = vld [vmem:[%s117 + $0x4d8] sm:$0xff]
        %v294 = vld [vmem:[%s117 + $0x4e0] sm:$0xff]
        %v295 = vld [vmem:[%s117 + $0x4e8] sm:$0xff]
        %v296 = vld [vmem:[%s117 + $0x4f0] sm:$0xff]
        %v297 = vld [vmem:[%s117 + $0x4f8] sm:$0xff]
        %v298 = vld [vmem:[%s117 + $0x500] sm:$0xff]
        %v299 = vld [vmem:[%s117 + $0x508] sm:$0xff]
        %v300 = vld [vmem:[%s117 + $0x510] sm:$0xff]
        %v301 = vld [vmem:[%s117 + $0x518] sm:$0xff]
        %v302 = vld [vmem:[%s117 + $0x520] sm:$0xff]
        %v303 = vld [vmem:[%s117 + $0x528] sm:$0xff]
        %v304 = vld [vmem:[%s117 + $0x530] sm:$0xff]
        %v305 = vld [vmem:[%s117 + $0x538] sm:$0xff]
        %v306 = vld [vmem:[%s117 + $0x540] sm:$0xff]
        %v307 = vld [vmem:[%s117 + $0x548] sm:$0xff]
        %v308 = vld [vmem:[%s117 + $0x550] sm:$0xff]
        %v309 = vld [vmem:[%s117 + $0x558] sm:$0xff]
        %v310 = vld [vmem:[%s117 + $0x560] sm:$0xff]
        %v311 = vld [vmem:[%s117 + $0x568] sm:$0xff]
        %v312 = vld [vmem:[%s117 + $0x570] sm:$0xff]
        %v313 = vld [vmem:[%s117 + $0x578] sm:$0xff]
        %v314 = vld [vmem:[%s117 + $0x580] sm:$0xff]
        %v315 = vld [vmem:[%s117 + $0x588] sm:$0xff]
        %v316 = vld [vmem:[%s117 + $0x590] sm:$0xff]
        %v317 = vld [vmem:[%s117 + $0x598] sm:$0xff]
        %v318 = vld [vmem:[%s117 + $0x5a0] sm:$0xff]
        %v319 = vld [vmem:[%s117 + $0x5a8] sm:$0xff]
        %v320 = vld [vmem:[%s117 + $0x5b0] sm:$0xff]
        %v321 = vld [vmem:[%s117 + $0x5b8] sm:$0xff]
        %v322 = vld [vmem:[%s117 + $0x5c0] sm:$0xff]
        %v323 = vld [vmem:[%s117 + $0x5c8] sm:$0xff]
        %v324 = vld [vmem:[%s117 + $0x5d0] sm:$0xff]
        %v325 = vld [vmem:[%s117 + $0x5d8] sm:$0xff]
        %v326 = vld [vmem:[%s117 + $0x5e0] sm:$0xff]
        %v327 = vld [vmem:[%s117 + $0x5e8] sm:$0xff]
        %v328 = vld [vmem:[%s117 + $0x5f0] sm:$0xff]
        %v329 = vld [vmem:[%s117 + $0x5f8] sm:$0xff]
        %v330 = vld [vmem:[%s117 + $0x600] sm:$0xff]
        %v331 = vld [vmem:[%s117 + $0x608] sm:$0xff]
        %v332 = vld [vmem:[%s117 + $0x610] sm:$0xff]
        %v333 = vld [vmem:[%s117 + $0x618] sm:$0xff]
        %v334 = vld [vmem:[%s117 + $0x620] sm:$0xff]
        %v335 = vld [vmem:[%s117 + $0x628] sm:$0xff]
        %v336 = vld [vmem:[%s117 + $0x630] sm:$0xff]
        %v337 = vld [vmem:[%s117 + $0x638] sm:$0xff]
        %v338 = vld [vmem:[%s117 + $0x640] sm:$0xff]
        %v339 = vld [vmem:[%s117 + $0x648] sm:$0xff]
        %v340 = vld [vmem:[%s117 + $0x650] sm:$0xff]
        %v341 = vld [vmem:[%s117 + $0x658] sm:$0xff]
        %v342 = vld [vmem:[%s117 + $0x660] sm:$0xff]
        %v343 = vld [vmem:[%s117 + $0x668] sm:$0xff]
        %v344 = vld [vmem:[%s117 + $0x670] sm:$0xff]
        %v345 = vld [vmem:[%s117 + $0x678] sm:$0xff]
        %v346 = vld [vmem:[%s117 + $0x680] sm:$0xff]
        %v347 = vld [vmem:[%s117 + $0x688] sm:$0xff]
        %v348 = vld [vmem:[%s117 + $0x690] sm:$0xff]
        %v349 = vld [vmem:[%s117 + $0x698] sm:$0xff]
        %v350 = vld [vmem:[%s117 + $0x6a0] sm:$0xff]
        %v351 = vld [vmem:[%s117 + $0x6a8] sm:$0xff]
        %v352 = vld [vmem:[%s117 + $0x6b0] sm:$0xff]
        %v353 = vld [vmem:[%s117 + $0x6b8] sm:$0xff]
        %v354 = vld [vmem:[%s117 + $0x6c0] sm:$0xff]
        %v355 = vld [vmem:[%s117 + $0x6c8] sm:$0xff]
        %v356 = vld [vmem:[%s117 + $0x6d0] sm:$0xff]
        %v357 = vld [vmem:[%s117 + $0x6d8] sm:$0xff]
        %v358 = vld [vmem:[%s117 + $0x6e0] sm:$0xff]
        %v359 = vld [vmem:[%s117 + $0x6e8] sm:$0xff]
        %v360 = vld [vmem:[%s117 + $0x6f0] sm:$0xff]
        %v361 = vld [vmem:[%s117 + $0x6f8] sm:$0xff]
        %v362 = vld [vmem:[%s117 + $0x700] sm:$0xff]
        %v363 = vld [vmem:[%s117 + $0x708] sm:$0xff]
        %v364 = vld [vmem:[%s117 + $0x710] sm:$0xff]
        %v365 = vld [vmem:[%s117 + $0x718] sm:$0xff]
        %v366 = vld [vmem:[%s117 + $0x720] sm:$0xff]
        %v367 = vld [vmem:[%s117 + $0x728] sm:$0xff]
        %v368 = vld [vmem:[%s117 + $0x730] sm:$0xff]
        %v369 = vld [vmem:[%s117 + $0x738] sm:$0xff]
        %v370 = vld [vmem:[%s117 + $0x740] sm:$0xff]
        %v371 = vld [vmem:[%s117 + $0x748] sm:$0xff]
        %v372 = vld [vmem:[%s117 + $0x750] sm:$0xff]
        %v373 = vld [vmem:[%s117 + $0x758] sm:$0xff]
        %v374 = vld [vmem:[%s117 + $0x760] sm:$0xff]
        %v375 = vld [vmem:[%s117 + $0x768] sm:$0xff]
        %v376 = vld [vmem:[%s117 + $0x770] sm:$0xff]
        %v377 = vld [vmem:[%s117 + $0x778] sm:$0xff]
        %v378 = vld [vmem:[%s117 + $0x780] sm:$0xff]
        %v379 = vld [vmem:[%s117 + $0x788] sm:$0xff]
        %v380 = vld [vmem:[%s117 + $0x790] sm:$0xff]
        %v381 = vld [vmem:[%s117 + $0x798] sm:$0xff]
        %v382 = vld [vmem:[%s117 + $0x7a0] sm:$0xff]
        %v383 = vld [vmem:[%s117 + $0x7a8] sm:$0xff]
        %v384 = vld [vmem:[%s117 + $0x7b0] sm:$0xff]
        %v385 = vld [vmem:[%s117 + $0x7b8] sm:$0xff]
        %v386 = vld [vmem:[%s117 + $0x7c0] sm:$0xff]
        %v387 = vld [vmem:[%s117 + $0x7c8] sm:$0xff]
        %v388 = vld [vmem:[%s117 + $0x7d0] sm:$0xff]
        %v389 = vld [vmem:[%s117 + $0x7d8] sm:$0xff]
        %v390 = vld [vmem:[%s117 + $0x7e0] sm:$0xff]
        %v391 = vld [vmem:[%s117 + $0x7e8] sm:$0xff]
        %v392 = vld [vmem:[%s117 + $0x7f0] sm:$0xff]
        %v393 = vld [vmem:[%s117 + $0x7f8] sm:$0xff]
        %v394 = vld [vmem:[%s117 + $0x800] sm:$0xff]
        %v395 = vld [vmem:[%s117 + $0x808] sm:$0xff]
        %v396 = vld [vmem:[%s117 + $0x810] sm:$0xff]
        %v397 = vld [vmem:[%s117 + $0x818] sm:$0xff]
        %v398 = vld [vmem:[%s117 + $0x820] sm:$0xff]
        %v399 = vld [vmem:[%s117 + $0x828] sm:$0xff]
        %v400 = vld [vmem:[%s117 + $0x830] sm:$0xff]
        %v401 = vld [vmem:[%s117 + $0x838] sm:$0xff]
        %v402 = vld [vmem:[%s117 + $0x840] sm:$0xff]
        %v403 = vld [vmem:[%s117 + $0x848] sm:$0xff]
        %v404 = vld [vmem:[%s117 + $0x850] sm:$0xff]
        %v405 = vld [vmem:[%s117 + $0x858] sm:$0xff]
        %v406 = vld [vmem:[%s117 + $0x860] sm:$0xff]
        %v407 = vld [vmem:[%s117 + $0x868] sm:$0xff]
        %v408 = vld [vmem:[%s117 + $0x870] sm:$0xff]
        %v409 = vld [vmem:[%s117 + $0x878] sm:$0xff]
        %v410 = vld [vmem:[%s117 + $0x880] sm:$0xff]
        %v411 = vld [vmem:[%s117 + $0x888] sm:$0xff]
        %v412 = vld [vmem:[%s117 + $0x890] sm:$0xff]
        %v413 = vld [vmem:[%s117 + $0x898] sm:$0xff]
        %v414 = vld [vmem:[%s117 + $0x8a0] sm:$0xff]
        %v415 = vld [vmem:[%s117 + $0x8a8] sm:$0xff]
        %v416 = vld [vmem:[%s117 + $0x8b0] sm:$0xff]
        %v417 = vld [vmem:[%s117 + $0x8b8] sm:$0xff]
        %v418 = vld [vmem:[%s117 + $0x8c0] sm:$0xff]
        %v419 = vld [vmem:[%s117 + $0x8c8] sm:$0xff]
        %v420 = vld [vmem:[%s117 + $0x8d0] sm:$0xff]
        %v421 = vld [vmem:[%s117 + $0x8d8] sm:$0xff]
        %v422 = vld [vmem:[%s117 + $0x8e0] sm:$0xff]
        %v423 = vld [vmem:[%s117 + $0x8e8] sm:$0xff]
        %v424 = vld [vmem:[%s117 + $0x8f0] sm:$0xff]
        %v425 = vld [vmem:[%s117 + $0x8f8] sm:$0xff]
        %v426 = vld [vmem:[%s117 + $0x900] sm:$0xff]
        %v427 = vld [vmem:[%s117 + $0x908] sm:$0xff]
        %v428 = vld [vmem:[%s117 + $0x910] sm:$0xff]
        %v429 = vld [vmem:[%s117 + $0x918] sm:$0xff]
        %v430 = vld [vmem:[%s117 + $0x920] sm:$0xff]
        %v431 = vld [vmem:[%s117 + $0x928] sm:$0xff]
        %v432 = vld [vmem:[%s117 + $0x930] sm:$0xff]
        %v433 = vld [vmem:[%s117 + $0x938] sm:$0xff]
        %v434 = vld [vmem:[%s117 + $0x940] sm:$0xff]
        %v435 = vld [vmem:[%s117 + $0x948] sm:$0xff]
        %v436 = vld [vmem:[%s117 + $0x950] sm:$0xff]
        %v437 = vld [vmem:[%s117 + $0x958] sm:$0xff]
        %v438 = vld [vmem:[%s117 + $0x960] sm:$0xff]
        %v439 = vld [vmem:[%s117 + $0x968] sm:$0xff]
        %v440 = vld [vmem:[%s117 + $0x970] sm:$0xff]
        %v441 = vld [vmem:[%s117 + $0x978] sm:$0xff]
        %v442 = vld [vmem:[%s117 + $0x980] sm:$0xff]
        %v443 = vld [vmem:[%s117 + $0x988] sm:$0xff]
        %v444 = vld [vmem:[%s117 + $0x990] sm:$0xff]
        %v445 = vld [vmem:[%s117 + $0x998] sm:$0xff]
        %v446 = vld [vmem:[%s117 + $0x9a0] sm:$0xff]
        %v447 = vld [vmem:[%s117 + $0x9a8] sm:$0xff]
        %v448 = vld [vmem:[%s117 + $0x9b0] sm:$0xff]
        %v449 = vld [vmem:[%s117 + $0x9b8] sm:$0xff]
        %v450 = vld [vmem:[%s117 + $0x9c0] sm:$0xff]
        %v451 = vld [vmem:[%s117 + $0x9c8] sm:$0xff]
        %v452 = vld [vmem:[%s117 + $0x9d0] sm:$0xff]
        %v453 = vld [vmem:[%s117 + $0x9d8] sm:$0xff]
        %v454 = vld [vmem:[%s117 + $0x9e0] sm:$0xff]
        %v455 = vld [vmem:[%s117 + $0x9e8] sm:$0xff]
        %v456 = vld [vmem:[%s117 + $0x9f0] sm:$0xff]
        %v457 = vld [vmem:[%s117 + $0x9f8] sm:$0xff]
        %v458 = vld [vmem:[%s117 + $0xa00] sm:$0xff]
        %v459 = vld [vmem:[%s117 + $0xa08] sm:$0xff]
        %v460 = vld [vmem:[%s117 + $0xa10] sm:$0xff]
        %v461 = vld [vmem:[%s117 + $0xa18] sm:$0xff]
        %v462 = vld [vmem:[%s117 + $0xa20] sm:$0xff]
        %v463 = vld [vmem:[%s117 + $0xa28] sm:$0xff]
        %v464 = vld [vmem:[%s117 + $0xa30] sm:$0xff]
        %v465 = vld [vmem:[%s117 + $0xa38] sm:$0xff]
        %v466 = vld [vmem:[%s117 + $0xa40] sm:$0xff]
        %v467 = vld [vmem:[%s117 + $0xa48] sm:$0xff]
        %v468 = vld [vmem:[%s117 + $0xa50] sm:$0xff]
        %v469 = vld [vmem:[%s117 + $0xa58] sm:$0xff]
        %v470 = vld [vmem:[%s117 + $0xa60] sm:$0xff]
        %v471 = vld [vmem:[%s117 + $0xa68] sm:$0xff]
        %v472 = vld [vmem:[%s117 + $0xa70] sm:$0xff]
        %v473 = vld [vmem:[%s117 + $0xa78] sm:$0xff]
        %v474 = vld [vmem:[%s117 + $0xa80] sm:$0xff]
        %v475 = vld [vmem:[%s117 + $0xa88] sm:$0xff]
        %v476 = vld [vmem:[%s117 + $0xa90] sm:$0xff]
        %v477 = vld [vmem:[%s117 + $0xa98] sm:$0xff]
        %v478 = vld [vmem:[%s117 + $0xaa0] sm:$0xff]
        %v479 = vld [vmem:[%s117 + $0xaa8] sm:$0xff]
        %v480 = vld [vmem:[%s117 + $0xab0] sm:$0xff]
        %v481 = vld [vmem:[%s117 + $0xab8] sm:$0xff]
        %v482 = vld [vmem:[%s117 + $0xac0] sm:$0xff]
        %v483 = vld [vmem:[%s117 + $0xac8] sm:$0xff]
        %v484 = vld [vmem:[%s117 + $0xad0] sm:$0xff]
        %v485 = vld [vmem:[%s117 + $0xad8] sm:$0xff]
        %v486 = vld [vmem:[%s117 + $0xae0] sm:$0xff]
        %v487 = vld [vmem:[%s117 + $0xae8] sm:$0xff]
        %v488 = vld [vmem:[%s117 + $0xaf0] sm:$0xff]
        %v489 = vld [vmem:[%s117 + $0xaf8] sm:$0xff]
        %v490 = vld [vmem:[%s117 + $0xb00] sm:$0xff]
        %v491 = vld [vmem:[%s117 + $0xb08] sm:$0xff]
        %v492 = vld [vmem:[%s117 + $0xb10] sm:$0xff]
        %v493 = vld [vmem:[%s117 + $0xb18] sm:$0xff]
        %v494 = vld [vmem:[%s117 + $0xb20] sm:$0xff]
        %v495 = vld [vmem:[%s117 + $0xb28] sm:$0xff]
        %v496 = vld [vmem:[%s117 + $0xb30] sm:$0xff]
        %v497 = vld [vmem:[%s117 + $0xb38] sm:$0xff]
        %v498 = vld [vmem:[%s117 + $0xb40] sm:$0xff]
        %v499 = vld [vmem:[%s117 + $0xb48] sm:$0xff]
        %v500 = vld [vmem:[%s117 + $0xb50] sm:$0xff]
        %v501 = vld [vmem:[%s117 + $0xb58] sm:$0xff]
        %v502 = vld [vmem:[%s117 + $0xb60] sm:$0xff]
        %v503 = vld [vmem:[%s117 + $0xb68] sm:$0xff]
        %v504 = vld [vmem:[%s117 + $0xb70] sm:$0xff]
        %v505 = vld [vmem:[%s117 + $0xb78] sm:$0xff]
        %v506 = vld [vmem:[%s117 + $0xb80] sm:$0xff]
        %v507 = vld [vmem:[%s117 + $0xb88] sm:$0xff]
        %v508 = vld [vmem:[%s117 + $0xb90] sm:$0xff]
        %v509 = vld [vmem:[%s117 + $0xb98] sm:$0xff]
        %v510 = vld [vmem:[%s117 + $0xba0] sm:$0xff]
        %v511 = vld [vmem:[%s117 + $0xba8] sm:$0xff]
        %v512 = vld [vmem:[%s117 + $0xbb0] sm:$0xff]
        %v513 = vld [vmem:[%s117 + $0xbb8] sm:$0xff]
        %v514 = vld [vmem:[%s117 + $0xbc0] sm:$0xff]
        %v515 = vld [vmem:[%s117 + $0xbc8] sm:$0xff]
        %v516 = vld [vmem:[%s117 + $0xbd0] sm:$0xff]
        %v517 = vld [vmem:[%s117 + $0xbd8] sm:$0xff]
        %v518 = vld [vmem:[%s117 + $0xbe0] sm:$0xff]
        %v519 = vld [vmem:[%s117 + $0xbe8] sm:$0xff]
        %v520 = vld [vmem:[%s117 + $0xbf0] sm:$0xff]
        %v521 = vld [vmem:[%s117 + $0xbf8] sm:$0xff]
        %v522 = vld [vmem:[%s117 + $0xc00] sm:$0xff]
        %v523 = vld [vmem:[%s117 + $0xc08] sm:$0xff]
        %v524 = vld [vmem:[%s117 + $0xc10] sm:$0xff]
        %v525 = vld [vmem:[%s117 + $0xc18] sm:$0xff]
        %v526 = vld [vmem:[%s117 + $0xc20] sm:$0xff]
        %v527 = vld [vmem:[%s117 + $0xc28] sm:$0xff]
        %v528 = vld [vmem:[%s117 + $0xc30] sm:$0xff]
        %v529 = vld [vmem:[%s117 + $0xc38] sm:$0xff]
        %v530 = vld [vmem:[%s117 + $0xc40] sm:$0xff]
        %v531 = vld [vmem:[%s117 + $0xc48] sm:$0xff]
        %v532 = vld [vmem:[%s117 + $0xc50] sm:$0xff]
        %v533 = vld [vmem:[%s117 + $0xc58] sm:$0xff]
        %v534 = vld [vmem:[%s117 + $0xc60] sm:$0xff]
        %v535 = vld [vmem:[%s117 + $0xc68] sm:$0xff]
        %v536 = vld [vmem:[%s117 + $0xc70] sm:$0xff]
        %v537 = vld [vmem:[%s117 + $0xc78] sm:$0xff]
        %v538 = vld [vmem:[%s117 + $0xc80] sm:$0xff]
        %v539 = vld [vmem:[%s117 + $0xc88] sm:$0xff]
        %v540 = vld [vmem:[%s117 + $0xc90] sm:$0xff]
        %v541 = vld [vmem:[%s117 + $0xc98] sm:$0xff]
        %v542 = vld [vmem:[%s117 + $0xca0] sm:$0xff]
        %v543 = vld [vmem:[%s117 + $0xca8] sm:$0xff]
        %v544 = vld [vmem:[%s117 + $0xcb0] sm:$0xff]
        %v545 = vld [vmem:[%s117 + $0xcb8] sm:$0xff]
        %v546 = vld [vmem:[%s117 + $0xcc0] sm:$0xff]
        %v547 = vld [vmem:[%s117 + $0xcc8] sm:$0xff]
        %v548 = vld [vmem:[%s117 + $0xcd0] sm:$0xff]
        %v549 = vld [vmem:[%s117 + $0xcd8] sm:$0xff]
        %v550 = vld [vmem:[%s117 + $0xce0] sm:$0xff]
        %v551 = vld [vmem:[%s117 + $0xce8] sm:$0xff]
        %v552 = vld [vmem:[%s117 + $0xcf0] sm:$0xff]
        %v553 = vld [vmem:[%s117 + $0xcf8] sm:$0xff]
        %v554 = vld [vmem:[%s117 + $0xd00] sm:$0xff]
        %v555 = vld [vmem:[%s117 + $0xd08] sm:$0xff]
        %v556 = vld [vmem:[%s117 + $0xd10] sm:$0xff]
        %v557 = vld [vmem:[%s117 + $0xd18] sm:$0xff]
        %v558 = vld [vmem:[%s117 + $0xd20] sm:$0xff]
        %v559 = vld [vmem:[%s117 + $0xd28] sm:$0xff]
        %v560 = vld [vmem:[%s117 + $0xd30] sm:$0xff]
        %v561 = vld [vmem:[%s117 + $0xd38] sm:$0xff]
        %v562 = vld [vmem:[%s117 + $0xd40] sm:$0xff]
        %v563 = vld [vmem:[%s117 + $0xd48] sm:$0xff]
        %v564 = vld [vmem:[%s117 + $0xd50] sm:$0xff]
        %v565 = vld [vmem:[%s117 + $0xd58] sm:$0xff]
        %v566 = vld [vmem:[%s117 + $0xd60] sm:$0xff]
        %v567 = vld [vmem:[%s117 + $0xd68] sm:$0xff]
        %v568 = vld [vmem:[%s117 + $0xd70] sm:$0xff]
        %v569 = vld [vmem:[%s117 + $0xd78] sm:$0xff]
        %v570 = vmax.f32 %v138, %v139
        %v571 = vmax.f32 %v570, %v140
        %572 = vmax.xlane.f32.xlu0 %v571
        %v573 = vpop.xlane.xlu0 %572
        %v574 = vmax.f32 %v141, %v142
        %v575 = vmax.f32 %v574, %v143
        %576 = vmax.xlane.f32.xlu0 %v575
        %v577 = vpop.xlane.xlu0 %576
        %v578 = vmax.f32 %v144, %v145
        %v579 = vmax.f32 %v578, %v146
        %580 = vmax.xlane.f32.xlu0 %v579
        %v581 = vpop.xlane.xlu0 %580
        %v582 = vmax.f32 %v147, %v148
        %v583 = vmax.f32 %v582, %v149
        %584 = vmax.xlane.f32.xlu0 %v583
        %v585 = vpop.xlane.xlu0 %584
        %v586 = vmax.f32 %v150, %v151
        %v587 = vmax.f32 %v586, %v152
        %588 = vmax.xlane.f32.xlu0 %v587
        %v589 = vpop.xlane.xlu0 %588
        %v590 = vmax.f32 %v153, %v154
        %v591 = vmax.f32 %v590, %v155
        %592 = vmax.xlane.f32.xlu0 %v591
        %v593 = vpop.xlane.xlu0 %592
        %v594 = vmax.f32 %v156, %v157
        %v595 = vmax.f32 %v594, %v158
        %596 = vmax.xlane.f32.xlu0 %v595
        %v597 = vpop.xlane.xlu0 %596
        %v598 = vmax.f32 %v159, %v160
        %v599 = vmax.f32 %v598, %v161
        %600 = vmax.xlane.f32.xlu0 %v599
        %v601 = vpop.xlane.xlu0 %600
        %v602 = vmax.f32 %v162, %v163
        %v603 = vmax.f32 %v602, %v164
        %604 = vmax.xlane.f32.xlu0 %v603
        %v605 = vpop.xlane.xlu0 %604
        %v606 = vmax.f32 %v165, %v166
        %v607 = vmax.f32 %v606, %v167
        %608 = vmax.xlane.f32.xlu0 %v607
        %v609 = vpop.xlane.xlu0 %608
        %v610 = vmax.f32 %v168, %v169
        %v611 = vmax.f32 %v610, %v170
        %612 = vmax.xlane.f32.xlu0 %v611
        %v613 = vpop.xlane.xlu0 %612
        %v614 = vmax.f32 %v171, %v172
        %v615 = vmax.f32 %v614, %v173
        %616 = vmax.xlane.f32.xlu0 %v615
        %v617 = vpop.xlane.xlu0 %616
        %v618 = vmax.f32 %v174, %v175
        %v619 = vmax.f32 %v618, %v176
        %620 = vmax.xlane.f32.xlu0 %v619
        %v621 = vpop.xlane.xlu0 %620
        %v622 = vmax.f32 %v177, %v178
        %v623 = vmax.f32 %v622, %v179
        %624 = vmax.xlane.f32.xlu0 %v623
        %v625 = vpop.xlane.xlu0 %624
        %v626 = vmax.f32 %v180, %v181
        %v627 = vmax.f32 %v626, %v182
        %628 = vmax.xlane.f32.xlu0 %v627
        %v629 = vpop.xlane.xlu0 %628
        %v630 = vmax.f32 %v183, %v184
        %v631 = vmax.f32 %v630, %v185
        %632 = vmax.xlane.f32.xlu0 %v631
        %v633 = vpop.xlane.xlu0 %632
        %v634 = vmax.f32 %v186, %v187
        %v635 = vmax.f32 %v634, %v188
        %636 = vmax.xlane.f32.xlu0 %v635
        %v637 = vpop.xlane.xlu0 %636
        %v638 = vmax.f32 %v189, %v190
        %v639 = vmax.f32 %v638, %v191
        %640 = vmax.xlane.f32.xlu0 %v639
        %v641 = vpop.xlane.xlu0 %640
        %v642 = vmax.f32 %v192, %v193
        %v643 = vmax.f32 %v642, %v194
        %644 = vmax.xlane.f32.xlu0 %v643
        %v645 = vpop.xlane.xlu0 %644
        %v646 = vmax.f32 %v195, %v196
        %v647 = vmax.f32 %v646, %v197
        %648 = vmax.xlane.f32.xlu0 %v647
        %v649 = vpop.xlane.xlu0 %648
        %v650 = vmax.f32 %v198, %v199
        %v651 = vmax.f32 %v650, %v200
        %652 = vmax.xlane.f32.xlu0 %v651
        %v653 = vpop.xlane.xlu0 %652
        %v654 = vmax.f32 %v201, %v202
        %v655 = vmax.f32 %v654, %v203
        %656 = vmax.xlane.f32.xlu0 %v655
        %v657 = vpop.xlane.xlu0 %656
        %v658 = vmax.f32 %v204, %v205
        %v659 = vmax.f32 %v658, %v206
        %660 = vmax.xlane.f32.xlu0 %v659
        %v661 = vpop.xlane.xlu0 %660
        %v662 = vmax.f32 %v207, %v208
        %v663 = vmax.f32 %v662, %v209
        %664 = vmax.xlane.f32.xlu0 %v663
        %v665 = vpop.xlane.xlu0 %664
        %v666 = vmax.f32 %v210, %v211
        %v667 = vmax.f32 %v666, %v212
        %668 = vmax.xlane.f32.xlu0 %v667
        %v669 = vpop.xlane.xlu0 %668
        %v670 = vmax.f32 %v213, %v214
        %v671 = vmax.f32 %v670, %v215
        %672 = vmax.xlane.f32.xlu0 %v671
        %v673 = vpop.xlane.xlu0 %672
        %v674 = vmax.f32 %v216, %v217
        %v675 = vmax.f32 %v674, %v218
        %676 = vmax.xlane.f32.xlu0 %v675
        %v677 = vpop.xlane.xlu0 %676
        %v678 = vmax.f32 %v219, %v220
        %v679 = vmax.f32 %v678, %v221
        %680 = vmax.xlane.f32.xlu0 %v679
        %v681 = vpop.xlane.xlu0 %680
        %v682 = vmax.f32 %v222, %v223
        %v683 = vmax.f32 %v682, %v224
        %684 = vmax.xlane.f32.xlu0 %v683
        %v685 = vpop.xlane.xlu0 %684
        %v686 = vmax.f32 %v225, %v226
        %v687 = vmax.f32 %v686, %v227
        %688 = vmax.xlane.f32.xlu0 %v687
        %v689 = vpop.xlane.xlu0 %688
        %v690 = vmax.f32 %v228, %v229
        %v691 = vmax.f32 %v690, %v230
        %692 = vmax.xlane.f32.xlu0 %v691
        %v693 = vpop.xlane.xlu0 %692
        %v694 = vmax.f32 %v231, %v232
        %v695 = vmax.f32 %v694, %v233
        %696 = vmax.xlane.f32.xlu0 %v695
        %v697 = vpop.xlane.xlu0 %696
        %v698 = vmax.f32 %v234, %v235
        %v699 = vmax.f32 %v698, %v236
        %700 = vmax.xlane.f32.xlu0 %v699
        %v701 = vpop.xlane.xlu0 %700
        %v702 = vmax.f32 %v237, %v238
        %v703 = vmax.f32 %v702, %v239
        %704 = vmax.xlane.f32.xlu0 %v703
        %v705 = vpop.xlane.xlu0 %704
        %v706 = vmax.f32 %v240, %v241
        %v707 = vmax.f32 %v706, %v242
        %708 = vmax.xlane.f32.xlu0 %v707
        %v709 = vpop.xlane.xlu0 %708
        %v710 = vmax.f32 %v243, %v244
        %v711 = vmax.f32 %v710, %v245
        %712 = vmax.xlane.f32.xlu0 %v711
        %v713 = vpop.xlane.xlu0 %712
        %v714 = vmax.f32 %v246, %v247
        %v715 = vmax.f32 %v714, %v248
        %716 = vmax.xlane.f32.xlu0 %v715
        %v717 = vpop.xlane.xlu0 %716
        %v718 = vmax.f32 %v249, %v250
        %v719 = vmax.f32 %v718, %v251
        %720 = vmax.xlane.f32.xlu0 %v719
        %v721 = vpop.xlane.xlu0 %720
        %v722 = vmax.f32 %v252, %v253
        %v723 = vmax.f32 %v722, %v254
        %724 = vmax.xlane.f32.xlu0 %v723
        %v725 = vpop.xlane.xlu0 %724
        %v726 = vmax.f32 %v255, %v256
        %v727 = vmax.f32 %v726, %v257
        %728 = vmax.xlane.f32.xlu0 %v727
        %v729 = vpop.xlane.xlu0 %728
        %v730 = vmax.f32 %v258, %v259
        %v731 = vmax.f32 %v730, %v260
        %732 = vmax.xlane.f32.xlu0 %v731
        %v733 = vpop.xlane.xlu0 %732
        %v734 = vmax.f32 %v261, %v262
        %v735 = vmax.f32 %v734, %v263
        %736 = vmax.xlane.f32.xlu0 %v735
        %v737 = vpop.xlane.xlu0 %736
        %v738 = vmax.f32 %v264, %v265
        %v739 = vmax.f32 %v738, %v266
        %740 = vmax.xlane.f32.xlu0 %v739
        %v741 = vpop.xlane.xlu0 %740
        %v742 = vmax.f32 %v267, %v268
        %v743 = vmax.f32 %v742, %v269
        %744 = vmax.xlane.f32.xlu0 %v743
        %v745 = vpop.xlane.xlu0 %744
        %v746 = vmax.f32 %v270, %v271
        %v747 = vmax.f32 %v746, %v272
        %748 = vmax.xlane.f32.xlu0 %v747
        %v749 = vpop.xlane.xlu0 %748
        %v750 = vmax.f32 %v273, %v274
        %v751 = vmax.f32 %v750, %v275
        %752 = vmax.xlane.f32.xlu0 %v751
        %v753 = vpop.xlane.xlu0 %752
        %v754 = vmax.f32 %v276, %v277
        %v755 = vmax.f32 %v754, %v278
        %756 = vmax.xlane.f32.xlu0 %v755
        %v757 = vpop.xlane.xlu0 %756
        %v758 = vmax.f32 %v279, %v280
        %v759 = vmax.f32 %v758, %v281
        %760 = vmax.xlane.f32.xlu0 %v759
        %v761 = vpop.xlane.xlu0 %760
        %v762 = vmax.f32 %v282, %v283
        %v763 = vmax.f32 %v762, %v284
        %764 = vmax.xlane.f32.xlu0 %v763
        %v765 = vpop.xlane.xlu0 %764
        %v766 = vmax.f32 %v285, %v286
        %v767 = vmax.f32 %v766, %v287
        %768 = vmax.xlane.f32.xlu0 %v767
        %v769 = vpop.xlane.xlu0 %768
        %v770 = vmax.f32 %v288, %v289
        %v771 = vmax.f32 %v770, %v290
        %772 = vmax.xlane.f32.xlu0 %v771
        %v773 = vpop.xlane.xlu0 %772
        %v774 = vmax.f32 %v291, %v292
        %v775 = vmax.f32 %v774, %v293
        %776 = vmax.xlane.f32.xlu0 %v775
        %v777 = vpop.xlane.xlu0 %776
        %v778 = vmax.f32 %v294, %v295
        %v779 = vmax.f32 %v778, %v296
        %780 = vmax.xlane.f32.xlu0 %v779
        %v781 = vpop.xlane.xlu0 %780
        %v782 = vmax.f32 %v297, %v298
        %v783 = vmax.f32 %v782, %v299
        %784 = vmax.xlane.f32.xlu0 %v783
        %v785 = vpop.xlane.xlu0 %784
        %v786 = vmax.f32 %v300, %v301
        %v787 = vmax.f32 %v786, %v302
        %788 = vmax.xlane.f32.xlu0 %v787
        %v789 = vpop.xlane.xlu0 %788
        %v790 = vmax.f32 %v303, %v304
        %v791 = vmax.f32 %v790, %v305
        %792 = vmax.xlane.f32.xlu0 %v791
        %v793 = vpop.xlane.xlu0 %792
        %v794 = vmax.f32 %v306, %v307
        %v795 = vmax.f32 %v794, %v308
        %796 = vmax.xlane.f32.xlu0 %v795
        %v797 = vpop.xlane.xlu0 %796
        %v798 = vmax.f32 %v309, %v310
        %v799 = vmax.f32 %v798, %v311
        %800 = vmax.xlane.f32.xlu0 %v799
        %v801 = vpop.xlane.xlu0 %800
        %v802 = vmax.f32 %v312, %v313
        %v803 = vmax.f32 %v802, %v314
        %804 = vmax.xlane.f32.xlu0 %v803
        %v805 = vpop.xlane.xlu0 %804
        %v806 = vmax.f32 %v315, %v316
        %v807 = vmax.f32 %v806, %v317
        %808 = vmax.xlane.f32.xlu0 %v807
        %v809 = vpop.xlane.xlu0 %808
        %v810 = vmax.f32 %v318, %v319
        %v811 = vmax.f32 %v810, %v320
        %812 = vmax.xlane.f32.xlu0 %v811
        %v813 = vpop.xlane.xlu0 %812
        %v814 = vmax.f32 %v321, %v322
        %v815 = vmax.f32 %v814, %v323
        %816 = vmax.xlane.f32.xlu0 %v815
        %v817 = vpop.xlane.xlu0 %816
        %v818 = vmax.f32 %v324, %v325
        %v819 = vmax.f32 %v818, %v326
        %820 = vmax.xlane.f32.xlu0 %v819
        %v821 = vpop.xlane.xlu0 %820
        %v822 = vmax.f32 %v327, %v328
        %v823 = vmax.f32 %v822, %v329
        %824 = vmax.xlane.f32.xlu0 %v823
        %v825 = vpop.xlane.xlu0 %824
        %v826 = vmax.f32 %v330, %v331
        %v827 = vmax.f32 %v826, %v332
        %828 = vmax.xlane.f32.xlu0 %v827
        %v829 = vpop.xlane.xlu0 %828
        %v830 = vmax.f32 %v333, %v334
        %v831 = vmax.f32 %v830, %v335
        %832 = vmax.xlane.f32.xlu0 %v831
        %v833 = vpop.xlane.xlu0 %832
        %v834 = vmax.f32 %v336, %v337
        %v835 = vmax.f32 %v834, %v338
        %836 = vmax.xlane.f32.xlu0 %v835
        %v837 = vpop.xlane.xlu0 %836
        %v838 = vmax.f32 %v339, %v340
        %v839 = vmax.f32 %v838, %v341
        %840 = vmax.xlane.f32.xlu0 %v839
        %v841 = vpop.xlane.xlu0 %840
        %v842 = vmax.f32 %v342, %v343
        %v843 = vmax.f32 %v842, %v344
        %844 = vmax.xlane.f32.xlu0 %v843
        %v845 = vpop.xlane.xlu0 %844
        %v846 = vmax.f32 %v345, %v346
        %v847 = vmax.f32 %v846, %v347
        %848 = vmax.xlane.f32.xlu0 %v847
        %v849 = vpop.xlane.xlu0 %848
        %v850 = vmax.f32 %v348, %v349
        %v851 = vmax.f32 %v850, %v350
        %852 = vmax.xlane.f32.xlu0 %v851
        %v853 = vpop.xlane.xlu0 %852
        %v854 = vmax.f32 %v351, %v352
        %v855 = vmax.f32 %v854, %v353
        %856 = vmax.xlane.f32.xlu0 %v855
        %v857 = vpop.xlane.xlu0 %856
        %v858 = vmax.f32 %v354, %v355
        %v859 = vmax.f32 %v858, %v356
        %860 = vmax.xlane.f32.xlu0 %v859
        %v861 = vpop.xlane.xlu0 %860
        %v862 = vmax.f32 %v357, %v358
        %v863 = vmax.f32 %v862, %v359
        %864 = vmax.xlane.f32.xlu0 %v863
        %v865 = vpop.xlane.xlu0 %864
        %v866 = vmax.f32 %v360, %v361
        %v867 = vmax.f32 %v866, %v362
        %868 = vmax.xlane.f32.xlu0 %v867
        %v869 = vpop.xlane.xlu0 %868
        %v870 = vmax.f32 %v363, %v364
        %v871 = vmax.f32 %v870, %v365
        %872 = vmax.xlane.f32.xlu0 %v871
        %v873 = vpop.xlane.xlu0 %872
        %v874 = vmax.f32 %v366, %v367
        %v875 = vmax.f32 %v874, %v368
        %876 = vmax.xlane.f32.xlu0 %v875
        %v877 = vpop.xlane.xlu0 %876
        %v878 = vmax.f32 %v369, %v370
        %v879 = vmax.f32 %v878, %v371
        %880 = vmax.xlane.f32.xlu0 %v879
        %v881 = vpop.xlane.xlu0 %880
        %v882 = vmax.f32 %v372, %v373
        %v883 = vmax.f32 %v882, %v374
        %884 = vmax.xlane.f32.xlu0 %v883
        %v885 = vpop.xlane.xlu0 %884
        %v886 = vmax.f32 %v375, %v376
        %v887 = vmax.f32 %v886, %v377
        %888 = vmax.xlane.f32.xlu0 %v887
        %v889 = vpop.xlane.xlu0 %888
        %v890 = vmax.f32 %v378, %v379
        %v891 = vmax.f32 %v890, %v380
        %892 = vmax.xlane.f32.xlu0 %v891
        %v893 = vpop.xlane.xlu0 %892
        %v894 = vmax.f32 %v381, %v382
        %v895 = vmax.f32 %v894, %v383
        %896 = vmax.xlane.f32.xlu0 %v895
        %v897 = vpop.xlane.xlu0 %896
        %v898 = vmax.f32 %v384, %v385
        %v899 = vmax.f32 %v898, %v386
        %900 = vmax.xlane.f32.xlu0 %v899
        %v901 = vpop.xlane.xlu0 %900
        %v902 = vmax.f32 %v387, %v388
        %v903 = vmax.f32 %v902, %v389
        %904 = vmax.xlane.f32.xlu0 %v903
        %v905 = vpop.xlane.xlu0 %904
        %v906 = vmax.f32 %v390, %v391
        %v907 = vmax.f32 %v906, %v392
        %908 = vmax.xlane.f32.xlu0 %v907
        %v909 = vpop.xlane.xlu0 %908
        %v910 = vmax.f32 %v393, %v394
        %v911 = vmax.f32 %v910, %v395
        %912 = vmax.xlane.f32.xlu0 %v911
        %v913 = vpop.xlane.xlu0 %912
        %v914 = vmax.f32 %v396, %v397
        %v915 = vmax.f32 %v914, %v398
        %916 = vmax.xlane.f32.xlu0 %v915
        %v917 = vpop.xlane.xlu0 %916
        %v918 = vmax.f32 %v399, %v400
        %v919 = vmax.f32 %v918, %v401
        %920 = vmax.xlane.f32.xlu0 %v919
        %v921 = vpop.xlane.xlu0 %920
        %v922 = vmax.f32 %v402, %v403
        %v923 = vmax.f32 %v922, %v404
        %924 = vmax.xlane.f32.xlu0 %v923
        %v925 = vpop.xlane.xlu0 %924
        %v926 = vmax.f32 %v405, %v406
        %v927 = vmax.f32 %v926, %v407
        %928 = vmax.xlane.f32.xlu0 %v927
        %v929 = vpop.xlane.xlu0 %928
        %v930 = vmax.f32 %v408, %v409
        %v931 = vmax.f32 %v930, %v410
        %932 = vmax.xlane.f32.xlu0 %v931
        %v933 = vpop.xlane.xlu0 %932
        %v934 = vmax.f32 %v411, %v412
        %v935 = vmax.f32 %v934, %v413
        %936 = vmax.xlane.f32.xlu0 %v935
        %v937 = vpop.xlane.xlu0 %936
        %v938 = vmax.f32 %v414, %v415
        %v939 = vmax.f32 %v938, %v416
        %940 = vmax.xlane.f32.xlu0 %v939
        %v941 = vpop.xlane.xlu0 %940
        %v942 = vmax.f32 %v417, %v418
        %v943 = vmax.f32 %v942, %v419
        %944 = vmax.xlane.f32.xlu0 %v943
        %v945 = vpop.xlane.xlu0 %944
        %v946 = vmax.f32 %v420, %v421
        %v947 = vmax.f32 %v946, %v422
        %948 = vmax.xlane.f32.xlu0 %v947
        %v949 = vpop.xlane.xlu0 %948
        %v950 = vmax.f32 %v423, %v424
        %v951 = vmax.f32 %v950, %v425
        %952 = vmax.xlane.f32.xlu0 %v951
        %v953 = vpop.xlane.xlu0 %952
        %v954 = vmax.f32 %v426, %v427
        %v955 = vmax.f32 %v954, %v428
        %956 = vmax.xlane.f32.xlu0 %v955
        %v957 = vpop.xlane.xlu0 %956
        %v958 = vmax.f32 %v429, %v430
        %v959 = vmax.f32 %v958, %v431
        %960 = vmax.xlane.f32.xlu0 %v959
        %v961 = vpop.xlane.xlu0 %960
        %v962 = vmax.f32 %v432, %v433
        %v963 = vmax.f32 %v962, %v434
        %964 = vmax.xlane.f32.xlu0 %v963
        %v965 = vpop.xlane.xlu0 %964
        %v966 = vmax.f32 %v435, %v436
        %v967 = vmax.f32 %v966, %v437
        %968 = vmax.xlane.f32.xlu0 %v967
        %v969 = vpop.xlane.xlu0 %968
        %v970 = vmax.f32 %v438, %v439
        %v971 = vmax.f32 %v970, %v440
        %972 = vmax.xlane.f32.xlu0 %v971
        %v973 = vpop.xlane.xlu0 %972
        %v974 = vmax.f32 %v441, %v442
        %v975 = vmax.f32 %v974, %v443
        %976 = vmax.xlane.f32.xlu0 %v975
        %v977 = vpop.xlane.xlu0 %976
        %v978 = vmax.f32 %v444, %v445
        %v979 = vmax.f32 %v978, %v446
        %980 = vmax.xlane.f32.xlu0 %v979
        %v981 = vpop.xlane.xlu0 %980
        %v982 = vmax.f32 %v447, %v448
        %v983 = vmax.f32 %v982, %v449
        %984 = vmax.xlane.f32.xlu0 %v983
        %v985 = vpop.xlane.xlu0 %984
        %v986 = vmax.f32 %v450, %v451
        %v987 = vmax.f32 %v986, %v452
        %988 = vmax.xlane.f32.xlu0 %v987
        %v989 = vpop.xlane.xlu0 %988
        %v990 = vmax.f32 %v453, %v454
        %v991 = vmax.f32 %v990, %v455
        %992 = vmax.xlane.f32.xlu0 %v991
        %v993 = vpop.xlane.xlu0 %992
        %v994 = vmax.f32 %v456, %v457
        %v995 = vmax.f32 %v994, %v458
        %996 = vmax.xlane.f32.xlu0 %v995
        %v997 = vpop.xlane.xlu0 %996
        %v998 = vmax.f32 %v459, %v460
        %v999 = vmax.f32 %v998, %v461
        %1000 = vmax.xlane.f32.xlu0 %v999
        %v1001 = vpop.xlane.xlu0 %1000
        %v1002 = vmax.f32 %v462, %v463
        %v1003 = vmax.f32 %v1002, %v464
        %1004 = vmax.xlane.f32.xlu0 %v1003
        %v1005 = vpop.xlane.xlu0 %1004
        %v1006 = vmax.f32 %v465, %v466
        %v1007 = vmax.f32 %v1006, %v467
        %1008 = vmax.xlane.f32.xlu0 %v1007
        %v1009 = vpop.xlane.xlu0 %1008
        %v1010 = vmax.f32 %v468, %v469
        %v1011 = vmax.f32 %v1010, %v470
        %1012 = vmax.xlane.f32.xlu0 %v1011
        %v1013 = vpop.xlane.xlu0 %1012
        %v1014 = vmax.f32 %v471, %v472
        %v1015 = vmax.f32 %v1014, %v473
        %1016 = vmax.xlane.f32.xlu0 %v1015
        %v1017 = vpop.xlane.xlu0 %1016
        %v1018 = vmax.f32 %v474, %v475
        %v1019 = vmax.f32 %v1018, %v476
        %1020 = vmax.xlane.f32.xlu0 %v1019
        %v1021 = vpop.xlane.xlu0 %1020
        %v1022 = vmax.f32 %v477, %v478
        %v1023 = vmax.f32 %v1022, %v479
        %1024 = vmax.xlane.f32.xlu0 %v1023
        %v1025 = vpop.xlane.xlu0 %1024
        %v1026 = vmax.f32 %v480, %v481
        %v1027 = vmax.f32 %v1026, %v482
        %1028 = vmax.xlane.f32.xlu0 %v1027
        %v1029 = vpop.xlane.xlu0 %1028
        %v1030 = vmax.f32 %v483, %v484
        %v1031 = vmax.f32 %v1030, %v485
        %1032 = vmax.xlane.f32.xlu0 %v1031
        %v1033 = vpop.xlane.xlu0 %1032
        %v1034 = vmax.f32 %v486, %v487
        %v1035 = vmax.f32 %v1034, %v488
        %1036 = vmax.xlane.f32.xlu0 %v1035
        %v1037 = vpop.xlane.xlu0 %1036
        %v1038 = vmax.f32 %v489, %v490
        %v1039 = vmax.f32 %v1038, %v491
        %1040 = vmax.xlane.f32.xlu0 %v1039
        %v1041 = vpop.xlane.xlu0 %1040
        %v1042 = vmax.f32 %v492, %v493
        %v1043 = vmax.f32 %v1042, %v494
        %1044 = vmax.xlane.f32.xlu0 %v1043
        %v1045 = vpop.xlane.xlu0 %1044
        %v1046 = vmax.f32 %v495, %v496
        %v1047 = vmax.f32 %v1046, %v497
        %1048 = vmax.xlane.f32.xlu0 %v1047
        %v1049 = vpop.xlane.xlu0 %1048
        %v1050 = vmax.f32 %v498, %v499
        %v1051 = vmax.f32 %v1050, %v500
        %1052 = vmax.xlane.f32.xlu0 %v1051
        %v1053 = vpop.xlane.xlu0 %1052
        %v1054 = vmax.f32 %v501, %v502
        %v1055 = vmax.f32 %v1054, %v503
        %1056 = vmax.xlane.f32.xlu0 %v1055
        %v1057 = vpop.xlane.xlu0 %1056
        %v1058 = vmax.f32 %v504, %v505
        %v1059 = vmax.f32 %v1058, %v506
        %1060 = vmax.xlane.f32.xlu0 %v1059
        %v1061 = vpop.xlane.xlu0 %1060
        %v1062 = vmax.f32 %v507, %v508
        %v1063 = vmax.f32 %v1062, %v509
        %1064 = vmax.xlane.f32.xlu0 %v1063
        %v1065 = vpop.xlane.xlu0 %1064
        %v1066 = vmax.f32 %v510, %v511
        %v1067 = vmax.f32 %v1066, %v512
        %1068 = vmax.xlane.f32.xlu0 %v1067
        %v1069 = vpop.xlane.xlu0 %1068
        %v1070 = vmax.f32 %v513, %v514
        %v1071 = vmax.f32 %v1070, %v515
        %1072 = vmax.xlane.f32.xlu0 %v1071
        %v1073 = vpop.xlane.xlu0 %1072
        %v1074 = vmax.f32 %v516, %v517
        %v1075 = vmax.f32 %v1074, %v518
        %1076 = vmax.xlane.f32.xlu0 %v1075
        %v1077 = vpop.xlane.xlu0 %1076
        %v1078 = vmax.f32 %v519, %v520
        %v1079 = vmax.f32 %v1078, %v521
        %1080 = vmax.xlane.f32.xlu0 %v1079
        %v1081 = vpop.xlane.xlu0 %1080
        %v1082 = vmax.f32 %v522, %v523
        %v1083 = vmax.f32 %v1082, %v524
        %1084 = vmax.xlane.f32.xlu0 %v1083
        %v1085 = vpop.xlane.xlu0 %1084
        %v1086 = vmax.f32 %v525, %v526
        %v1087 = vmax.f32 %v1086, %v527
        %1088 = vmax.xlane.f32.xlu0 %v1087
        %v1089 = vpop.xlane.xlu0 %1088
        %v1090 = vmax.f32 %v528, %v529
        %v1091 = vmax.f32 %v1090, %v530
        %1092 = vmax.xlane.f32.xlu0 %v1091
        %v1093 = vpop.xlane.xlu0 %1092
        %v1094 = vmax.f32 %v531, %v532
        %v1095 = vmax.f32 %v1094, %v533
        %1096 = vmax.xlane.f32.xlu0 %v1095
        %v1097 = vpop.xlane.xlu0 %1096
        %v1098 = vmax.f32 %v534, %v535
        %v1099 = vmax.f32 %v1098, %v536
        %1100 = vmax.xlane.f32.xlu0 %v1099
        %v1101 = vpop.xlane.xlu0 %1100
        %v1102 = vmax.f32 %v537, %v538
        %v1103 = vmax.f32 %v1102, %v539
        %1104 = vmax.xlane.f32.xlu0 %v1103
        %v1105 = vpop.xlane.xlu0 %1104
        %v1106 = vmax.f32 %v540, %v541
        %v1107 = vmax.f32 %v1106, %v542
        %1108 = vmax.xlane.f32.xlu0 %v1107
        %v1109 = vpop.xlane.xlu0 %1108
        %v1110 = vmax.f32 %v543, %v544
        %v1111 = vmax.f32 %v1110, %v545
        %1112 = vmax.xlane.f32.xlu0 %v1111
        %v1113 = vpop.xlane.xlu0 %1112
        %v1114 = vmax.f32 %v546, %v547
        %v1115 = vmax.f32 %v1114, %v548
        %1116 = vmax.xlane.f32.xlu0 %v1115
        %v1117 = vpop.xlane.xlu0 %1116
        %v1118 = vmax.f32 %v549, %v550
        %v1119 = vmax.f32 %v1118, %v551
        %1120 = vmax.xlane.f32.xlu0 %v1119
        %v1121 = vpop.xlane.xlu0 %1120
        %v1122 = vmax.f32 %v552, %v553
        %v1123 = vmax.f32 %v1122, %v554
        %1124 = vmax.xlane.f32.xlu0 %v1123
        %v1125 = vpop.xlane.xlu0 %1124
        %v1126 = vmax.f32 %v555, %v556
        %v1127 = vmax.f32 %v1126, %v557
        %1128 = vmax.xlane.f32.xlu0 %v1127
        %v1129 = vpop.xlane.xlu0 %1128
        %v1130 = vmax.f32 %v558, %v559
        %v1131 = vmax.f32 %v1130, %v560
        %1132 = vmax.xlane.f32.xlu0 %v1131
        %v1133 = vpop.xlane.xlu0 %1132
        %v1134 = vmax.f32 %v561, %v562
        %v1135 = vmax.f32 %v1134, %v563
        %1136 = vmax.xlane.f32.xlu0 %v1135
        %v1137 = vpop.xlane.xlu0 %1136
        %v1138 = vmax.f32 %v564, %v565
        %v1139 = vmax.f32 %v1138, %v566
        %1140 = vmax.xlane.f32.xlu0 %v1139
        %v1141 = vpop.xlane.xlu0 %1140
        %v1142 = vmax.f32 %v567, %v568
        %v1143 = vmax.f32 %v1142, %v569
        %1144 = vmax.xlane.f32.xlu0 %v1143
        %v1145 = vpop.xlane.xlu0 %1144
        %v1146 = vsub.f32 %v138, %v573
        %v1147 = vsub.f32 %v139, %v573
        %v1148 = vsub.f32 %v140, %v573
        %v1149 = vsub.f32 %v141, %v577
        %v1150 = vsub.f32 %v142, %v577
        %v1151 = vsub.f32 %v143, %v577
        %v1152 = vsub.f32 %v144, %v581
        %v1153 = vsub.f32 %v145, %v581
        %v1154 = vsub.f32 %v146, %v581
        %v1155 = vsub.f32 %v147, %v585
        %v1156 = vsub.f32 %v148, %v585
        %v1157 = vsub.f32 %v149, %v585
        %v1158 = vsub.f32 %v150, %v589
        %v1159 = vsub.f32 %v151, %v589
        %v1160 = vsub.f32 %v152, %v589
        %v1161 = vsub.f32 %v153, %v593
        %v1162 = vsub.f32 %v154, %v593
        %v1163 = vsub.f32 %v155, %v593
        %v1164 = vsub.f32 %v156, %v597
        %v1165 = vsub.f32 %v157, %v597
        %v1166 = vsub.f32 %v158, %v597
        %v1167 = vsub.f32 %v159, %v601
        %v1168 = vsub.f32 %v160, %v601
        %v1169 = vsub.f32 %v161, %v601
        %v1170 = vsub.f32 %v162, %v605
        %v1171 = vsub.f32 %v163, %v605
        %v1172 = vsub.f32 %v164, %v605
        %v1173 = vsub.f32 %v165, %v609
        %v1174 = vsub.f32 %v166, %v609
        %v1175 = vsub.f32 %v167, %v609
        %v1176 = vsub.f32 %v168, %v613
        %v1177 = vsub.f32 %v169, %v613
        %v1178 = vsub.f32 %v170, %v613
        %v1179 = vsub.f32 %v171, %v617
        %v1180 = vsub.f32 %v172, %v617
        %v1181 = vsub.f32 %v173, %v617
        %v1182 = vsub.f32 %v174, %v621
        %v1183 = vsub.f32 %v175, %v621
        %v1184 = vsub.f32 %v176, %v621
        %v1185 = vsub.f32 %v177, %v625
        %v1186 = vsub.f32 %v178, %v625
        %v1187 = vsub.f32 %v179, %v625
        %v1188 = vsub.f32 %v180, %v629
        %v1189 = vsub.f32 %v181, %v629
        %v1190 = vsub.f32 %v182, %v629
        %v1191 = vsub.f32 %v183, %v633
        %v1192 = vsub.f32 %v184, %v633
        %v1193 = vsub.f32 %v185, %v633
        %v1194 = vsub.f32 %v186, %v637
        %v1195 = vsub.f32 %v187, %v637
        %v1196 = vsub.f32 %v188, %v637
        %v1197 = vsub.f32 %v189, %v641
        %v1198 = vsub.f32 %v190, %v641
        %v1199 = vsub.f32 %v191, %v641
        %v1200 = vsub.f32 %v192, %v645
        %v1201 = vsub.f32 %v193, %v645
        %v1202 = vsub.f32 %v194, %v645
        %v1203 = vsub.f32 %v195, %v649
        %v1204 = vsub.f32 %v196, %v649
        %v1205 = vsub.f32 %v197, %v649
        %v1206 = vsub.f32 %v198, %v653
        %v1207 = vsub.f32 %v199, %v653
        %v1208 = vsub.f32 %v200, %v653
        %v1209 = vsub.f32 %v201, %v657
        %v1210 = vsub.f32 %v202, %v657
        %v1211 = vsub.f32 %v203, %v657
        %v1212 = vsub.f32 %v204, %v661
        %v1213 = vsub.f32 %v205, %v661
        %v1214 = vsub.f32 %v206, %v661
        %v1215 = vsub.f32 %v207, %v665
        %v1216 = vsub.f32 %v208, %v665
        %v1217 = vsub.f32 %v209, %v665
        %v1218 = vsub.f32 %v210, %v669
        %v1219 = vsub.f32 %v211, %v669
        %v1220 = vsub.f32 %v212, %v669
        %v1221 = vsub.f32 %v213, %v673
        %v1222 = vsub.f32 %v214, %v673
        %v1223 = vsub.f32 %v215, %v673
        %v1224 = vsub.f32 %v216, %v677
        %v1225 = vsub.f32 %v217, %v677
        %v1226 = vsub.f32 %v218, %v677
        %v1227 = vsub.f32 %v219, %v681
        %v1228 = vsub.f32 %v220, %v681
        %v1229 = vsub.f32 %v221, %v681
        %v1230 = vsub.f32 %v222, %v685
        %v1231 = vsub.f32 %v223, %v685
        %v1232 = vsub.f32 %v224, %v685
        %v1233 = vsub.f32 %v225, %v689
        %v1234 = vsub.f32 %v226, %v689
        %v1235 = vsub.f32 %v227, %v689
        %v1236 = vsub.f32 %v228, %v693
        %v1237 = vsub.f32 %v229, %v693
        %v1238 = vsub.f32 %v230, %v693
        %v1239 = vsub.f32 %v231, %v697
        %v1240 = vsub.f32 %v232, %v697
        %v1241 = vsub.f32 %v233, %v697
        %v1242 = vsub.f32 %v234, %v701
        %v1243 = vsub.f32 %v235, %v701
        %v1244 = vsub.f32 %v236, %v701
        %v1245 = vsub.f32 %v237, %v705
        %v1246 = vsub.f32 %v238, %v705
        %v1247 = vsub.f32 %v239, %v705
        %v1248 = vsub.f32 %v240, %v709
        %v1249 = vsub.f32 %v241, %v709
        %v1250 = vsub.f32 %v242, %v709
        %v1251 = vsub.f32 %v243, %v713
        %v1252 = vsub.f32 %v244, %v713
        %v1253 = vsub.f32 %v245, %v713
        %v1254 = vsub.f32 %v246, %v717
        %v1255 = vsub.f32 %v247, %v717
        %v1256 = vsub.f32 %v248, %v717
        %v1257 = vsub.f32 %v249, %v721
        %v1258 = vsub.f32 %v250, %v721
        %v1259 = vsub.f32 %v251, %v721
        %v1260 = vsub.f32 %v252, %v725
        %v1261 = vsub.f32 %v253, %v725
        %v1262 = vsub.f32 %v254, %v725
        %v1263 = vsub.f32 %v255, %v729
        %v1264 = vsub.f32 %v256, %v729
        %v1265 = vsub.f32 %v257, %v729
        %v1266 = vsub.f32 %v258, %v733
        %v1267 = vsub.f32 %v259, %v733
        %v1268 = vsub.f32 %v260, %v733
        %v1269 = vsub.f32 %v261, %v737
        %v1270 = vsub.f32 %v262, %v737
        %v1271 = vsub.f32 %v263, %v737
        %v1272 = vsub.f32 %v264, %v741
        %v1273 = vsub.f32 %v265, %v741
        %v1274 = vsub.f32 %v266, %v741
        %v1275 = vsub.f32 %v267, %v745
        %v1276 = vsub.f32 %v268, %v745
        %v1277 = vsub.f32 %v269, %v745
        %v1278 = vsub.f32 %v270, %v749
        %v1279 = vsub.f32 %v271, %v749
        %v1280 = vsub.f32 %v272, %v749
        %v1281 = vsub.f32 %v273, %v753
        %v1282 = vsub.f32 %v274, %v753
        %v1283 = vsub.f32 %v275, %v753
        %v1284 = vsub.f32 %v276, %v757
        %v1285 = vsub.f32 %v277, %v757
        %v1286 = vsub.f32 %v278, %v757
        %v1287 = vsub.f32 %v279, %v761
        %v1288 = vsub.f32 %v280, %v761
        %v1289 = vsub.f32 %v281, %v761
        %v1290 = vsub.f32 %v282, %v765
        %v1291 = vsub.f32 %v283, %v765
        %v1292 = vsub.f32 %v284, %v765
        %v1293 = vsub.f32 %v285, %v769
        %v1294 = vsub.f32 %v286, %v769
        %v1295 = vsub.f32 %v287, %v769
        %v1296 = vsub.f32 %v288, %v773
        %v1297 = vsub.f32 %v289, %v773
        %v1298 = vsub.f32 %v290, %v773
        %v1299 = vsub.f32 %v291, %v777
        %v1300 = vsub.f32 %v292, %v777
        %v1301 = vsub.f32 %v293, %v777
        %v1302 = vsub.f32 %v294, %v781
        %v1303 = vsub.f32 %v295, %v781
        %v1304 = vsub.f32 %v296, %v781
        %v1305 = vsub.f32 %v297, %v785
        %v1306 = vsub.f32 %v298, %v785
        %v1307 = vsub.f32 %v299, %v785
        %v1308 = vsub.f32 %v300, %v789
        %v1309 = vsub.f32 %v301, %v789
        %v1310 = vsub.f32 %v302, %v789
        %v1311 = vsub.f32 %v303, %v793
        %v1312 = vsub.f32 %v304, %v793
        %v1313 = vsub.f32 %v305, %v793
        %v1314 = vsub.f32 %v306, %v797
        %v1315 = vsub.f32 %v307, %v797
        %v1316 = vsub.f32 %v308, %v797
        %v1317 = vsub.f32 %v309, %v801
        %v1318 = vsub.f32 %v310, %v801
        %v1319 = vsub.f32 %v311, %v801
        %v1320 = vsub.f32 %v312, %v805
        %v1321 = vsub.f32 %v313, %v805
        %v1322 = vsub.f32 %v314, %v805
        %v1323 = vsub.f32 %v315, %v809
        %v1324 = vsub.f32 %v316, %v809
        %v1325 = vsub.f32 %v317, %v809
        %v1326 = vsub.f32 %v318, %v813
        %v1327 = vsub.f32 %v319, %v813
        %v1328 = vsub.f32 %v320, %v813
        %v1329 = vsub.f32 %v321, %v817
        %v1330 = vsub.f32 %v322, %v817
        %v1331 = vsub.f32 %v323, %v817
        %v1332 = vsub.f32 %v324, %v821
        %v1333 = vsub.f32 %v325, %v821
        %v1334 = vsub.f32 %v326, %v821
        %v1335 = vsub.f32 %v327, %v825
        %v1336 = vsub.f32 %v328, %v825
        %v1337 = vsub.f32 %v329, %v825
        %v1338 = vsub.f32 %v330, %v829
        %v1339 = vsub.f32 %v331, %v829
        %v1340 = vsub.f32 %v332, %v829
        %v1341 = vsub.f32 %v333, %v833
        %v1342 = vsub.f32 %v334, %v833
        %v1343 = vsub.f32 %v335, %v833
        %v1344 = vsub.f32 %v336, %v837
        %v1345 = vsub.f32 %v337, %v837
        %v1346 = vsub.f32 %v338, %v837
        %v1347 = vsub.f32 %v339, %v841
        %v1348 = vsub.f32 %v340, %v841
        %v1349 = vsub.f32 %v341, %v841
        %v1350 = vsub.f32 %v342, %v845
        %v1351 = vsub.f32 %v343, %v845
        %v1352 = vsub.f32 %v344, %v845
        %v1353 = vsub.f32 %v345, %v849
        %v1354 = vsub.f32 %v346, %v849
        %v1355 = vsub.f32 %v347, %v849
        %v1356 = vsub.f32 %v348, %v853
        %v1357 = vsub.f32 %v349, %v853
        %v1358 = vsub.f32 %v350, %v853
        %v1359 = vsub.f32 %v351, %v857
        %v1360 = vsub.f32 %v352, %v857
        %v1361 = vsub.f32 %v353, %v857
        %v1362 = vsub.f32 %v354, %v861
        %v1363 = vsub.f32 %v355, %v861
        %v1364 = vsub.f32 %v356, %v861
        %v1365 = vsub.f32 %v357, %v865
        %v1366 = vsub.f32 %v358, %v865
        %v1367 = vsub.f32 %v359, %v865
        %v1368 = vsub.f32 %v360, %v869
        %v1369 = vsub.f32 %v361, %v869
        %v1370 = vsub.f32 %v362, %v869
        %v1371 = vsub.f32 %v363, %v873
        %v1372 = vsub.f32 %v364, %v873
        %v1373 = vsub.f32 %v365, %v873
        %v1374 = vsub.f32 %v366, %v877
        %v1375 = vsub.f32 %v367, %v877
        %v1376 = vsub.f32 %v368, %v877
        %v1377 = vsub.f32 %v369, %v881
        %v1378 = vsub.f32 %v370, %v881
        %v1379 = vsub.f32 %v371, %v881
        %v1380 = vsub.f32 %v372, %v885
        %v1381 = vsub.f32 %v373, %v885
        %v1382 = vsub.f32 %v374, %v885
        %v1383 = vsub.f32 %v375, %v889
        %v1384 = vsub.f32 %v376, %v889
        %v1385 = vsub.f32 %v377, %v889
        %v1386 = vsub.f32 %v378, %v893
        %v1387 = vsub.f32 %v379, %v893
        %v1388 = vsub.f32 %v380, %v893
        %v1389 = vsub.f32 %v381, %v897
        %v1390 = vsub.f32 %v382, %v897
        %v1391 = vsub.f32 %v383, %v897
        %v1392 = vsub.f32 %v384, %v901
        %v1393 = vsub.f32 %v385, %v901
        %v1394 = vsub.f32 %v386, %v901
        %v1395 = vsub.f32 %v387, %v905
        %v1396 = vsub.f32 %v388, %v905
        %v1397 = vsub.f32 %v389, %v905
        %v1398 = vsub.f32 %v390, %v909
        %v1399 = vsub.f32 %v391, %v909
        %v1400 = vsub.f32 %v392, %v909
        %v1401 = vsub.f32 %v393, %v913
        %v1402 = vsub.f32 %v394, %v913
        %v1403 = vsub.f32 %v395, %v913
        %v1404 = vsub.f32 %v396, %v917
        %v1405 = vsub.f32 %v397, %v917
        %v1406 = vsub.f32 %v398, %v917
        %v1407 = vsub.f32 %v399, %v921
        %v1408 = vsub.f32 %v400, %v921
        %v1409 = vsub.f32 %v401, %v921
        %v1410 = vsub.f32 %v402, %v925
        %v1411 = vsub.f32 %v403, %v925
        %v1412 = vsub.f32 %v404, %v925
        %v1413 = vsub.f32 %v405, %v929
        %v1414 = vsub.f32 %v406, %v929
        %v1415 = vsub.f32 %v407, %v929
        %v1416 = vsub.f32 %v408, %v933
        %v1417 = vsub.f32 %v409, %v933
        %v1418 = vsub.f32 %v410, %v933
        %v1419 = vsub.f32 %v411, %v937
        %v1420 = vsub.f32 %v412, %v937
        %v1421 = vsub.f32 %v413, %v937
        %v1422 = vsub.f32 %v414, %v941
        %v1423 = vsub.f32 %v415, %v941
        %v1424 = vsub.f32 %v416, %v941
        %v1425 = vsub.f32 %v417, %v945
        %v1426 = vsub.f32 %v418, %v945
        %v1427 = vsub.f32 %v419, %v945
        %v1428 = vsub.f32 %v420, %v949
        %v1429 = vsub.f32 %v421, %v949
        %v1430 = vsub.f32 %v422, %v949
        %v1431 = vsub.f32 %v423, %v953
        %v1432 = vsub.f32 %v424, %v953
        %v1433 = vsub.f32 %v425, %v953
        %v1434 = vsub.f32 %v426, %v957
        %v1435 = vsub.f32 %v427, %v957
        %v1436 = vsub.f32 %v428, %v957
        %v1437 = vsub.f32 %v429, %v961
        %v1438 = vsub.f32 %v430, %v961
        %v1439 = vsub.f32 %v431, %v961
        %v1440 = vsub.f32 %v432, %v965
        %v1441 = vsub.f32 %v433, %v965
        %v1442 = vsub.f32 %v434, %v965
        %v1443 = vsub.f32 %v435, %v969
        %v1444 = vsub.f32 %v436, %v969
        %v1445 = vsub.f32 %v437, %v969
        %v1446 = vsub.f32 %v438, %v973
        %v1447 = vsub.f32 %v439, %v973
        %v1448 = vsub.f32 %v440, %v973
        %v1449 = vsub.f32 %v441, %v977
        %v1450 = vsub.f32 %v442, %v977
        %v1451 = vsub.f32 %v443, %v977
        %v1452 = vsub.f32 %v444, %v981
        %v1453 = vsub.f32 %v445, %v981
        %v1454 = vsub.f32 %v446, %v981
        %v1455 = vsub.f32 %v447, %v985
        %v1456 = vsub.f32 %v448, %v985
        %v1457 = vsub.f32 %v449, %v985
        %v1458 = vsub.f32 %v450, %v989
        %v1459 = vsub.f32 %v451, %v989
        %v1460 = vsub.f32 %v452, %v989
        %v1461 = vsub.f32 %v453, %v993
        %v1462 = vsub.f32 %v454, %v993
        %v1463 = vsub.f32 %v455, %v993
        %v1464 = vsub.f32 %v456, %v997
        %v1465 = vsub.f32 %v457, %v997
        %v1466 = vsub.f32 %v458, %v997
        %v1467 = vsub.f32 %v459, %v1001
        %v1468 = vsub.f32 %v460, %v1001
        %v1469 = vsub.f32 %v461, %v1001
        %v1470 = vsub.f32 %v462, %v1005
        %v1471 = vsub.f32 %v463, %v1005
        %v1472 = vsub.f32 %v464, %v1005
        %v1473 = vsub.f32 %v465, %v1009
        %v1474 = vsub.f32 %v466, %v1009
        %v1475 = vsub.f32 %v467, %v1009
        %v1476 = vsub.f32 %v468, %v1013
        %v1477 = vsub.f32 %v469, %v1013
        %v1478 = vsub.f32 %v470, %v1013
        %v1479 = vsub.f32 %v471, %v1017
        %v1480 = vsub.f32 %v472, %v1017
        %v1481 = vsub.f32 %v473, %v1017
        %v1482 = vsub.f32 %v474, %v1021
        %v1483 = vsub.f32 %v475, %v1021
        %v1484 = vsub.f32 %v476, %v1021
        %v1485 = vsub.f32 %v477, %v1025
        %v1486 = vsub.f32 %v478, %v1025
        %v1487 = vsub.f32 %v479, %v1025
        %v1488 = vsub.f32 %v480, %v1029
        %v1489 = vsub.f32 %v481, %v1029
        %v1490 = vsub.f32 %v482, %v1029
        %v1491 = vsub.f32 %v483, %v1033
        %v1492 = vsub.f32 %v484, %v1033
        %v1493 = vsub.f32 %v485, %v1033
        %v1494 = vsub.f32 %v486, %v1037
        %v1495 = vsub.f32 %v487, %v1037
        %v1496 = vsub.f32 %v488, %v1037
        %v1497 = vsub.f32 %v489, %v1041
        %v1498 = vsub.f32 %v490, %v1041
        %v1499 = vsub.f32 %v491, %v1041
        %v1500 = vsub.f32 %v492, %v1045
        %v1501 = vsub.f32 %v493, %v1045
        %v1502 = vsub.f32 %v494, %v1045
        %v1503 = vsub.f32 %v495, %v1049
        %v1504 = vsub.f32 %v496, %v1049
        %v1505 = vsub.f32 %v497, %v1049
        %v1506 = vsub.f32 %v498, %v1053
        %v1507 = vsub.f32 %v499, %v1053
        %v1508 = vsub.f32 %v500, %v1053
        %v1509 = vsub.f32 %v501, %v1057
        %v1510 = vsub.f32 %v502, %v1057
        %v1511 = vsub.f32 %v503, %v1057
        %v1512 = vsub.f32 %v504, %v1061
        %v1513 = vsub.f32 %v505, %v1061
        %v1514 = vsub.f32 %v506, %v1061
        %v1515 = vsub.f32 %v507, %v1065
        %v1516 = vsub.f32 %v508, %v1065
        %v1517 = vsub.f32 %v509, %v1065
        %v1518 = vsub.f32 %v510, %v1069
        %v1519 = vsub.f32 %v511, %v1069
        %v1520 = vsub.f32 %v512, %v1069
        %v1521 = vsub.f32 %v513, %v1073
        %v1522 = vsub.f32 %v514, %v1073
        %v1523 = vsub.f32 %v515, %v1073
        %v1524 = vsub.f32 %v516, %v1077
        %v1525 = vsub.f32 %v517, %v1077
        %v1526 = vsub.f32 %v518, %v1077
        %v1527 = vsub.f32 %v519, %v1081
        %v1528 = vsub.f32 %v520, %v1081
        %v1529 = vsub.f32 %v521, %v1081
        %v1530 = vsub.f32 %v522, %v1085
        %v1531 = vsub.f32 %v523, %v1085
        %v1532 = vsub.f32 %v524, %v1085
        %v1533 = vsub.f32 %v525, %v1089
        %v1534 = vsub.f32 %v526, %v1089
        %v1535 = vsub.f32 %v527, %v1089
        %v1536 = vsub.f32 %v528, %v1093
        %v1537 = vsub.f32 %v529, %v1093
        %v1538 = vsub.f32 %v530, %v1093
        %v1539 = vsub.f32 %v531, %v1097
        %v1540 = vsub.f32 %v532, %v1097
        %v1541 = vsub.f32 %v533, %v1097
        %v1542 = vsub.f32 %v534, %v1101
        %v1543 = vsub.f32 %v535, %v1101
        %v1544 = vsub.f32 %v536, %v1101
        %v1545 = vsub.f32 %v537, %v1105
        %v1546 = vsub.f32 %v538, %v1105
        %v1547 = vsub.f32 %v539, %v1105
        %v1548 = vsub.f32 %v540, %v1109
        %v1549 = vsub.f32 %v541, %v1109
        %v1550 = vsub.f32 %v542, %v1109
        %v1551 = vsub.f32 %v543, %v1113
        %v1552 = vsub.f32 %v544, %v1113
        %v1553 = vsub.f32 %v545, %v1113
        %v1554 = vsub.f32 %v546, %v1117
        %v1555 = vsub.f32 %v547, %v1117
        %v1556 = vsub.f32 %v548, %v1117
        %v1557 = vsub.f32 %v549, %v1121
        %v1558 = vsub.f32 %v550, %v1121
        %v1559 = vsub.f32 %v551, %v1121
        %v1560 = vsub.f32 %v552, %v1125
        %v1561 = vsub.f32 %v553, %v1125
        %v1562 = vsub.f32 %v554, %v1125
        %v1563 = vsub.f32 %v555, %v1129
        %v1564 = vsub.f32 %v556, %v1129
        %v1565 = vsub.f32 %v557, %v1129
        %v1566 = vsub.f32 %v558, %v1133
        %v1567 = vsub.f32 %v559, %v1133
        %v1568 = vsub.f32 %v560, %v1133
        %v1569 = vsub.f32 %v561, %v1137
        %v1570 = vsub.f32 %v562, %v1137
        %v1571 = vsub.f32 %v563, %v1137
        %v1572 = vsub.f32 %v564, %v1141
        %v1573 = vsub.f32 %v565, %v1141
        %v1574 = vsub.f32 %v566, %v1141
        %v1575 = vsub.f32 %v567, %v1145
        %v1576 = vsub.f32 %v568, %v1145
        %v1577 = vsub.f32 %v569, %v1145
        %v1578 = vmul.f32 %v1146, 1.442695
        %v1579 = vpow.pop %v1578
        %v1580 = vmul.f32 %v1147, 1.442695
        %v1581 = vpow.pop %v1580
        %v1582 = vmul.f32 %v1148, 1.442695
        %v1583 = vpow.pop %v1582
        %v1584 = vmul.f32 %v1149, 1.442695
        %v1585 = vpow.pop %v1584
        %v1586 = vmul.f32 %v1150, 1.442695
        %v1587 = vpow.pop %v1586
        %v1588 = vmul.f32 %v1151, 1.442695
        %v1589 = vpow.pop %v1588
        %v1590 = vmul.f32 %v1152, 1.442695
        %v1591 = vpow.pop %v1590
        %v1592 = vmul.f32 %v1153, 1.442695
        %v1593 = vpow.pop %v1592
        %v1594 = vmul.f32 %v1154, 1.442695
        %v1595 = vpow.pop %v1594
        %v1596 = vmul.f32 %v1155, 1.442695
        %v1597 = vpow.pop %v1596
        %v1598 = vmul.f32 %v1156, 1.442695
        %v1599 = vpow.pop %v1598
        %v1600 = vmul.f32 %v1157, 1.442695
        %v1601 = vpow.pop %v1600
        %v1602 = vmul.f32 %v1158, 1.442695
        %v1603 = vpow.pop %v1602
        %v1604 = vmul.f32 %v1159, 1.442695
        %v1605 = vpow.pop %v1604
        %v1606 = vmul.f32 %v1160, 1.442695
        %v1607 = vpow.pop %v1606
        %v1608 = vmul.f32 %v1161, 1.442695
        %v1609 = vpow.pop %v1608
        %v1610 = vmul.f32 %v1162, 1.442695
        %v1611 = vpow.pop %v1610
        %v1612 = vmul.f32 %v1163, 1.442695
        %v1613 = vpow.pop %v1612
        %v1614 = vmul.f32 %v1164, 1.442695
        %v1615 = vpow.pop %v1614
        %v1616 = vmul.f32 %v1165, 1.442695
        %v1617 = vpow.pop %v1616
        %v1618 = vmul.f32 %v1166, 1.442695
        %v1619 = vpow.pop %v1618
        %v1620 = vmul.f32 %v1167, 1.442695
        %v1621 = vpow.pop %v1620
        %v1622 = vmul.f32 %v1168, 1.442695
        %v1623 = vpow.pop %v1622
        %v1624 = vmul.f32 %v1169, 1.442695
        %v1625 = vpow.pop %v1624
        %v1626 = vmul.f32 %v1170, 1.442695
        %v1627 = vpow.pop %v1626
        %v1628 = vmul.f32 %v1171, 1.442695
        %v1629 = vpow.pop %v1628
        %v1630 = vmul.f32 %v1172, 1.442695
        %v1631 = vpow.pop %v1630
        %v1632 = vmul.f32 %v1173, 1.442695
        %v1633 = vpow.pop %v1632
        %v1634 = vmul.f32 %v1174, 1.442695
        %v1635 = vpow.pop %v1634
        %v1636 = vmul.f32 %v1175, 1.442695
        %v1637 = vpow.pop %v1636
        %v1638 = vmul.f32 %v1176, 1.442695
        %v1639 = vpow.pop %v1638
        %v1640 = vmul.f32 %v1177, 1.442695
        %v1641 = vpow.pop %v1640
        %v1642 = vmul.f32 %v1178, 1.442695
        %v1643 = vpow.pop %v1642
        %v1644 = vmul.f32 %v1179, 1.442695
        %v1645 = vpow.pop %v1644
        %v1646 = vmul.f32 %v1180, 1.442695
        %v1647 = vpow.pop %v1646
        %v1648 = vmul.f32 %v1181, 1.442695
        %v1649 = vpow.pop %v1648
        %v1650 = vmul.f32 %v1182, 1.442695
        %v1651 = vpow.pop %v1650
        %v1652 = vmul.f32 %v1183, 1.442695
        %v1653 = vpow.pop %v1652
        %v1654 = vmul.f32 %v1184, 1.442695
        %v1655 = vpow.pop %v1654
        %v1656 = vmul.f32 %v1185, 1.442695
        %v1657 = vpow.pop %v1656
        %v1658 = vmul.f32 %v1186, 1.442695
        %v1659 = vpow.pop %v1658
        %v1660 = vmul.f32 %v1187, 1.442695
        %v1661 = vpow.pop %v1660
        %v1662 = vmul.f32 %v1188, 1.442695
        %v1663 = vpow.pop %v1662
        %v1664 = vmul.f32 %v1189, 1.442695
        %v1665 = vpow.pop %v1664
        %v1666 = vmul.f32 %v1190, 1.442695
        %v1667 = vpow.pop %v1666
        %v1668 = vmul.f32 %v1191, 1.442695
        %v1669 = vpow.pop %v1668
        %v1670 = vmul.f32 %v1192, 1.442695
        %v1671 = vpow.pop %v1670
        %v1672 = vmul.f32 %v1193, 1.442695
        %v1673 = vpow.pop %v1672
        %v1674 = vmul.f32 %v1194, 1.442695
        %v1675 = vpow.pop %v1674
        %v1676 = vmul.f32 %v1195, 1.442695
        %v1677 = vpow.pop %v1676
        %v1678 = vmul.f32 %v1196, 1.442695
        %v1679 = vpow.pop %v1678
        %v1680 = vmul.f32 %v1197, 1.442695
        %v1681 = vpow.pop %v1680
        %v1682 = vmul.f32 %v1198, 1.442695
        %v1683 = vpow.pop %v1682
        %v1684 = vmul.f32 %v1199, 1.442695
        %v1685 = vpow.pop %v1684
        %v1686 = vmul.f32 %v1200, 1.442695
        %v1687 = vpow.pop %v1686
        %v1688 = vmul.f32 %v1201, 1.442695
        %v1689 = vpow.pop %v1688
        %v1690 = vmul.f32 %v1202, 1.442695
        %v1691 = vpow.pop %v1690
        %v1692 = vmul.f32 %v1203, 1.442695
        %v1693 = vpow.pop %v1692
        %v1694 = vmul.f32 %v1204, 1.442695
        %v1695 = vpow.pop %v1694
        %v1696 = vmul.f32 %v1205, 1.442695
        %v1697 = vpow.pop %v1696
        %v1698 = vmul.f32 %v1206, 1.442695
        %v1699 = vpow.pop %v1698
        %v1700 = vmul.f32 %v1207, 1.442695
        %v1701 = vpow.pop %v1700
        %v1702 = vmul.f32 %v1208, 1.442695
        %v1703 = vpow.pop %v1702
        %v1704 = vmul.f32 %v1209, 1.442695
        %v1705 = vpow.pop %v1704
        %v1706 = vmul.f32 %v1210, 1.442695
        %v1707 = vpow.pop %v1706
        %v1708 = vmul.f32 %v1211, 1.442695
        %v1709 = vpow.pop %v1708
        %v1710 = vmul.f32 %v1212, 1.442695
        %v1711 = vpow.pop %v1710
        %v1712 = vmul.f32 %v1213, 1.442695
        %v1713 = vpow.pop %v1712
        %v1714 = vmul.f32 %v1214, 1.442695
        %v1715 = vpow.pop %v1714
        %v1716 = vmul.f32 %v1215, 1.442695
        %v1717 = vpow.pop %v1716
        %v1718 = vmul.f32 %v1216, 1.442695
        %v1719 = vpow.pop %v1718
        %v1720 = vmul.f32 %v1217, 1.442695
        %v1721 = vpow.pop %v1720
        %v1722 = vmul.f32 %v1218, 1.442695
        %v1723 = vpow.pop %v1722
        %v1724 = vmul.f32 %v1219, 1.442695
        %v1725 = vpow.pop %v1724
        %v1726 = vmul.f32 %v1220, 1.442695
        %v1727 = vpow.pop %v1726
        %v1728 = vmul.f32 %v1221, 1.442695
        %v1729 = vpow.pop %v1728
        %v1730 = vmul.f32 %v1222, 1.442695
        %v1731 = vpow.pop %v1730
        %v1732 = vmul.f32 %v1223, 1.442695
        %v1733 = vpow.pop %v1732
        %v1734 = vmul.f32 %v1224, 1.442695
        %v1735 = vpow.pop %v1734
        %v1736 = vmul.f32 %v1225, 1.442695
        %v1737 = vpow.pop %v1736
        %v1738 = vmul.f32 %v1226, 1.442695
        %v1739 = vpow.pop %v1738
        %v1740 = vmul.f32 %v1227, 1.442695
        %v1741 = vpow.pop %v1740
        %v1742 = vmul.f32 %v1228, 1.442695
        %v1743 = vpow.pop %v1742
        %v1744 = vmul.f32 %v1229, 1.442695
        %v1745 = vpow.pop %v1744
        %v1746 = vmul.f32 %v1230, 1.442695
        %v1747 = vpow.pop %v1746
        %v1748 = vmul.f32 %v1231, 1.442695
        %v1749 = vpow.pop %v1748
        %v1750 = vmul.f32 %v1232, 1.442695
        %v1751 = vpow.pop %v1750
        %v1752 = vmul.f32 %v1233, 1.442695
        %v1753 = vpow.pop %v1752
        %v1754 = vmul.f32 %v1234, 1.442695
        %v1755 = vpow.pop %v1754
        %v1756 = vmul.f32 %v1235, 1.442695
        %v1757 = vpow.pop %v1756
        %v1758 = vmul.f32 %v1236, 1.442695
        %v1759 = vpow.pop %v1758
        %v1760 = vmul.f32 %v1237, 1.442695
        %v1761 = vpow.pop %v1760
        %v1762 = vmul.f32 %v1238, 1.442695
        %v1763 = vpow.pop %v1762
        %v1764 = vmul.f32 %v1239, 1.442695
        %v1765 = vpow.pop %v1764
        %v1766 = vmul.f32 %v1240, 1.442695
        %v1767 = vpow.pop %v1766
        %v1768 = vmul.f32 %v1241, 1.442695
        %v1769 = vpow.pop %v1768
        %v1770 = vmul.f32 %v1242, 1.442695
        %v1771 = vpow.pop %v1770
        %v1772 = vmul.f32 %v1243, 1.442695
        %v1773 = vpow.pop %v1772
        %v1774 = vmul.f32 %v1244, 1.442695
        %v1775 = vpow.pop %v1774
        %v1776 = vmul.f32 %v1245, 1.442695
        %v1777 = vpow.pop %v1776
        %v1778 = vmul.f32 %v1246, 1.442695
        %v1779 = vpow.pop %v1778
        %v1780 = vmul.f32 %v1247, 1.442695
        %v1781 = vpow.pop %v1780
        %v1782 = vmul.f32 %v1248, 1.442695
        %v1783 = vpow.pop %v1782
        %v1784 = vmul.f32 %v1249, 1.442695
        %v1785 = vpow.pop %v1784
        %v1786 = vmul.f32 %v1250, 1.442695
        %v1787 = vpow.pop %v1786
        %v1788 = vmul.f32 %v1251, 1.442695
        %v1789 = vpow.pop %v1788
        %v1790 = vmul.f32 %v1252, 1.442695
        %v1791 = vpow.pop %v1790
        %v1792 = vmul.f32 %v1253, 1.442695
        %v1793 = vpow.pop %v1792
        %v1794 = vmul.f32 %v1254, 1.442695
        %v1795 = vpow.pop %v1794
        %v1796 = vmul.f32 %v1255, 1.442695
        %v1797 = vpow.pop %v1796
        %v1798 = vmul.f32 %v1256, 1.442695
        %v1799 = vpow.pop %v1798
        %v1800 = vmul.f32 %v1257, 1.442695
        %v1801 = vpow.pop %v1800
        %v1802 = vmul.f32 %v1258, 1.442695
        %v1803 = vpow.pop %v1802
        %v1804 = vmul.f32 %v1259, 1.442695
        %v1805 = vpow.pop %v1804
        %v1806 = vmul.f32 %v1260, 1.442695
        %v1807 = vpow.pop %v1806
        %v1808 = vmul.f32 %v1261, 1.442695
        %v1809 = vpow.pop %v1808
        %v1810 = vmul.f32 %v1262, 1.442695
        %v1811 = vpow.pop %v1810
        %v1812 = vmul.f32 %v1263, 1.442695
        %v1813 = vpow.pop %v1812
        %v1814 = vmul.f32 %v1264, 1.442695
        %v1815 = vpow.pop %v1814
        %v1816 = vmul.f32 %v1265, 1.442695
        %v1817 = vpow.pop %v1816
        %v1818 = vmul.f32 %v1266, 1.442695
        %v1819 = vpow.pop %v1818
        %v1820 = vmul.f32 %v1267, 1.442695
        %v1821 = vpow.pop %v1820
        %v1822 = vmul.f32 %v1268, 1.442695
        %v1823 = vpow.pop %v1822
        %v1824 = vmul.f32 %v1269, 1.442695
        %v1825 = vpow.pop %v1824
        %v1826 = vmul.f32 %v1270, 1.442695
        %v1827 = vpow.pop %v1826
        %v1828 = vmul.f32 %v1271, 1.442695
        %v1829 = vpow.pop %v1828
        %v1830 = vmul.f32 %v1272, 1.442695
        %v1831 = vpow.pop %v1830
        %v1832 = vmul.f32 %v1273, 1.442695
        %v1833 = vpow.pop %v1832
        %v1834 = vmul.f32 %v1274, 1.442695
        %v1835 = vpow.pop %v1834
        %v1836 = vmul.f32 %v1275, 1.442695
        %v1837 = vpow.pop %v1836
        %v1838 = vmul.f32 %v1276, 1.442695
        %v1839 = vpow.pop %v1838
        %v1840 = vmul.f32 %v1277, 1.442695
        %v1841 = vpow.pop %v1840
        %v1842 = vmul.f32 %v1278, 1.442695
        %v1843 = vpow.pop %v1842
        %v1844 = vmul.f32 %v1279, 1.442695
        %v1845 = vpow.pop %v1844
        %v1846 = vmul.f32 %v1280, 1.442695
        %v1847 = vpow.pop %v1846
        %v1848 = vmul.f32 %v1281, 1.442695
        %v1849 = vpow.pop %v1848
        %v1850 = vmul.f32 %v1282, 1.442695
        %v1851 = vpow.pop %v1850
        %v1852 = vmul.f32 %v1283, 1.442695
        %v1853 = vpow.pop %v1852
        %v1854 = vmul.f32 %v1284, 1.442695
        %v1855 = vpow.pop %v1854
        %v1856 = vmul.f32 %v1285, 1.442695
        %v1857 = vpow.pop %v1856
        %v1858 = vmul.f32 %v1286, 1.442695
        %v1859 = vpow.pop %v1858
        %v1860 = vmul.f32 %v1287, 1.442695
        %v1861 = vpow.pop %v1860
        %v1862 = vmul.f32 %v1288, 1.442695
        %v1863 = vpow.pop %v1862
        %v1864 = vmul.f32 %v1289, 1.442695
        %v1865 = vpow.pop %v1864
        %v1866 = vmul.f32 %v1290, 1.442695
        %v1867 = vpow.pop %v1866
        %v1868 = vmul.f32 %v1291, 1.442695
        %v1869 = vpow.pop %v1868
        %v1870 = vmul.f32 %v1292, 1.442695
        %v1871 = vpow.pop %v1870
        %v1872 = vmul.f32 %v1293, 1.442695
        %v1873 = vpow.pop %v1872
        %v1874 = vmul.f32 %v1294, 1.442695
        %v1875 = vpow.pop %v1874
        %v1876 = vmul.f32 %v1295, 1.442695
        %v1877 = vpow.pop %v1876
        %v1878 = vmul.f32 %v1296, 1.442695
        %v1879 = vpow.pop %v1878
        %v1880 = vmul.f32 %v1297, 1.442695
        %v1881 = vpow.pop %v1880
        %v1882 = vmul.f32 %v1298, 1.442695
        %v1883 = vpow.pop %v1882
        %v1884 = vmul.f32 %v1299, 1.442695
        %v1885 = vpow.pop %v1884
        %v1886 = vmul.f32 %v1300, 1.442695
        %v1887 = vpow.pop %v1886
        %v1888 = vmul.f32 %v1301, 1.442695
        %v1889 = vpow.pop %v1888
        %v1890 = vmul.f32 %v1302, 1.442695
        %v1891 = vpow.pop %v1890
        %v1892 = vmul.f32 %v1303, 1.442695
        %v1893 = vpow.pop %v1892
        %v1894 = vmul.f32 %v1304, 1.442695
        %v1895 = vpow.pop %v1894
        %v1896 = vmul.f32 %v1305, 1.442695
        %v1897 = vpow.pop %v1896
        %v1898 = vmul.f32 %v1306, 1.442695
        %v1899 = vpow.pop %v1898
        %v1900 = vmul.f32 %v1307, 1.442695
        %v1901 = vpow.pop %v1900
        %v1902 = vmul.f32 %v1308, 1.442695
        %v1903 = vpow.pop %v1902
        %v1904 = vmul.f32 %v1309, 1.442695
        %v1905 = vpow.pop %v1904
        %v1906 = vmul.f32 %v1310, 1.442695
        %v1907 = vpow.pop %v1906
        %v1908 = vmul.f32 %v1311, 1.442695
        %v1909 = vpow.pop %v1908
        %v1910 = vmul.f32 %v1312, 1.442695
        %v1911 = vpow.pop %v1910
        %v1912 = vmul.f32 %v1313, 1.442695
        %v1913 = vpow.pop %v1912
        %v1914 = vmul.f32 %v1314, 1.442695
        %v1915 = vpow.pop %v1914
        %v1916 = vmul.f32 %v1315, 1.442695
        %v1917 = vpow.pop %v1916
        %v1918 = vmul.f32 %v1316, 1.442695
        %v1919 = vpow.pop %v1918
        %v1920 = vmul.f32 %v1317, 1.442695
        %v1921 = vpow.pop %v1920
        %v1922 = vmul.f32 %v1318, 1.442695
        %v1923 = vpow.pop %v1922
        %v1924 = vmul.f32 %v1319, 1.442695
        %v1925 = vpow.pop %v1924
        %v1926 = vmul.f32 %v1320, 1.442695
        %v1927 = vpow.pop %v1926
        %v1928 = vmul.f32 %v1321, 1.442695
        %v1929 = vpow.pop %v1928
        %v1930 = vmul.f32 %v1322, 1.442695
        %v1931 = vpow.pop %v1930
        %v1932 = vmul.f32 %v1323, 1.442695
        %v1933 = vpow.pop %v1932
        %v1934 = vmul.f32 %v1324, 1.442695
        %v1935 = vpow.pop %v1934
        %v1936 = vmul.f32 %v1325, 1.442695
        %v1937 = vpow.pop %v1936
        %v1938 = vmul.f32 %v1326, 1.442695
        %v1939 = vpow.pop %v1938
        %v1940 = vmul.f32 %v1327, 1.442695
        %v1941 = vpow.pop %v1940
        %v1942 = vmul.f32 %v1328, 1.442695
        %v1943 = vpow.pop %v1942
        %v1944 = vmul.f32 %v1329, 1.442695
        %v1945 = vpow.pop %v1944
        %v1946 = vmul.f32 %v1330, 1.442695
        %v1947 = vpow.pop %v1946
        %v1948 = vmul.f32 %v1331, 1.442695
        %v1949 = vpow.pop %v1948
        %v1950 = vmul.f32 %v1332, 1.442695
        %v1951 = vpow.pop %v1950
        %v1952 = vmul.f32 %v1333, 1.442695
        %v1953 = vpow.pop %v1952
        %v1954 = vmul.f32 %v1334, 1.442695
        %v1955 = vpow.pop %v1954
        %v1956 = vmul.f32 %v1335, 1.442695
        %v1957 = vpow.pop %v1956
        %v1958 = vmul.f32 %v1336, 1.442695
        %v1959 = vpow.pop %v1958
        %v1960 = vmul.f32 %v1337, 1.442695
        %v1961 = vpow.pop %v1960
        %v1962 = vmul.f32 %v1338, 1.442695
        %v1963 = vpow.pop %v1962
        %v1964 = vmul.f32 %v1339, 1.442695
        %v1965 = vpow.pop %v1964
        %v1966 = vmul.f32 %v1340, 1.442695
        %v1967 = vpow.pop %v1966
        %v1968 = vmul.f32 %v1341, 1.442695
        %v1969 = vpow.pop %v1968
        %v1970 = vmul.f32 %v1342, 1.442695
        %v1971 = vpow.pop %v1970
        %v1972 = vmul.f32 %v1343, 1.442695
        %v1973 = vpow.pop %v1972
        %v1974 = vmul.f32 %v1344, 1.442695
        %v1975 = vpow.pop %v1974
        %v1976 = vmul.f32 %v1345, 1.442695
        %v1977 = vpow.pop %v1976
        %v1978 = vmul.f32 %v1346, 1.442695
        %v1979 = vpow.pop %v1978
        %v1980 = vmul.f32 %v1347, 1.442695
        %v1981 = vpow.pop %v1980
        %v1982 = vmul.f32 %v1348, 1.442695
        %v1983 = vpow.pop %v1982
        %v1984 = vmul.f32 %v1349, 1.442695
        %v1985 = vpow.pop %v1984
        %v1986 = vmul.f32 %v1350, 1.442695
        %v1987 = vpow.pop %v1986
        %v1988 = vmul.f32 %v1351, 1.442695
        %v1989 = vpow.pop %v1988
        %v1990 = vmul.f32 %v1352, 1.442695
        %v1991 = vpow.pop %v1990
        %v1992 = vmul.f32 %v1353, 1.442695
        %v1993 = vpow.pop %v1992
        %v1994 = vmul.f32 %v1354, 1.442695
        %v1995 = vpow.pop %v1994
        %v1996 = vmul.f32 %v1355, 1.442695
        %v1997 = vpow.pop %v1996
        %v1998 = vmul.f32 %v1356, 1.442695
        %v1999 = vpow.pop %v1998
        %v2000 = vmul.f32 %v1357, 1.442695
        %v2001 = vpow.pop %v2000
        %v2002 = vmul.f32 %v1358, 1.442695
        %v2003 = vpow.pop %v2002
        %v2004 = vmul.f32 %v1359, 1.442695
        %v2005 = vpow.pop %v2004
        %v2006 = vmul.f32 %v1360, 1.442695
        %v2007 = vpow.pop %v2006
        %v2008 = vmul.f32 %v1361, 1.442695
        %v2009 = vpow.pop %v2008
        %v2010 = vmul.f32 %v1362, 1.442695
        %v2011 = vpow.pop %v2010
        %v2012 = vmul.f32 %v1363, 1.442695
        %v2013 = vpow.pop %v2012
        %v2014 = vmul.f32 %v1364, 1.442695
        %v2015 = vpow.pop %v2014
        %v2016 = vmul.f32 %v1365, 1.442695
        %v2017 = vpow.pop %v2016
        %v2018 = vmul.f32 %v1366, 1.442695
        %v2019 = vpow.pop %v2018
        %v2020 = vmul.f32 %v1367, 1.442695
        %v2021 = vpow.pop %v2020
        %v2022 = vmul.f32 %v1368, 1.442695
        %v2023 = vpow.pop %v2022
        %v2024 = vmul.f32 %v1369, 1.442695
        %v2025 = vpow.pop %v2024
        %v2026 = vmul.f32 %v1370, 1.442695
        %v2027 = vpow.pop %v2026
        %v2028 = vmul.f32 %v1371, 1.442695
        %v2029 = vpow.pop %v2028
        %v2030 = vmul.f32 %v1372, 1.442695
        %v2031 = vpow.pop %v2030
        %v2032 = vmul.f32 %v1373, 1.442695
        %v2033 = vpow.pop %v2032
        %v2034 = vmul.f32 %v1374, 1.442695
        %v2035 = vpow.pop %v2034
        %v2036 = vmul.f32 %v1375, 1.442695
        %v2037 = vpow.pop %v2036
        %v2038 = vmul.f32 %v1376, 1.442695
        %v2039 = vpow.pop %v2038
        %v2040 = vmul.f32 %v1377, 1.442695
        %v2041 = vpow.pop %v2040
        %v2042 = vmul.f32 %v1378, 1.442695
        %v2043 = vpow.pop %v2042
        %v2044 = vmul.f32 %v1379, 1.442695
        %v2045 = vpow.pop %v2044
        %v2046 = vmul.f32 %v1380, 1.442695
        %v2047 = vpow.pop %v2046
        %v2048 = vmul.f32 %v1381, 1.442695
        %v2049 = vpow.pop %v2048
        %v2050 = vmul.f32 %v1382, 1.442695
        %v2051 = vpow.pop %v2050
        %v2052 = vmul.f32 %v1383, 1.442695
        %v2053 = vpow.pop %v2052
        %v2054 = vmul.f32 %v1384, 1.442695
        %v2055 = vpow.pop %v2054
        %v2056 = vmul.f32 %v1385, 1.442695
        %v2057 = vpow.pop %v2056
        %v2058 = vmul.f32 %v1386, 1.442695
        %v2059 = vpow.pop %v2058
        %v2060 = vmul.f32 %v1387, 1.442695
        %v2061 = vpow.pop %v2060
        %v2062 = vmul.f32 %v1388, 1.442695
        %v2063 = vpow.pop %v2062
        %v2064 = vmul.f32 %v1389, 1.442695
        %v2065 = vpow.pop %v2064
        %v2066 = vmul.f32 %v1390, 1.442695
        %v2067 = vpow.pop %v2066
        %v2068 = vmul.f32 %v1391, 1.442695
        %v2069 = vpow.pop %v2068
        %v2070 = vmul.f32 %v1392, 1.442695
        %v2071 = vpow.pop %v2070
        %v2072 = vmul.f32 %v1393, 1.442695
        %v2073 = vpow.pop %v2072
        %v2074 = vmul.f32 %v1394, 1.442695
        %v2075 = vpow.pop %v2074
        %v2076 = vmul.f32 %v1395, 1.442695
        %v2077 = vpow.pop %v2076
        %v2078 = vmul.f32 %v1396, 1.442695
        %v2079 = vpow.pop %v2078
        %v2080 = vmul.f32 %v1397, 1.442695
        %v2081 = vpow.pop %v2080
        %v2082 = vmul.f32 %v1398, 1.442695
        %v2083 = vpow.pop %v2082
        %v2084 = vmul.f32 %v1399, 1.442695
        %v2085 = vpow.pop %v2084
        %v2086 = vmul.f32 %v1400, 1.442695
        %v2087 = vpow.pop %v2086
        %v2088 = vmul.f32 %v1401, 1.442695
        %v2089 = vpow.pop %v2088
        %v2090 = vmul.f32 %v1402, 1.442695
        %v2091 = vpow.pop %v2090
        %v2092 = vmul.f32 %v1403, 1.442695
        %v2093 = vpow.pop %v2092
        %v2094 = vmul.f32 %v1404, 1.442695
        %v2095 = vpow.pop %v2094
        %v2096 = vmul.f32 %v1405, 1.442695
        %v2097 = vpow.pop %v2096
        %v2098 = vmul.f32 %v1406, 1.442695
        %v2099 = vpow.pop %v2098
        %v2100 = vmul.f32 %v1407, 1.442695
        %v2101 = vpow.pop %v2100
        %v2102 = vmul.f32 %v1408, 1.442695
        %v2103 = vpow.pop %v2102
        %v2104 = vmul.f32 %v1409, 1.442695
        %v2105 = vpow.pop %v2104
        %v2106 = vmul.f32 %v1410, 1.442695
        %v2107 = vpow.pop %v2106
        %v2108 = vmul.f32 %v1411, 1.442695
        %v2109 = vpow.pop %v2108
        %v2110 = vmul.f32 %v1412, 1.442695
        %v2111 = vpow.pop %v2110
        %v2112 = vmul.f32 %v1413, 1.442695
        %v2113 = vpow.pop %v2112
        %v2114 = vmul.f32 %v1414, 1.442695
        %v2115 = vpow.pop %v2114
        %v2116 = vmul.f32 %v1415, 1.442695
        %v2117 = vpow.pop %v2116
        %v2118 = vmul.f32 %v1416, 1.442695
        %v2119 = vpow.pop %v2118
        %v2120 = vmul.f32 %v1417, 1.442695
        %v2121 = vpow.pop %v2120
        %v2122 = vmul.f32 %v1418, 1.442695
        %v2123 = vpow.pop %v2122
        %v2124 = vmul.f32 %v1419, 1.442695
        %v2125 = vpow.pop %v2124
        %v2126 = vmul.f32 %v1420, 1.442695
        %v2127 = vpow.pop %v2126
        %v2128 = vmul.f32 %v1421, 1.442695
        %v2129 = vpow.pop %v2128
        %v2130 = vmul.f32 %v1422, 1.442695
        %v2131 = vpow.pop %v2130
        %v2132 = vmul.f32 %v1423, 1.442695
        %v2133 = vpow.pop %v2132
        %v2134 = vmul.f32 %v1424, 1.442695
        %v2135 = vpow.pop %v2134
        %v2136 = vmul.f32 %v1425, 1.442695
        %v2137 = vpow.pop %v2136
        %v2138 = vmul.f32 %v1426, 1.442695
        %v2139 = vpow.pop %v2138
        %v2140 = vmul.f32 %v1427, 1.442695
        %v2141 = vpow.pop %v2140
        %v2142 = vmul.f32 %v1428, 1.442695
        %v2143 = vpow.pop %v2142
        %v2144 = vmul.f32 %v1429, 1.442695
        %v2145 = vpow.pop %v2144
        %v2146 = vmul.f32 %v1430, 1.442695
        %v2147 = vpow.pop %v2146
        %v2148 = vmul.f32 %v1431, 1.442695
        %v2149 = vpow.pop %v2148
        %v2150 = vmul.f32 %v1432, 1.442695
        %v2151 = vpow.pop %v2150
        %v2152 = vmul.f32 %v1433, 1.442695
        %v2153 = vpow.pop %v2152
        %v2154 = vmul.f32 %v1434, 1.442695
        %v2155 = vpow.pop %v2154
        %v2156 = vmul.f32 %v1435, 1.442695
        %v2157 = vpow.pop %v2156
        %v2158 = vmul.f32 %v1436, 1.442695
        %v2159 = vpow.pop %v2158
        %v2160 = vmul.f32 %v1437, 1.442695
        %v2161 = vpow.pop %v2160
        %v2162 = vmul.f32 %v1438, 1.442695
        %v2163 = vpow.pop %v2162
        %v2164 = vmul.f32 %v1439, 1.442695
        %v2165 = vpow.pop %v2164
        %v2166 = vmul.f32 %v1440, 1.442695
        %v2167 = vpow.pop %v2166
        %v2168 = vmul.f32 %v1441, 1.442695
        %v2169 = vpow.pop %v2168
        %v2170 = vmul.f32 %v1442, 1.442695
        %v2171 = vpow.pop %v2170
        %v2172 = vmul.f32 %v1443, 1.442695
        %v2173 = vpow.pop %v2172
        %v2174 = vmul.f32 %v1444, 1.442695
        %v2175 = vpow.pop %v2174
        %v2176 = vmul.f32 %v1445, 1.442695
        %v2177 = vpow.pop %v2176
        %v2178 = vmul.f32 %v1446, 1.442695
        %v2179 = vpow.pop %v2178
        %v2180 = vmul.f32 %v1447, 1.442695
        %v2181 = vpow.pop %v2180
        %v2182 = vmul.f32 %v1448, 1.442695
        %v2183 = vpow.pop %v2182
        %v2184 = vmul.f32 %v1449, 1.442695
        %v2185 = vpow.pop %v2184
        %v2186 = vmul.f32 %v1450, 1.442695
        %v2187 = vpow.pop %v2186
        %v2188 = vmul.f32 %v1451, 1.442695
        %v2189 = vpow.pop %v2188
        %v2190 = vmul.f32 %v1452, 1.442695
        %v2191 = vpow.pop %v2190
        %v2192 = vmul.f32 %v1453, 1.442695
        %v2193 = vpow.pop %v2192
        %v2194 = vmul.f32 %v1454, 1.442695
        %v2195 = vpow.pop %v2194
        %v2196 = vmul.f32 %v1455, 1.442695
        %v2197 = vpow.pop %v2196
        %v2198 = vmul.f32 %v1456, 1.442695
        %v2199 = vpow.pop %v2198
        %v2200 = vmul.f32 %v1457, 1.442695
        %v2201 = vpow.pop %v2200
        %v2202 = vmul.f32 %v1458, 1.442695
        %v2203 = vpow.pop %v2202
        %v2204 = vmul.f32 %v1459, 1.442695
        %v2205 = vpow.pop %v2204
        %v2206 = vmul.f32 %v1460, 1.442695
        %v2207 = vpow.pop %v2206
        %v2208 = vmul.f32 %v1461, 1.442695
        %v2209 = vpow.pop %v2208
        %v2210 = vmul.f32 %v1462, 1.442695
        %v2211 = vpow.pop %v2210
        %v2212 = vmul.f32 %v1463, 1.442695
        %v2213 = vpow.pop %v2212
        %v2214 = vmul.f32 %v1464, 1.442695
        %v2215 = vpow.pop %v2214
        %v2216 = vmul.f32 %v1465, 1.442695
        %v2217 = vpow.pop %v2216
        %v2218 = vmul.f32 %v1466, 1.442695
        %v2219 = vpow.pop %v2218
        %v2220 = vmul.f32 %v1467, 1.442695
        %v2221 = vpow.pop %v2220
        %v2222 = vmul.f32 %v1468, 1.442695
        %v2223 = vpow.pop %v2222
        %v2224 = vmul.f32 %v1469, 1.442695
        %v2225 = vpow.pop %v2224
        %v2226 = vmul.f32 %v1470, 1.442695
        %v2227 = vpow.pop %v2226
        %v2228 = vmul.f32 %v1471, 1.442695
        %v2229 = vpow.pop %v2228
        %v2230 = vmul.f32 %v1472, 1.442695
        %v2231 = vpow.pop %v2230
        %v2232 = vmul.f32 %v1473, 1.442695
        %v2233 = vpow.pop %v2232
        %v2234 = vmul.f32 %v1474, 1.442695
        %v2235 = vpow.pop %v2234
        %v2236 = vmul.f32 %v1475, 1.442695
        %v2237 = vpow.pop %v2236
        %v2238 = vmul.f32 %v1476, 1.442695
        %v2239 = vpow.pop %v2238
        %v2240 = vmul.f32 %v1477, 1.442695
        %v2241 = vpow.pop %v2240
        %v2242 = vmul.f32 %v1478, 1.442695
        %v2243 = vpow.pop %v2242
        %v2244 = vmul.f32 %v1479, 1.442695
        %v2245 = vpow.pop %v2244
        %v2246 = vmul.f32 %v1480, 1.442695
        %v2247 = vpow.pop %v2246
        %v2248 = vmul.f32 %v1481, 1.442695
        %v2249 = vpow.pop %v2248
        %v2250 = vmul.f32 %v1482, 1.442695
        %v2251 = vpow.pop %v2250
        %v2252 = vmul.f32 %v1483, 1.442695
        %v2253 = vpow.pop %v2252
        %v2254 = vmul.f32 %v1484, 1.442695
        %v2255 = vpow.pop %v2254
        %v2256 = vmul.f32 %v1485, 1.442695
        %v2257 = vpow.pop %v2256
        %v2258 = vmul.f32 %v1486, 1.442695
        %v2259 = vpow.pop %v2258
        %v2260 = vmul.f32 %v1487, 1.442695
        %v2261 = vpow.pop %v2260
        %v2262 = vmul.f32 %v1488, 1.442695
        %v2263 = vpow.pop %v2262
        %v2264 = vmul.f32 %v1489, 1.442695
        %v2265 = vpow.pop %v2264
        %v2266 = vmul.f32 %v1490, 1.442695
        %v2267 = vpow.pop %v2266
        %v2268 = vmul.f32 %v1491, 1.442695
        %v2269 = vpow.pop %v2268
        %v2270 = vmul.f32 %v1492, 1.442695
        %v2271 = vpow.pop %v2270
        %v2272 = vmul.f32 %v1493, 1.442695
        %v2273 = vpow.pop %v2272
        %v2274 = vmul.f32 %v1494, 1.442695
        %v2275 = vpow.pop %v2274
        %v2276 = vmul.f32 %v1495, 1.442695
        %v2277 = vpow.pop %v2276
        %v2278 = vmul.f32 %v1496, 1.442695
        %v2279 = vpow.pop %v2278
        %v2280 = vmul.f32 %v1497, 1.442695
        %v2281 = vpow.pop %v2280
        %v2282 = vmul.f32 %v1498, 1.442695
        %v2283 = vpow.pop %v2282
        %v2284 = vmul.f32 %v1499, 1.442695
        %v2285 = vpow.pop %v2284
        %v2286 = vmul.f32 %v1500, 1.442695
        %v2287 = vpow.pop %v2286
        %v2288 = vmul.f32 %v1501, 1.442695
        %v2289 = vpow.pop %v2288
        %v2290 = vmul.f32 %v1502, 1.442695
        %v2291 = vpow.pop %v2290
        %v2292 = vmul.f32 %v1503, 1.442695
        %v2293 = vpow.pop %v2292
        %v2294 = vmul.f32 %v1504, 1.442695
        %v2295 = vpow.pop %v2294
        %v2296 = vmul.f32 %v1505, 1.442695
        %v2297 = vpow.pop %v2296
        %v2298 = vmul.f32 %v1506, 1.442695
        %v2299 = vpow.pop %v2298
        %v2300 = vmul.f32 %v1507, 1.442695
        %v2301 = vpow.pop %v2300
        %v2302 = vmul.f32 %v1508, 1.442695
        %v2303 = vpow.pop %v2302
        %v2304 = vmul.f32 %v1509, 1.442695
        %v2305 = vpow.pop %v2304
        %v2306 = vmul.f32 %v1510, 1.442695
        %v2307 = vpow.pop %v2306
        %v2308 = vmul.f32 %v1511, 1.442695
        %v2309 = vpow.pop %v2308
        %v2310 = vmul.f32 %v1512, 1.442695
        %v2311 = vpow.pop %v2310
        %v2312 = vmul.f32 %v1513, 1.442695
        %v2313 = vpow.pop %v2312
        %v2314 = vmul.f32 %v1514, 1.442695
        %v2315 = vpow.pop %v2314
        %v2316 = vmul.f32 %v1515, 1.442695
        %v2317 = vpow.pop %v2316
        %v2318 = vmul.f32 %v1516, 1.442695
        %v2319 = vpow.pop %v2318
        %v2320 = vmul.f32 %v1517, 1.442695
        %v2321 = vpow.pop %v2320
        %v2322 = vmul.f32 %v1518, 1.442695
        %v2323 = vpow.pop %v2322
        %v2324 = vmul.f32 %v1519, 1.442695
        %v2325 = vpow.pop %v2324
        %v2326 = vmul.f32 %v1520, 1.442695
        %v2327 = vpow.pop %v2326
        %v2328 = vmul.f32 %v1521, 1.442695
        %v2329 = vpow.pop %v2328
        %v2330 = vmul.f32 %v1522, 1.442695
        %v2331 = vpow.pop %v2330
        %v2332 = vmul.f32 %v1523, 1.442695
        %v2333 = vpow.pop %v2332
        %v2334 = vmul.f32 %v1524, 1.442695
        %v2335 = vpow.pop %v2334
        %v2336 = vmul.f32 %v1525, 1.442695
        %v2337 = vpow.pop %v2336
        %v2338 = vmul.f32 %v1526, 1.442695
        %v2339 = vpow.pop %v2338
        %v2340 = vmul.f32 %v1527, 1.442695
        %v2341 = vpow.pop %v2340
        %v2342 = vmul.f32 %v1528, 1.442695
        %v2343 = vpow.pop %v2342
        %v2344 = vmul.f32 %v1529, 1.442695
        %v2345 = vpow.pop %v2344
        %v2346 = vmul.f32 %v1530, 1.442695
        %v2347 = vpow.pop %v2346
        %v2348 = vmul.f32 %v1531, 1.442695
        %v2349 = vpow.pop %v2348
        %v2350 = vmul.f32 %v1532, 1.442695
        %v2351 = vpow.pop %v2350
        %v2352 = vmul.f32 %v1533, 1.442695
        %v2353 = vpow.pop %v2352
        %v2354 = vmul.f32 %v1534, 1.442695
        %v2355 = vpow.pop %v2354
        %v2356 = vmul.f32 %v1535, 1.442695
        %v2357 = vpow.pop %v2356
        %v2358 = vmul.f32 %v1536, 1.442695
        %v2359 = vpow.pop %v2358
        %v2360 = vmul.f32 %v1537, 1.442695
        %v2361 = vpow.pop %v2360
        %v2362 = vmul.f32 %v1538, 1.442695
        %v2363 = vpow.pop %v2362
        %v2364 = vmul.f32 %v1539, 1.442695
        %v2365 = vpow.pop %v2364
        %v2366 = vmul.f32 %v1540, 1.442695
        %v2367 = vpow.pop %v2366
        %v2368 = vmul.f32 %v1541, 1.442695
        %v2369 = vpow.pop %v2368
        %v2370 = vmul.f32 %v1542, 1.442695
        %v2371 = vpow.pop %v2370
        %v2372 = vmul.f32 %v1543, 1.442695
        %v2373 = vpow.pop %v2372
        %v2374 = vmul.f32 %v1544, 1.442695
        %v2375 = vpow.pop %v2374
        %v2376 = vmul.f32 %v1545, 1.442695
        %v2377 = vpow.pop %v2376
        %v2378 = vmul.f32 %v1546, 1.442695
        %v2379 = vpow.pop %v2378
        %v2380 = vmul.f32 %v1547, 1.442695
        %v2381 = vpow.pop %v2380
        %v2382 = vmul.f32 %v1548, 1.442695
        %v2383 = vpow.pop %v2382
        %v2384 = vmul.f32 %v1549, 1.442695
        %v2385 = vpow.pop %v2384
        %v2386 = vmul.f32 %v1550, 1.442695
        %v2387 = vpow.pop %v2386
        %v2388 = vmul.f32 %v1551, 1.442695
        %v2389 = vpow.pop %v2388
        %v2390 = vmul.f32 %v1552, 1.442695
        %v2391 = vpow.pop %v2390
        %v2392 = vmul.f32 %v1553, 1.442695
        %v2393 = vpow.pop %v2392
        %v2394 = vmul.f32 %v1554, 1.442695
        %v2395 = vpow.pop %v2394
        %v2396 = vmul.f32 %v1555, 1.442695
        %v2397 = vpow.pop %v2396
        %v2398 = vmul.f32 %v1556, 1.442695
        %v2399 = vpow.pop %v2398
        %v2400 = vmul.f32 %v1557, 1.442695
        %v2401 = vpow.pop %v2400
        %v2402 = vmul.f32 %v1558, 1.442695
        %v2403 = vpow.pop %v2402
        %v2404 = vmul.f32 %v1559, 1.442695
        %v2405 = vpow.pop %v2404
        %v2406 = vmul.f32 %v1560, 1.442695
        %v2407 = vpow.pop %v2406
        %v2408 = vmul.f32 %v1561, 1.442695
        %v2409 = vpow.pop %v2408
        %v2410 = vmul.f32 %v1562, 1.442695
        %v2411 = vpow.pop %v2410
        %v2412 = vmul.f32 %v1563, 1.442695
        %v2413 = vpow.pop %v2412
        %v2414 = vmul.f32 %v1564, 1.442695
        %v2415 = vpow.pop %v2414
        %v2416 = vmul.f32 %v1565, 1.442695
        %v2417 = vpow.pop %v2416
        %v2418 = vmul.f32 %v1566, 1.442695
        %v2419 = vpow.pop %v2418
        %v2420 = vmul.f32 %v1567, 1.442695
        %v2421 = vpow.pop %v2420
        %v2422 = vmul.f32 %v1568, 1.442695
        %v2423 = vpow.pop %v2422
        %v2424 = vmul.f32 %v1569, 1.442695
        %v2425 = vpow.pop %v2424
        %v2426 = vmul.f32 %v1570, 1.442695
        %v2427 = vpow.pop %v2426
        %v2428 = vmul.f32 %v1571, 1.442695
        %v2429 = vpow.pop %v2428
        %v2430 = vmul.f32 %v1572, 1.442695
        %v2431 = vpow.pop %v2430
        %v2432 = vmul.f32 %v1573, 1.442695
        %v2433 = vpow.pop %v2432
        %v2434 = vmul.f32 %v1574, 1.442695
        %v2435 = vpow.pop %v2434
        %v2436 = vmul.f32 %v1575, 1.442695
        %v2437 = vpow.pop %v2436
        %v2438 = vmul.f32 %v1576, 1.442695
        %v2439 = vpow.pop %v2438
        %v2440 = vmul.f32 %v1577, 1.442695
        %v2441 = vpow.pop %v2440
        %v2442 = vadd.f32 %v1579, %v1581
        %v2443 = vadd.f32 %v2442, %v1583
        %2444 = vadd.xlane.f32.xlu0 %v2443
        %v2445 = vpop.xlane.xlu0 %2444
        %v2446 = vadd.f32 %v1585, %v1587
        %v2447 = vadd.f32 %v2446, %v1589
        %2448 = vadd.xlane.f32.xlu0 %v2447
        %v2449 = vpop.xlane.xlu0 %2448
        %v2450 = vadd.f32 %v1591, %v1593
        %v2451 = vadd.f32 %v2450, %v1595
        %2452 = vadd.xlane.f32.xlu0 %v2451
        %v2453 = vpop.xlane.xlu0 %2452
        %v2454 = vadd.f32 %v1597, %v1599
        %v2455 = vadd.f32 %v2454, %v1601
        %2456 = vadd.xlane.f32.xlu0 %v2455
        %v2457 = vpop.xlane.xlu0 %2456
        %v2458 = vadd.f32 %v1603, %v1605
        %v2459 = vadd.f32 %v2458, %v1607
        %2460 = vadd.xlane.f32.xlu0 %v2459
        %v2461 = vpop.xlane.xlu0 %2460
        %v2462 = vadd.f32 %v1609, %v1611
        %v2463 = vadd.f32 %v2462, %v1613
        %2464 = vadd.xlane.f32.xlu0 %v2463
        %v2465 = vpop.xlane.xlu0 %2464
        %v2466 = vadd.f32 %v1615, %v1617
        %v2467 = vadd.f32 %v2466, %v1619
        %2468 = vadd.xlane.f32.xlu0 %v2467
        %v2469 = vpop.xlane.xlu0 %2468
        %v2470 = vadd.f32 %v1621, %v1623
        %v2471 = vadd.f32 %v2470, %v1625
        %2472 = vadd.xlane.f32.xlu0 %v2471
        %v2473 = vpop.xlane.xlu0 %2472
        %v2474 = vadd.f32 %v1627, %v1629
        %v2475 = vadd.f32 %v2474, %v1631
        %2476 = vadd.xlane.f32.xlu0 %v2475
        %v2477 = vpop.xlane.xlu0 %2476
        %v2478 = vadd.f32 %v1633, %v1635
        %v2479 = vadd.f32 %v2478, %v1637
        %2480 = vadd.xlane.f32.xlu0 %v2479
        %v2481 = vpop.xlane.xlu0 %2480
        %v2482 = vadd.f32 %v1639, %v1641
        %v2483 = vadd.f32 %v2482, %v1643
        %2484 = vadd.xlane.f32.xlu0 %v2483
        %v2485 = vpop.xlane.xlu0 %2484
        %v2486 = vadd.f32 %v1645, %v1647
        %v2487 = vadd.f32 %v2486, %v1649
        %2488 = vadd.xlane.f32.xlu0 %v2487
        %v2489 = vpop.xlane.xlu0 %2488
        %v2490 = vadd.f32 %v1651, %v1653
        %v2491 = vadd.f32 %v2490, %v1655
        %2492 = vadd.xlane.f32.xlu0 %v2491
        %v2493 = vpop.xlane.xlu0 %2492
        %v2494 = vadd.f32 %v1657, %v1659
        %v2495 = vadd.f32 %v2494, %v1661
        %2496 = vadd.xlane.f32.xlu0 %v2495
        %v2497 = vpop.xlane.xlu0 %2496
        %v2498 = vadd.f32 %v1663, %v1665
        %v2499 = vadd.f32 %v2498, %v1667
        %2500 = vadd.xlane.f32.xlu0 %v2499
        %v2501 = vpop.xlane.xlu0 %2500
        %v2502 = vadd.f32 %v1669, %v1671
        %v2503 = vadd.f32 %v2502, %v1673
        %2504 = vadd.xlane.f32.xlu0 %v2503
        %v2505 = vpop.xlane.xlu0 %2504
        %v2506 = vadd.f32 %v1675, %v1677
        %v2507 = vadd.f32 %v2506, %v1679
        %2508 = vadd.xlane.f32.xlu0 %v2507
        %v2509 = vpop.xlane.xlu0 %2508
        %v2510 = vadd.f32 %v1681, %v1683
        %v2511 = vadd.f32 %v2510, %v1685
        %2512 = vadd.xlane.f32.xlu0 %v2511
        %v2513 = vpop.xlane.xlu0 %2512
        %v2514 = vadd.f32 %v1687, %v1689
        %v2515 = vadd.f32 %v2514, %v1691
        %2516 = vadd.xlane.f32.xlu0 %v2515
        %v2517 = vpop.xlane.xlu0 %2516
        %v2518 = vadd.f32 %v1693, %v1695
        %v2519 = vadd.f32 %v2518, %v1697
        %2520 = vadd.xlane.f32.xlu0 %v2519
        %v2521 = vpop.xlane.xlu0 %2520
        %v2522 = vadd.f32 %v1699, %v1701
        %v2523 = vadd.f32 %v2522, %v1703
        %2524 = vadd.xlane.f32.xlu0 %v2523
        %v2525 = vpop.xlane.xlu0 %2524
        %v2526 = vadd.f32 %v1705, %v1707
        %v2527 = vadd.f32 %v2526, %v1709
        %2528 = vadd.xlane.f32.xlu0 %v2527
        %v2529 = vpop.xlane.xlu0 %2528
        %v2530 = vadd.f32 %v1711, %v1713
        %v2531 = vadd.f32 %v2530, %v1715
        %2532 = vadd.xlane.f32.xlu0 %v2531
        %v2533 = vpop.xlane.xlu0 %2532
        %v2534 = vadd.f32 %v1717, %v1719
        %v2535 = vadd.f32 %v2534, %v1721
        %2536 = vadd.xlane.f32.xlu0 %v2535
        %v2537 = vpop.xlane.xlu0 %2536
        %v2538 = vadd.f32 %v1723, %v1725
        %v2539 = vadd.f32 %v2538, %v1727
        %2540 = vadd.xlane.f32.xlu0 %v2539
        %v2541 = vpop.xlane.xlu0 %2540
        %v2542 = vadd.f32 %v1729, %v1731
        %v2543 = vadd.f32 %v2542, %v1733
        %2544 = vadd.xlane.f32.xlu0 %v2543
        %v2545 = vpop.xlane.xlu0 %2544
        %v2546 = vadd.f32 %v1735, %v1737
        %v2547 = vadd.f32 %v2546, %v1739
        %2548 = vadd.xlane.f32.xlu0 %v2547
        %v2549 = vpop.xlane.xlu0 %2548
        %v2550 = vadd.f32 %v1741, %v1743
        %v2551 = vadd.f32 %v2550, %v1745
        %2552 = vadd.xlane.f32.xlu0 %v2551
        %v2553 = vpop.xlane.xlu0 %2552
        %v2554 = vadd.f32 %v1747, %v1749
        %v2555 = vadd.f32 %v2554, %v1751
        %2556 = vadd.xlane.f32.xlu0 %v2555
        %v2557 = vpop.xlane.xlu0 %2556
        %v2558 = vadd.f32 %v1753, %v1755
        %v2559 = vadd.f32 %v2558, %v1757
        %2560 = vadd.xlane.f32.xlu0 %v2559
        %v2561 = vpop.xlane.xlu0 %2560
        %v2562 = vadd.f32 %v1759, %v1761
        %v2563 = vadd.f32 %v2562, %v1763
        %2564 = vadd.xlane.f32.xlu0 %v2563
        %v2565 = vpop.xlane.xlu0 %2564
        %v2566 = vadd.f32 %v1765, %v1767
        %v2567 = vadd.f32 %v2566, %v1769
        %2568 = vadd.xlane.f32.xlu0 %v2567
        %v2569 = vpop.xlane.xlu0 %2568
        %v2570 = vadd.f32 %v1771, %v1773
        %v2571 = vadd.f32 %v2570, %v1775
        %2572 = vadd.xlane.f32.xlu0 %v2571
        %v2573 = vpop.xlane.xlu0 %2572
        %v2574 = vadd.f32 %v1777, %v1779
        %v2575 = vadd.f32 %v2574, %v1781
        %2576 = vadd.xlane.f32.xlu0 %v2575
        %v2577 = vpop.xlane.xlu0 %2576
        %v2578 = vadd.f32 %v1783, %v1785
        %v2579 = vadd.f32 %v2578, %v1787
        %2580 = vadd.xlane.f32.xlu0 %v2579
        %v2581 = vpop.xlane.xlu0 %2580
        %v2582 = vadd.f32 %v1789, %v1791
        %v2583 = vadd.f32 %v2582, %v1793
        %2584 = vadd.xlane.f32.xlu0 %v2583
        %v2585 = vpop.xlane.xlu0 %2584
        %v2586 = vadd.f32 %v1795, %v1797
        %v2587 = vadd.f32 %v2586, %v1799
        %2588 = vadd.xlane.f32.xlu0 %v2587
        %v2589 = vpop.xlane.xlu0 %2588
        %v2590 = vadd.f32 %v1801, %v1803
        %v2591 = vadd.f32 %v2590, %v1805
        %2592 = vadd.xlane.f32.xlu0 %v2591
        %v2593 = vpop.xlane.xlu0 %2592
        %v2594 = vadd.f32 %v1807, %v1809
        %v2595 = vadd.f32 %v2594, %v1811
        %2596 = vadd.xlane.f32.xlu0 %v2595
        %v2597 = vpop.xlane.xlu0 %2596
        %v2598 = vadd.f32 %v1813, %v1815
        %v2599 = vadd.f32 %v2598, %v1817
        %2600 = vadd.xlane.f32.xlu0 %v2599
        %v2601 = vpop.xlane.xlu0 %2600
        %v2602 = vadd.f32 %v1819, %v1821
        %v2603 = vadd.f32 %v2602, %v1823
        %2604 = vadd.xlane.f32.xlu0 %v2603
        %v2605 = vpop.xlane.xlu0 %2604
        %v2606 = vadd.f32 %v1825, %v1827
        %v2607 = vadd.f32 %v2606, %v1829
        %2608 = vadd.xlane.f32.xlu0 %v2607
        %v2609 = vpop.xlane.xlu0 %2608
        %v2610 = vadd.f32 %v1831, %v1833
        %v2611 = vadd.f32 %v2610, %v1835
        %2612 = vadd.xlane.f32.xlu0 %v2611
        %v2613 = vpop.xlane.xlu0 %2612
        %v2614 = vadd.f32 %v1837, %v1839
        %v2615 = vadd.f32 %v2614, %v1841
        %2616 = vadd.xlane.f32.xlu0 %v2615
        %v2617 = vpop.xlane.xlu0 %2616
        %v2618 = vadd.f32 %v1843, %v1845
        %v2619 = vadd.f32 %v2618, %v1847
        %2620 = vadd.xlane.f32.xlu0 %v2619
        %v2621 = vpop.xlane.xlu0 %2620
        %v2622 = vadd.f32 %v1849, %v1851
        %v2623 = vadd.f32 %v2622, %v1853
        %2624 = vadd.xlane.f32.xlu0 %v2623
        %v2625 = vpop.xlane.xlu0 %2624
        %v2626 = vadd.f32 %v1855, %v1857
        %v2627 = vadd.f32 %v2626, %v1859
        %2628 = vadd.xlane.f32.xlu0 %v2627
        %v2629 = vpop.xlane.xlu0 %2628
        %v2630 = vadd.f32 %v1861, %v1863
        %v2631 = vadd.f32 %v2630, %v1865
        %2632 = vadd.xlane.f32.xlu0 %v2631
        %v2633 = vpop.xlane.xlu0 %2632
        %v2634 = vadd.f32 %v1867, %v1869
        %v2635 = vadd.f32 %v2634, %v1871
        %2636 = vadd.xlane.f32.xlu0 %v2635
        %v2637 = vpop.xlane.xlu0 %2636
        %v2638 = vadd.f32 %v1873, %v1875
        %v2639 = vadd.f32 %v2638, %v1877
        %2640 = vadd.xlane.f32.xlu0 %v2639
        %v2641 = vpop.xlane.xlu0 %2640
        %v2642 = vadd.f32 %v1879, %v1881
        %v2643 = vadd.f32 %v2642, %v1883
        %2644 = vadd.xlane.f32.xlu0 %v2643
        %v2645 = vpop.xlane.xlu0 %2644
        %v2646 = vadd.f32 %v1885, %v1887
        %v2647 = vadd.f32 %v2646, %v1889
        %2648 = vadd.xlane.f32.xlu0 %v2647
        %v2649 = vpop.xlane.xlu0 %2648
        %v2650 = vadd.f32 %v1891, %v1893
        %v2651 = vadd.f32 %v2650, %v1895
        %2652 = vadd.xlane.f32.xlu0 %v2651
        %v2653 = vpop.xlane.xlu0 %2652
        %v2654 = vadd.f32 %v1897, %v1899
        %v2655 = vadd.f32 %v2654, %v1901
        %2656 = vadd.xlane.f32.xlu0 %v2655
        %v2657 = vpop.xlane.xlu0 %2656
        %v2658 = vadd.f32 %v1903, %v1905
        %v2659 = vadd.f32 %v2658, %v1907
        %2660 = vadd.xlane.f32.xlu0 %v2659
        %v2661 = vpop.xlane.xlu0 %2660
        %v2662 = vadd.f32 %v1909, %v1911
        %v2663 = vadd.f32 %v2662, %v1913
        %2664 = vadd.xlane.f32.xlu0 %v2663
        %v2665 = vpop.xlane.xlu0 %2664
        %v2666 = vadd.f32 %v1915, %v1917
        %v2667 = vadd.f32 %v2666, %v1919
        %2668 = vadd.xlane.f32.xlu0 %v2667
        %v2669 = vpop.xlane.xlu0 %2668
        %v2670 = vadd.f32 %v1921, %v1923
        %v2671 = vadd.f32 %v2670, %v1925
        %2672 = vadd.xlane.f32.xlu0 %v2671
        %v2673 = vpop.xlane.xlu0 %2672
        %v2674 = vadd.f32 %v1927, %v1929
        %v2675 = vadd.f32 %v2674, %v1931
        %2676 = vadd.xlane.f32.xlu0 %v2675
        %v2677 = vpop.xlane.xlu0 %2676
        %v2678 = vadd.f32 %v1933, %v1935
        %v2679 = vadd.f32 %v2678, %v1937
        %2680 = vadd.xlane.f32.xlu0 %v2679
        %v2681 = vpop.xlane.xlu0 %2680
        %v2682 = vadd.f32 %v1939, %v1941
        %v2683 = vadd.f32 %v2682, %v1943
        %2684 = vadd.xlane.f32.xlu0 %v2683
        %v2685 = vpop.xlane.xlu0 %2684
        %v2686 = vadd.f32 %v1945, %v1947
        %v2687 = vadd.f32 %v2686, %v1949
        %2688 = vadd.xlane.f32.xlu0 %v2687
        %v2689 = vpop.xlane.xlu0 %2688
        %v2690 = vadd.f32 %v1951, %v1953
        %v2691 = vadd.f32 %v2690, %v1955
        %2692 = vadd.xlane.f32.xlu0 %v2691
        %v2693 = vpop.xlane.xlu0 %2692
        %v2694 = vadd.f32 %v1957, %v1959
        %v2695 = vadd.f32 %v2694, %v1961
        %2696 = vadd.xlane.f32.xlu0 %v2695
        %v2697 = vpop.xlane.xlu0 %2696
        %v2698 = vadd.f32 %v1963, %v1965
        %v2699 = vadd.f32 %v2698, %v1967
        %2700 = vadd.xlane.f32.xlu0 %v2699
        %v2701 = vpop.xlane.xlu0 %2700
        %v2702 = vadd.f32 %v1969, %v1971
        %v2703 = vadd.f32 %v2702, %v1973
        %2704 = vadd.xlane.f32.xlu0 %v2703
        %v2705 = vpop.xlane.xlu0 %2704
        %v2706 = vadd.f32 %v1975, %v1977
        %v2707 = vadd.f32 %v2706, %v1979
        %2708 = vadd.xlane.f32.xlu0 %v2707
        %v2709 = vpop.xlane.xlu0 %2708
        %v2710 = vadd.f32 %v1981, %v1983
        %v2711 = vadd.f32 %v2710, %v1985
        %2712 = vadd.xlane.f32.xlu0 %v2711
        %v2713 = vpop.xlane.xlu0 %2712
        %v2714 = vadd.f32 %v1987, %v1989
        %v2715 = vadd.f32 %v2714, %v1991
        %2716 = vadd.xlane.f32.xlu0 %v2715
        %v2717 = vpop.xlane.xlu0 %2716
        %v2718 = vadd.f32 %v1993, %v1995
        %v2719 = vadd.f32 %v2718, %v1997
        %2720 = vadd.xlane.f32.xlu0 %v2719
        %v2721 = vpop.xlane.xlu0 %2720
        %v2722 = vadd.f32 %v1999, %v2001
        %v2723 = vadd.f32 %v2722, %v2003
        %2724 = vadd.xlane.f32.xlu0 %v2723
        %v2725 = vpop.xlane.xlu0 %2724
        %v2726 = vadd.f32 %v2005, %v2007
        %v2727 = vadd.f32 %v2726, %v2009
        %2728 = vadd.xlane.f32.xlu0 %v2727
        %v2729 = vpop.xlane.xlu0 %2728
        %v2730 = vadd.f32 %v2011, %v2013
        %v2731 = vadd.f32 %v2730, %v2015
        %2732 = vadd.xlane.f32.xlu0 %v2731
        %v2733 = vpop.xlane.xlu0 %2732
        %v2734 = vadd.f32 %v2017, %v2019
        %v2735 = vadd.f32 %v2734, %v2021
        %2736 = vadd.xlane.f32.xlu0 %v2735
        %v2737 = vpop.xlane.xlu0 %2736
        %v2738 = vadd.f32 %v2023, %v2025
        %v2739 = vadd.f32 %v2738, %v2027
        %2740 = vadd.xlane.f32.xlu0 %v2739
        %v2741 = vpop.xlane.xlu0 %2740
        %v2742 = vadd.f32 %v2029, %v2031
        %v2743 = vadd.f32 %v2742, %v2033
        %2744 = vadd.xlane.f32.xlu0 %v2743
        %v2745 = vpop.xlane.xlu0 %2744
        %v2746 = vadd.f32 %v2035, %v2037
        %v2747 = vadd.f32 %v2746, %v2039
        %2748 = vadd.xlane.f32.xlu0 %v2747
        %v2749 = vpop.xlane.xlu0 %2748
        %v2750 = vadd.f32 %v2041, %v2043
        %v2751 = vadd.f32 %v2750, %v2045
        %2752 = vadd.xlane.f32.xlu0 %v2751
        %v2753 = vpop.xlane.xlu0 %2752
        %v2754 = vadd.f32 %v2047, %v2049
        %v2755 = vadd.f32 %v2754, %v2051
        %2756 = vadd.xlane.f32.xlu0 %v2755
        %v2757 = vpop.xlane.xlu0 %2756
        %v2758 = vadd.f32 %v2053, %v2055
        %v2759 = vadd.f32 %v2758, %v2057
        %2760 = vadd.xlane.f32.xlu0 %v2759
        %v2761 = vpop.xlane.xlu0 %2760
        %v2762 = vadd.f32 %v2059, %v2061
        %v2763 = vadd.f32 %v2762, %v2063
        %2764 = vadd.xlane.f32.xlu0 %v2763
        %v2765 = vpop.xlane.xlu0 %2764
        %v2766 = vadd.f32 %v2065, %v2067
        %v2767 = vadd.f32 %v2766, %v2069
        %2768 = vadd.xlane.f32.xlu0 %v2767
        %v2769 = vpop.xlane.xlu0 %2768
        %v2770 = vadd.f32 %v2071, %v2073
        %v2771 = vadd.f32 %v2770, %v2075
        %2772 = vadd.xlane.f32.xlu0 %v2771
        %v2773 = vpop.xlane.xlu0 %2772
        %v2774 = vadd.f32 %v2077, %v2079
        %v2775 = vadd.f32 %v2774, %v2081
        %2776 = vadd.xlane.f32.xlu0 %v2775
        %v2777 = vpop.xlane.xlu0 %2776
        %v2778 = vadd.f32 %v2083, %v2085
        %v2779 = vadd.f32 %v2778, %v2087
        %2780 = vadd.xlane.f32.xlu0 %v2779
        %v2781 = vpop.xlane.xlu0 %2780
        %v2782 = vadd.f32 %v2089, %v2091
        %v2783 = vadd.f32 %v2782, %v2093
        %2784 = vadd.xlane.f32.xlu0 %v2783
        %v2785 = vpop.xlane.xlu0 %2784
        %v2786 = vadd.f32 %v2095, %v2097
        %v2787 = vadd.f32 %v2786, %v2099
        %2788 = vadd.xlane.f32.xlu0 %v2787
        %v2789 = vpop.xlane.xlu0 %2788
        %v2790 = vadd.f32 %v2101, %v2103
        %v2791 = vadd.f32 %v2790, %v2105
        %2792 = vadd.xlane.f32.xlu0 %v2791
        %v2793 = vpop.xlane.xlu0 %2792
        %v2794 = vadd.f32 %v2107, %v2109
        %v2795 = vadd.f32 %v2794, %v2111
        %2796 = vadd.xlane.f32.xlu0 %v2795
        %v2797 = vpop.xlane.xlu0 %2796
        %v2798 = vadd.f32 %v2113, %v2115
        %v2799 = vadd.f32 %v2798, %v2117
        %2800 = vadd.xlane.f32.xlu0 %v2799
        %v2801 = vpop.xlane.xlu0 %2800
        %v2802 = vadd.f32 %v2119, %v2121
        %v2803 = vadd.f32 %v2802, %v2123
        %2804 = vadd.xlane.f32.xlu0 %v2803
        %v2805 = vpop.xlane.xlu0 %2804
        %v2806 = vadd.f32 %v2125, %v2127
        %v2807 = vadd.f32 %v2806, %v2129
        %2808 = vadd.xlane.f32.xlu0 %v2807
        %v2809 = vpop.xlane.xlu0 %2808
        %v2810 = vadd.f32 %v2131, %v2133
        %v2811 = vadd.f32 %v2810, %v2135
        %2812 = vadd.xlane.f32.xlu0 %v2811
        %v2813 = vpop.xlane.xlu0 %2812
        %v2814 = vadd.f32 %v2137, %v2139
        %v2815 = vadd.f32 %v2814, %v2141
        %2816 = vadd.xlane.f32.xlu0 %v2815
        %v2817 = vpop.xlane.xlu0 %2816
        %v2818 = vadd.f32 %v2143, %v2145
        %v2819 = vadd.f32 %v2818, %v2147
        %2820 = vadd.xlane.f32.xlu0 %v2819
        %v2821 = vpop.xlane.xlu0 %2820
        %v2822 = vadd.f32 %v2149, %v2151
        %v2823 = vadd.f32 %v2822, %v2153
        %2824 = vadd.xlane.f32.xlu0 %v2823
        %v2825 = vpop.xlane.xlu0 %2824
        %v2826 = vadd.f32 %v2155, %v2157
        %v2827 = vadd.f32 %v2826, %v2159
        %2828 = vadd.xlane.f32.xlu0 %v2827
        %v2829 = vpop.xlane.xlu0 %2828
        %v2830 = vadd.f32 %v2161, %v2163
        %v2831 = vadd.f32 %v2830, %v2165
        %2832 = vadd.xlane.f32.xlu0 %v2831
        %v2833 = vpop.xlane.xlu0 %2832
        %v2834 = vadd.f32 %v2167, %v2169
        %v2835 = vadd.f32 %v2834, %v2171
        %2836 = vadd.xlane.f32.xlu0 %v2835
        %v2837 = vpop.xlane.xlu0 %2836
        %v2838 = vadd.f32 %v2173, %v2175
        %v2839 = vadd.f32 %v2838, %v2177
        %2840 = vadd.xlane.f32.xlu0 %v2839
        %v2841 = vpop.xlane.xlu0 %2840
        %v2842 = vadd.f32 %v2179, %v2181
        %v2843 = vadd.f32 %v2842, %v2183
        %2844 = vadd.xlane.f32.xlu0 %v2843
        %v2845 = vpop.xlane.xlu0 %2844
        %v2846 = vadd.f32 %v2185, %v2187
        %v2847 = vadd.f32 %v2846, %v2189
        %2848 = vadd.xlane.f32.xlu0 %v2847
        %v2849 = vpop.xlane.xlu0 %2848
        %v2850 = vadd.f32 %v2191, %v2193
        %v2851 = vadd.f32 %v2850, %v2195
        %2852 = vadd.xlane.f32.xlu0 %v2851
        %v2853 = vpop.xlane.xlu0 %2852
        %v2854 = vadd.f32 %v2197, %v2199
        %v2855 = vadd.f32 %v2854, %v2201
        %2856 = vadd.xlane.f32.xlu0 %v2855
        %v2857 = vpop.xlane.xlu0 %2856
        %v2858 = vadd.f32 %v2203, %v2205
        %v2859 = vadd.f32 %v2858, %v2207
        %2860 = vadd.xlane.f32.xlu0 %v2859
        %v2861 = vpop.xlane.xlu0 %2860
        %v2862 = vadd.f32 %v2209, %v2211
        %v2863 = vadd.f32 %v2862, %v2213
        %2864 = vadd.xlane.f32.xlu0 %v2863
        %v2865 = vpop.xlane.xlu0 %2864
        %v2866 = vadd.f32 %v2215, %v2217
        %v2867 = vadd.f32 %v2866, %v2219
        %2868 = vadd.xlane.f32.xlu0 %v2867
        %v2869 = vpop.xlane.xlu0 %2868
        %v2870 = vadd.f32 %v2221, %v2223
        %v2871 = vadd.f32 %v2870, %v2225
        %2872 = vadd.xlane.f32.xlu0 %v2871
        %v2873 = vpop.xlane.xlu0 %2872
        %v2874 = vadd.f32 %v2227, %v2229
        %v2875 = vadd.f32 %v2874, %v2231
        %2876 = vadd.xlane.f32.xlu0 %v2875
        %v2877 = vpop.xlane.xlu0 %2876
        %v2878 = vadd.f32 %v2233, %v2235
        %v2879 = vadd.f32 %v2878, %v2237
        %2880 = vadd.xlane.f32.xlu0 %v2879
        %v2881 = vpop.xlane.xlu0 %2880
        %v2882 = vadd.f32 %v2239, %v2241
        %v2883 = vadd.f32 %v2882, %v2243
        %2884 = vadd.xlane.f32.xlu0 %v2883
        %v2885 = vpop.xlane.xlu0 %2884
        %v2886 = vadd.f32 %v2245, %v2247
        %v2887 = vadd.f32 %v2886, %v2249
        %2888 = vadd.xlane.f32.xlu0 %v2887
        %v2889 = vpop.xlane.xlu0 %2888
        %v2890 = vadd.f32 %v2251, %v2253
        %v2891 = vadd.f32 %v2890, %v2255
        %2892 = vadd.xlane.f32.xlu0 %v2891
        %v2893 = vpop.xlane.xlu0 %2892
        %v2894 = vadd.f32 %v2257, %v2259
        %v2895 = vadd.f32 %v2894, %v2261
        %2896 = vadd.xlane.f32.xlu0 %v2895
        %v2897 = vpop.xlane.xlu0 %2896
        %v2898 = vadd.f32 %v2263, %v2265
        %v2899 = vadd.f32 %v2898, %v2267
        %2900 = vadd.xlane.f32.xlu0 %v2899
        %v2901 = vpop.xlane.xlu0 %2900
        %v2902 = vadd.f32 %v2269, %v2271
        %v2903 = vadd.f32 %v2902, %v2273
        %2904 = vadd.xlane.f32.xlu0 %v2903
        %v2905 = vpop.xlane.xlu0 %2904
        %v2906 = vadd.f32 %v2275, %v2277
        %v2907 = vadd.f32 %v2906, %v2279
        %2908 = vadd.xlane.f32.xlu0 %v2907
        %v2909 = vpop.xlane.xlu0 %2908
        %v2910 = vadd.f32 %v2281, %v2283
        %v2911 = vadd.f32 %v2910, %v2285
        %2912 = vadd.xlane.f32.xlu0 %v2911
        %v2913 = vpop.xlane.xlu0 %2912
        %v2914 = vadd.f32 %v2287, %v2289
        %v2915 = vadd.f32 %v2914, %v2291
        %2916 = vadd.xlane.f32.xlu0 %v2915
        %v2917 = vpop.xlane.xlu0 %2916
        %v2918 = vadd.f32 %v2293, %v2295
        %v2919 = vadd.f32 %v2918, %v2297
        %2920 = vadd.xlane.f32.xlu0 %v2919
        %v2921 = vpop.xlane.xlu0 %2920
        %v2922 = vadd.f32 %v2299, %v2301
        %v2923 = vadd.f32 %v2922, %v2303
        %2924 = vadd.xlane.f32.xlu0 %v2923
        %v2925 = vpop.xlane.xlu0 %2924
        %v2926 = vadd.f32 %v2305, %v2307
        %v2927 = vadd.f32 %v2926, %v2309
        %2928 = vadd.xlane.f32.xlu0 %v2927
        %v2929 = vpop.xlane.xlu0 %2928
        %v2930 = vadd.f32 %v2311, %v2313
        %v2931 = vadd.f32 %v2930, %v2315
        %2932 = vadd.xlane.f32.xlu0 %v2931
        %v2933 = vpop.xlane.xlu0 %2932
        %v2934 = vadd.f32 %v2317, %v2319
        %v2935 = vadd.f32 %v2934, %v2321
        %2936 = vadd.xlane.f32.xlu0 %v2935
        %v2937 = vpop.xlane.xlu0 %2936
        %v2938 = vadd.f32 %v2323, %v2325
        %v2939 = vadd.f32 %v2938, %v2327
        %2940 = vadd.xlane.f32.xlu0 %v2939
        %v2941 = vpop.xlane.xlu0 %2940
        %v2942 = vadd.f32 %v2329, %v2331
        %v2943 = vadd.f32 %v2942, %v2333
        %2944 = vadd.xlane.f32.xlu0 %v2943
        %v2945 = vpop.xlane.xlu0 %2944
        %v2946 = vadd.f32 %v2335, %v2337
        %v2947 = vadd.f32 %v2946, %v2339
        %2948 = vadd.xlane.f32.xlu0 %v2947
        %v2949 = vpop.xlane.xlu0 %2948
        %v2950 = vadd.f32 %v2341, %v2343
        %v2951 = vadd.f32 %v2950, %v2345
        %2952 = vadd.xlane.f32.xlu0 %v2951
        %v2953 = vpop.xlane.xlu0 %2952
        %v2954 = vadd.f32 %v2347, %v2349
        %v2955 = vadd.f32 %v2954, %v2351
        %2956 = vadd.xlane.f32.xlu0 %v2955
        %v2957 = vpop.xlane.xlu0 %2956
        %v2958 = vadd.f32 %v2353, %v2355
        %v2959 = vadd.f32 %v2958, %v2357
        %2960 = vadd.xlane.f32.xlu0 %v2959
        %v2961 = vpop.xlane.xlu0 %2960
        %v2962 = vadd.f32 %v2359, %v2361
        %v2963 = vadd.f32 %v2962, %v2363
        %2964 = vadd.xlane.f32.xlu0 %v2963
        %v2965 = vpop.xlane.xlu0 %2964
        %v2966 = vadd.f32 %v2365, %v2367
        %v2967 = vadd.f32 %v2966, %v2369
        %2968 = vadd.xlane.f32.xlu0 %v2967
        %v2969 = vpop.xlane.xlu0 %2968
        %v2970 = vadd.f32 %v2371, %v2373
        %v2971 = vadd.f32 %v2970, %v2375
        %2972 = vadd.xlane.f32.xlu0 %v2971
        %v2973 = vpop.xlane.xlu0 %2972
        %v2974 = vadd.f32 %v2377, %v2379
        %v2975 = vadd.f32 %v2974, %v2381
        %2976 = vadd.xlane.f32.xlu0 %v2975
        %v2977 = vpop.xlane.xlu0 %2976
        %v2978 = vadd.f32 %v2383, %v2385
        %v2979 = vadd.f32 %v2978, %v2387
        %2980 = vadd.xlane.f32.xlu0 %v2979
        %v2981 = vpop.xlane.xlu0 %2980
        %v2982 = vadd.f32 %v2389, %v2391
        %v2983 = vadd.f32 %v2982, %v2393
        %2984 = vadd.xlane.f32.xlu0 %v2983
        %v2985 = vpop.xlane.xlu0 %2984
        %v2986 = vadd.f32 %v2395, %v2397
        %v2987 = vadd.f32 %v2986, %v2399
        %2988 = vadd.xlane.f32.xlu0 %v2987
        %v2989 = vpop.xlane.xlu0 %2988
        %v2990 = vadd.f32 %v2401, %v2403
        %v2991 = vadd.f32 %v2990, %v2405
        %2992 = vadd.xlane.f32.xlu0 %v2991
        %v2993 = vpop.xlane.xlu0 %2992
        %v2994 = vadd.f32 %v2407, %v2409
        %v2995 = vadd.f32 %v2994, %v2411
        %2996 = vadd.xlane.f32.xlu0 %v2995
        %v2997 = vpop.xlane.xlu0 %2996
        %v2998 = vadd.f32 %v2413, %v2415
        %v2999 = vadd.f32 %v2998, %v2417
        %3000 = vadd.xlane.f32.xlu0 %v2999
        %v3001 = vpop.xlane.xlu0 %3000
        %v3002 = vadd.f32 %v2419, %v2421
        %v3003 = vadd.f32 %v3002, %v2423
        %3004 = vadd.xlane.f32.xlu0 %v3003
        %v3005 = vpop.xlane.xlu0 %3004
        %v3006 = vadd.f32 %v2425, %v2427
        %v3007 = vadd.f32 %v3006, %v2429
        %3008 = vadd.xlane.f32.xlu0 %v3007
        %v3009 = vpop.xlane.xlu0 %3008
        %v3010 = vadd.f32 %v2431, %v2433
        %v3011 = vadd.f32 %v3010, %v2435
        %3012 = vadd.xlane.f32.xlu0 %v3011
        %v3013 = vpop.xlane.xlu0 %3012
        %v3014 = vadd.f32 %v2437, %v2439
        %v3015 = vadd.f32 %v3014, %v2441
        %3016 = vadd.xlane.f32.xlu0 %v3015
        %v3017 = vpop.xlane.xlu0 %3016
        %v3018 = vrcp.pop %v2445
        %v3019 = vrcp.pop %v2449
        %v3020 = vrcp.pop %v2453
        %v3021 = vrcp.pop %v2457
        %v3022 = vrcp.pop %v2461
        %v3023 = vrcp.pop %v2465
        %v3024 = vrcp.pop %v2469
        %v3025 = vrcp.pop %v2473
        %v3026 = vrcp.pop %v2477
        %v3027 = vrcp.pop %v2481
        %v3028 = vrcp.pop %v2485
        %v3029 = vrcp.pop %v2489
        %v3030 = vrcp.pop %v2493
        %v3031 = vrcp.pop %v2497
        %v3032 = vrcp.pop %v2501
        %v3033 = vrcp.pop %v2505
        %v3034 = vrcp.pop %v2509
        %v3035 = vrcp.pop %v2513
        %v3036 = vrcp.pop %v2517
        %v3037 = vrcp.pop %v2521
        %v3038 = vrcp.pop %v2525
        %v3039 = vrcp.pop %v2529
        %v3040 = vrcp.pop %v2533
        %v3041 = vrcp.pop %v2537
        %v3042 = vrcp.pop %v2541
        %v3043 = vrcp.pop %v2545
        %v3044 = vrcp.pop %v2549
        %v3045 = vrcp.pop %v2553
        %v3046 = vrcp.pop %v2557
        %v3047 = vrcp.pop %v2561
        %v3048 = vrcp.pop %v2565
        %v3049 = vrcp.pop %v2569
        %v3050 = vrcp.pop %v2573
        %v3051 = vrcp.pop %v2577
        %v3052 = vrcp.pop %v2581
        %v3053 = vrcp.pop %v2585
        %v3054 = vrcp.pop %v2589
        %v3055 = vrcp.pop %v2593
        %v3056 = vrcp.pop %v2597
        %v3057 = vrcp.pop %v2601
        %v3058 = vrcp.pop %v2605
        %v3059 = vrcp.pop %v2609
        %v3060 = vrcp.pop %v2613
        %v3061 = vrcp.pop %v2617
        %v3062 = vrcp.pop %v2621
        %v3063 = vrcp.pop %v2625
        %v3064 = vrcp.pop %v2629
        %v3065 = vrcp.pop %v2633
        %v3066 = vrcp.pop %v2637
        %v3067 = vrcp.pop %v2641
        %v3068 = vrcp.pop %v2645
        %v3069 = vrcp.pop %v2649
        %v3070 = vrcp.pop %v2653
        %v3071 = vrcp.pop %v2657
        %v3072 = vrcp.pop %v2661
        %v3073 = vrcp.pop %v2665
        %v3074 = vrcp.pop %v2669
        %v3075 = vrcp.pop %v2673
        %v3076 = vrcp.pop %v2677
        %v3077 = vrcp.pop %v2681
        %v3078 = vrcp.pop %v2685
        %v3079 = vrcp.pop %v2689
        %v3080 = vrcp.pop %v2693
        %v3081 = vrcp.pop %v2697
        %v3082 = vrcp.pop %v2701
        %v3083 = vrcp.pop %v2705
        %v3084 = vrcp.pop %v2709
        %v3085 = vrcp.pop %v2713
        %v3086 = vrcp.pop %v2717
        %v3087 = vrcp.pop %v2721
        %v3088 = vrcp.pop %v2725
        %v3089 = vrcp.pop %v2729
        %v3090 = vrcp.pop %v2733
        %v3091 = vrcp.pop %v2737
        %v3092 = vrcp.pop %v2741
        %v3093 = vrcp.pop %v2745
        %v3094 = vrcp.pop %v2749
        %v3095 = vrcp.pop %v2753
        %v3096 = vrcp.pop %v2757
        %v3097 = vrcp.pop %v2761
        %v3098 = vrcp.pop %v2765
        %v3099 = vrcp.pop %v2769
        %v3100 = vrcp.pop %v2773
        %v3101 = vrcp.pop %v2777
        %v3102 = vrcp.pop %v2781
        %v3103 = vrcp.pop %v2785
        %v3104 = vrcp.pop %v2789
        %v3105 = vrcp.pop %v2793
        %v3106 = vrcp.pop %v2797
        %v3107 = vrcp.pop %v2801
        %v3108 = vrcp.pop %v2805
        %v3109 = vrcp.pop %v2809
        %v3110 = vrcp.pop %v2813
        %v3111 = vrcp.pop %v2817
        %v3112 = vrcp.pop %v2821
        %v3113 = vrcp.pop %v2825
        %v3114 = vrcp.pop %v2829
        %v3115 = vrcp.pop %v2833
        %v3116 = vrcp.pop %v2837
        %v3117 = vrcp.pop %v2841
        %v3118 = vrcp.pop %v2845
        %v3119 = vrcp.pop %v2849
        %v3120 = vrcp.pop %v2853
        %v3121 = vrcp.pop %v2857
        %v3122 = vrcp.pop %v2861
        %v3123 = vrcp.pop %v2865
        %v3124 = vrcp.pop %v2869
        %v3125 = vrcp.pop %v2873
        %v3126 = vrcp.pop %v2877
        %v3127 = vrcp.pop %v2881
        %v3128 = vrcp.pop %v2885
        %v3129 = vrcp.pop %v2889
        %v3130 = vrcp.pop %v2893
        %v3131 = vrcp.pop %v2897
        %v3132 = vrcp.pop %v2901
        %v3133 = vrcp.pop %v2905
        %v3134 = vrcp.pop %v2909
        %v3135 = vrcp.pop %v2913
        %v3136 = vrcp.pop %v2917
        %v3137 = vrcp.pop %v2921
        %v3138 = vrcp.pop %v2925
        %v3139 = vrcp.pop %v2929
        %v3140 = vrcp.pop %v2933
        %v3141 = vrcp.pop %v2937
        %v3142 = vrcp.pop %v2941
        %v3143 = vrcp.pop %v2945
        %v3144 = vrcp.pop %v2949
        %v3145 = vrcp.pop %v2953
        %v3146 = vrcp.pop %v2957
        %v3147 = vrcp.pop %v2961
        %v3148 = vrcp.pop %v2965
        %v3149 = vrcp.pop %v2969
        %v3150 = vrcp.pop %v2973
        %v3151 = vrcp.pop %v2977
        %v3152 = vrcp.pop %v2981
        %v3153 = vrcp.pop %v2985
        %v3154 = vrcp.pop %v2989
        %v3155 = vrcp.pop %v2993
        %v3156 = vrcp.pop %v2997
        %v3157 = vrcp.pop %v3001
        %v3158 = vrcp.pop %v3005
        %v3159 = vrcp.pop %v3009
        %v3160 = vrcp.pop %v3013
        %v3161 = vrcp.pop %v3017
        %v3162 = vmul.f32 %v2445, %v3018
        %v3163 = vmul.f32 %v2449, %v3019
        %v3164 = vmul.f32 %v2453, %v3020
        %v3165 = vmul.f32 %v2457, %v3021
        %v3166 = vmul.f32 %v2461, %v3022
        %v3167 = vmul.f32 %v2465, %v3023
        %v3168 = vmul.f32 %v2469, %v3024
        %v3169 = vmul.f32 %v2473, %v3025
        %v3170 = vmul.f32 %v2477, %v3026
        %v3171 = vmul.f32 %v2481, %v3027
        %v3172 = vmul.f32 %v2485, %v3028
        %v3173 = vmul.f32 %v2489, %v3029
        %v3174 = vmul.f32 %v2493, %v3030
        %v3175 = vmul.f32 %v2497, %v3031
        %v3176 = vmul.f32 %v2501, %v3032
        %v3177 = vmul.f32 %v2505, %v3033
        %v3178 = vmul.f32 %v2509, %v3034
        %v3179 = vmul.f32 %v2513, %v3035
        %v3180 = vmul.f32 %v2517, %v3036
        %v3181 = vmul.f32 %v2521, %v3037
        %v3182 = vmul.f32 %v2525, %v3038
        %v3183 = vmul.f32 %v2529, %v3039
        %v3184 = vmul.f32 %v2533, %v3040
        %v3185 = vmul.f32 %v2537, %v3041
        %v3186 = vmul.f32 %v2541, %v3042
        %v3187 = vmul.f32 %v2545, %v3043
        %v3188 = vmul.f32 %v2549, %v3044
        %v3189 = vmul.f32 %v2553, %v3045
        %v3190 = vmul.f32 %v2557, %v3046
        %v3191 = vmul.f32 %v2561, %v3047
        %v3192 = vmul.f32 %v2565, %v3048
        %v3193 = vmul.f32 %v2569, %v3049
        %v3194 = vmul.f32 %v2573, %v3050
        %v3195 = vmul.f32 %v2577, %v3051
        %v3196 = vmul.f32 %v2581, %v3052
        %v3197 = vmul.f32 %v2585, %v3053
        %v3198 = vmul.f32 %v2589, %v3054
        %v3199 = vmul.f32 %v2593, %v3055
        %v3200 = vmul.f32 %v2597, %v3056
        %v3201 = vmul.f32 %v2601, %v3057
        %v3202 = vmul.f32 %v2605, %v3058
        %v3203 = vmul.f32 %v2609, %v3059
        %v3204 = vmul.f32 %v2613, %v3060
        %v3205 = vmul.f32 %v2617, %v3061
        %v3206 = vmul.f32 %v2621, %v3062
        %v3207 = vmul.f32 %v2625, %v3063
        %v3208 = vmul.f32 %v2629, %v3064
        %v3209 = vmul.f32 %v2633, %v3065
        %v3210 = vmul.f32 %v2637, %v3066
        %v3211 = vmul.f32 %v2641, %v3067
        %v3212 = vmul.f32 %v2645, %v3068
        %v3213 = vmul.f32 %v2649, %v3069
        %v3214 = vmul.f32 %v2653, %v3070
        %v3215 = vmul.f32 %v2657, %v3071
        %v3216 = vmul.f32 %v2661, %v3072
        %v3217 = vmul.f32 %v2665, %v3073
        %v3218 = vmul.f32 %v2669, %v3074
        %v3219 = vmul.f32 %v2673, %v3075
        %v3220 = vmul.f32 %v2677, %v3076
        %v3221 = vmul.f32 %v2681, %v3077
        %v3222 = vmul.f32 %v2685, %v3078
        %v3223 = vmul.f32 %v2689, %v3079
        %v3224 = vmul.f32 %v2693, %v3080
        %v3225 = vmul.f32 %v2697, %v3081
        %v3226 = vmul.f32 %v2701, %v3082
        %v3227 = vmul.f32 %v2705, %v3083
        %v3228 = vmul.f32 %v2709, %v3084
        %v3229 = vmul.f32 %v2713, %v3085
        %v3230 = vmul.f32 %v2717, %v3086
        %v3231 = vmul.f32 %v2721, %v3087
        %v3232 = vmul.f32 %v2725, %v3088
        %v3233 = vmul.f32 %v2729, %v3089
        %v3234 = vmul.f32 %v2733, %v3090
        %v3235 = vmul.f32 %v2737, %v3091
        %v3236 = vmul.f32 %v2741, %v3092
        %v3237 = vmul.f32 %v2745, %v3093
        %v3238 = vmul.f32 %v2749, %v3094
        %v3239 = vmul.f32 %v2753, %v3095
        %v3240 = vmul.f32 %v2757, %v3096
        %v3241 = vmul.f32 %v2761, %v3097
        %v3242 = vmul.f32 %v2765, %v3098
        %v3243 = vmul.f32 %v2769, %v3099
        %v3244 = vmul.f32 %v2773, %v3100
        %v3245 = vmul.f32 %v2777, %v3101
        %v3246 = vmul.f32 %v2781, %v3102
        %v3247 = vmul.f32 %v2785, %v3103
        %v3248 = vmul.f32 %v2789, %v3104
        %v3249 = vmul.f32 %v2793, %v3105
        %v3250 = vmul.f32 %v2797, %v3106
        %v3251 = vmul.f32 %v2801, %v3107
        %v3252 = vmul.f32 %v2805, %v3108
        %v3253 = vmul.f32 %v2809, %v3109
        %v3254 = vmul.f32 %v2813, %v3110
        %v3255 = vmul.f32 %v2817, %v3111
        %v3256 = vmul.f32 %v2821, %v3112
        %v3257 = vmul.f32 %v2825, %v3113
        %v3258 = vmul.f32 %v2829, %v3114
        %v3259 = vmul.f32 %v2833, %v3115
        %v3260 = vmul.f32 %v2837, %v3116
        %v3261 = vmul.f32 %v2841, %v3117
        %v3262 = vmul.f32 %v2845, %v3118
        %v3263 = vmul.f32 %v2849, %v3119
        %v3264 = vmul.f32 %v2853, %v3120
        %v3265 = vmul.f32 %v2857, %v3121
        %v3266 = vmul.f32 %v2861, %v3122
        %v3267 = vmul.f32 %v2865, %v3123
        %v3268 = vmul.f32 %v2869, %v3124
        %v3269 = vmul.f32 %v2873, %v3125
        %v3270 = vmul.f32 %v2877, %v3126
        %v3271 = vmul.f32 %v2881, %v3127
        %v3272 = vmul.f32 %v2885, %v3128
        %v3273 = vmul.f32 %v2889, %v3129
        %v3274 = vmul.f32 %v2893, %v3130
        %v3275 = vmul.f32 %v2897, %v3131
        %v3276 = vmul.f32 %v2901, %v3132
        %v3277 = vmul.f32 %v2905, %v3133
        %v3278 = vmul.f32 %v2909, %v3134
        %v3279 = vmul.f32 %v2913, %v3135
        %v3280 = vmul.f32 %v2917, %v3136
        %v3281 = vmul.f32 %v2921, %v3137
        %v3282 = vmul.f32 %v2925, %v3138
        %v3283 = vmul.f32 %v2929, %v3139
        %v3284 = vmul.f32 %v2933, %v3140
        %v3285 = vmul.f32 %v2937, %v3141
        %v3286 = vmul.f32 %v2941, %v3142
        %v3287 = vmul.f32 %v2945, %v3143
        %v3288 = vmul.f32 %v2949, %v3144
        %v3289 = vmul.f32 %v2953, %v3145
        %v3290 = vmul.f32 %v2957, %v3146
        %v3291 = vmul.f32 %v2961, %v3147
        %v3292 = vmul.f32 %v2965, %v3148
        %v3293 = vmul.f32 %v2969, %v3149
        %v3294 = vmul.f32 %v2973, %v3150
        %v3295 = vmul.f32 %v2977, %v3151
        %v3296 = vmul.f32 %v2981, %v3152
        %v3297 = vmul.f32 %v2985, %v3153
        %v3298 = vmul.f32 %v2989, %v3154
        %v3299 = vmul.f32 %v2993, %v3155
        %v3300 = vmul.f32 %v2997, %v3156
        %v3301 = vmul.f32 %v3001, %v3157
        %v3302 = vmul.f32 %v3005, %v3158
        %v3303 = vmul.f32 %v3009, %v3159
        %v3304 = vmul.f32 %v3013, %v3160
        %v3305 = vmul.f32 %v3017, %v3161
        %v3306 = vsub.f32 2.0, %v3162
        %v3307 = vsub.f32 2.0, %v3163
        %v3308 = vsub.f32 2.0, %v3164
        %v3309 = vsub.f32 2.0, %v3165
        %v3310 = vsub.f32 2.0, %v3166
        %v3311 = vsub.f32 2.0, %v3167
        %v3312 = vsub.f32 2.0, %v3168
        %v3313 = vsub.f32 2.0, %v3169
        %v3314 = vsub.f32 2.0, %v3170
        %v3315 = vsub.f32 2.0, %v3171
        %v3316 = vsub.f32 2.0, %v3172
        %v3317 = vsub.f32 2.0, %v3173
        %v3318 = vsub.f32 2.0, %v3174
        %v3319 = vsub.f32 2.0, %v3175
        %v3320 = vsub.f32 2.0, %v3176
        %v3321 = vsub.f32 2.0, %v3177
        %v3322 = vsub.f32 2.0, %v3178
        %v3323 = vsub.f32 2.0, %v3179
        %v3324 = vsub.f32 2.0, %v3180
        %v3325 = vsub.f32 2.0, %v3181
        %v3326 = vsub.f32 2.0, %v3182
        %v3327 = vsub.f32 2.0, %v3183
        %v3328 = vsub.f32 2.0, %v3184
        %v3329 = vsub.f32 2.0, %v3185
        %v3330 = vsub.f32 2.0, %v3186
        %v3331 = vsub.f32 2.0, %v3187
        %v3332 = vsub.f32 2.0, %v3188
        %v3333 = vsub.f32 2.0, %v3189
        %v3334 = vsub.f32 2.0, %v3190
        %v3335 = vsub.f32 2.0, %v3191
        %v3336 = vsub.f32 2.0, %v3192
        %v3337 = vsub.f32 2.0, %v3193
        %v3338 = vsub.f32 2.0, %v3194
        %v3339 = vsub.f32 2.0, %v3195
        %v3340 = vsub.f32 2.0, %v3196
        %v3341 = vsub.f32 2.0, %v3197
        %v3342 = vsub.f32 2.0, %v3198
        %v3343 = vsub.f32 2.0, %v3199
        %v3344 = vsub.f32 2.0, %v3200
        %v3345 = vsub.f32 2.0, %v3201
        %v3346 = vsub.f32 2.0, %v3202
        %v3347 = vsub.f32 2.0, %v3203
        %v3348 = vsub.f32 2.0, %v3204
        %v3349 = vsub.f32 2.0, %v3205
        %v3350 = vsub.f32 2.0, %v3206
        %v3351 = vsub.f32 2.0, %v3207
        %v3352 = vsub.f32 2.0, %v3208
        %v3353 = vsub.f32 2.0, %v3209
        %v3354 = vsub.f32 2.0, %v3210
        %v3355 = vsub.f32 2.0, %v3211
        %v3356 = vsub.f32 2.0, %v3212
        %v3357 = vsub.f32 2.0, %v3213
        %v3358 = vsub.f32 2.0, %v3214
        %v3359 = vsub.f32 2.0, %v3215
        %v3360 = vsub.f32 2.0, %v3216
        %v3361 = vsub.f32 2.0, %v3217
        %v3362 = vsub.f32 2.0, %v3218
        %v3363 = vsub.f32 2.0, %v3219
        %v3364 = vsub.f32 2.0, %v3220
        %v3365 = vsub.f32 2.0, %v3221
        %v3366 = vsub.f32 2.0, %v3222
        %v3367 = vsub.f32 2.0, %v3223
        %v3368 = vsub.f32 2.0, %v3224
        %v3369 = vsub.f32 2.0, %v3225
        %v3370 = vsub.f32 2.0, %v3226
        %v3371 = vsub.f32 2.0, %v3227
        %v3372 = vsub.f32 2.0, %v3228
        %v3373 = vsub.f32 2.0, %v3229
        %v3374 = vsub.f32 2.0, %v3230
        %v3375 = vsub.f32 2.0, %v3231
        %v3376 = vsub.f32 2.0, %v3232
        %v3377 = vsub.f32 2.0, %v3233
        %v3378 = vsub.f32 2.0, %v3234
        %v3379 = vsub.f32 2.0, %v3235
        %v3380 = vsub.f32 2.0, %v3236
        %v3381 = vsub.f32 2.0, %v3237
        %v3382 = vsub.f32 2.0, %v3238
        %v3383 = vsub.f32 2.0, %v3239
        %v3384 = vsub.f32 2.0, %v3240
        %v3385 = vsub.f32 2.0, %v3241
        %v3386 = vsub.f32 2.0, %v3242
        %v3387 = vsub.f32 2.0, %v3243
        %v3388 = vsub.f32 2.0, %v3244
        %v3389 = vsub.f32 2.0, %v3245
        %v3390 = vsub.f32 2.0, %v3246
        %v3391 = vsub.f32 2.0, %v3247
        %v3392 = vsub.f32 2.0, %v3248
        %v3393 = vsub.f32 2.0, %v3249
        %v3394 = vsub.f32 2.0, %v3250
        %v3395 = vsub.f32 2.0, %v3251
        %v3396 = vsub.f32 2.0, %v3252
        %v3397 = vsub.f32 2.0, %v3253
        %v3398 = vsub.f32 2.0, %v3254
        %v3399 = vsub.f32 2.0, %v3255
        %v3400 = vsub.f32 2.0, %v3256
        %v3401 = vsub.f32 2.0, %v3257
        %v3402 = vsub.f32 2.0, %v3258
        %v3403 = vsub.f32 2.0, %v3259
        %v3404 = vsub.f32 2.0, %v3260
        %v3405 = vsub.f32 2.0, %v3261
        %v3406 = vsub.f32 2.0, %v3262
        %v3407 = vsub.f32 2.0, %v3263
        %v3408 = vsub.f32 2.0, %v3264
        %v3409 = vsub.f32 2.0, %v3265
        %v3410 = vsub.f32 2.0, %v3266
        %v3411 = vsub.f32 2.0, %v3267
        %v3412 = vsub.f32 2.0, %v3268
        %v3413 = vsub.f32 2.0, %v3269
        %v3414 = vsub.f32 2.0, %v3270
        %v3415 = vsub.f32 2.0, %v3271
        %v3416 = vsub.f32 2.0, %v3272
        %v3417 = vsub.f32 2.0, %v3273
        %v3418 = vsub.f32 2.0, %v3274
        %v3419 = vsub.f32 2.0, %v3275
        %v3420 = vsub.f32 2.0, %v3276
        %v3421 = vsub.f32 2.0, %v3277
        %v3422 = vsub.f32 2.0, %v3278
        %v3423 = vsub.f32 2.0, %v3279
        %v3424 = vsub.f32 2.0, %v3280
        %v3425 = vsub.f32 2.0, %v3281
        %v3426 = vsub.f32 2.0, %v3282
        %v3427 = vsub.f32 2.0, %v3283
        %v3428 = vsub.f32 2.0, %v3284
        %v3429 = vsub.f32 2.0, %v3285
        %v3430 = vsub.f32 2.0, %v3286
        %v3431 = vsub.f32 2.0, %v3287
        %v3432 = vsub.f32 2.0, %v3288
        %v3433 = vsub.f32 2.0, %v3289
        %v3434 = vsub.f32 2.0, %v3290
        %v3435 = vsub.f32 2.0, %v3291
        %v3436 = vsub.f32 2.0, %v3292
        %v3437 = vsub.f32 2.0, %v3293
        %v3438 = vsub.f32 2.0, %v3294
        %v3439 = vsub.f32 2.0, %v3295
        %v3440 = vsub.f32 2.0, %v3296
        %v3441 = vsub.f32 2.0, %v3297
        %v3442 = vsub.f32 2.0, %v3298
        %v3443 = vsub.f32 2.0, %v3299
        %v3444 = vsub.f32 2.0, %v3300
        %v3445 = vsub.f32 2.0, %v3301
        %v3446 = vsub.f32 2.0, %v3302
        %v3447 = vsub.f32 2.0, %v3303
        %v3448 = vsub.f32 2.0, %v3304
        %v3449 = vsub.f32 2.0, %v3305
        %v3450 = vmul.f32 %v3018, %v3306
        %v3451 = vmul.f32 %v3019, %v3307
        %v3452 = vmul.f32 %v3020, %v3308
        %v3453 = vmul.f32 %v3021, %v3309
        %v3454 = vmul.f32 %v3022, %v3310
        %v3455 = vmul.f32 %v3023, %v3311
        %v3456 = vmul.f32 %v3024, %v3312
        %v3457 = vmul.f32 %v3025, %v3313
        %v3458 = vmul.f32 %v3026, %v3314
        %v3459 = vmul.f32 %v3027, %v3315
        %v3460 = vmul.f32 %v3028, %v3316
        %v3461 = vmul.f32 %v3029, %v3317
        %v3462 = vmul.f32 %v3030, %v3318
        %v3463 = vmul.f32 %v3031, %v3319
        %v3464 = vmul.f32 %v3032, %v3320
        %v3465 = vmul.f32 %v3033, %v3321
        %v3466 = vmul.f32 %v3034, %v3322
        %v3467 = vmul.f32 %v3035, %v3323
        %v3468 = vmul.f32 %v3036, %v3324
        %v3469 = vmul.f32 %v3037, %v3325
        %v3470 = vmul.f32 %v3038, %v3326
        %v3471 = vmul.f32 %v3039, %v3327
        %v3472 = vmul.f32 %v3040, %v3328
        %v3473 = vmul.f32 %v3041, %v3329
        %v3474 = vmul.f32 %v3042, %v3330
        %v3475 = vmul.f32 %v3043, %v3331
        %v3476 = vmul.f32 %v3044, %v3332
        %v3477 = vmul.f32 %v3045, %v3333
        %v3478 = vmul.f32 %v3046, %v3334
        %v3479 = vmul.f32 %v3047, %v3335
        %v3480 = vmul.f32 %v3048, %v3336
        %v3481 = vmul.f32 %v3049, %v3337
        %v3482 = vmul.f32 %v3050, %v3338
        %v3483 = vmul.f32 %v3051, %v3339
        %v3484 = vmul.f32 %v3052, %v3340
        %v3485 = vmul.f32 %v3053, %v3341
        %v3486 = vmul.f32 %v3054, %v3342
        %v3487 = vmul.f32 %v3055, %v3343
        %v3488 = vmul.f32 %v3056, %v3344
        %v3489 = vmul.f32 %v3057, %v3345
        %v3490 = vmul.f32 %v3058, %v3346
        %v3491 = vmul.f32 %v3059, %v3347
        %v3492 = vmul.f32 %v3060, %v3348
        %v3493 = vmul.f32 %v3061, %v3349
        %v3494 = vmul.f32 %v3062, %v3350
        %v3495 = vmul.f32 %v3063, %v3351
        %v3496 = vmul.f32 %v3064, %v3352
        %v3497 = vmul.f32 %v3065, %v3353
        %v3498 = vmul.f32 %v3066, %v3354
        %v3499 = vmul.f32 %v3067, %v3355
        %v3500 = vmul.f32 %v3068, %v3356
        %v3501 = vmul.f32 %v3069, %v3357
        %v3502 = vmul.f32 %v3070, %v3358
        %v3503 = vmul.f32 %v3071, %v3359
        %v3504 = vmul.f32 %v3072, %v3360
        %v3505 = vmul.f32 %v3073, %v3361
        %v3506 = vmul.f32 %v3074, %v3362
        %v3507 = vmul.f32 %v3075, %v3363
        %v3508 = vmul.f32 %v3076, %v3364
        %v3509 = vmul.f32 %v3077, %v3365
        %v3510 = vmul.f32 %v3078, %v3366
        %v3511 = vmul.f32 %v3079, %v3367
        %v3512 = vmul.f32 %v3080, %v3368
        %v3513 = vmul.f32 %v3081, %v3369
        %v3514 = vmul.f32 %v3082, %v3370
        %v3515 = vmul.f32 %v3083, %v3371
        %v3516 = vmul.f32 %v3084, %v3372
        %v3517 = vmul.f32 %v3085, %v3373
        %v3518 = vmul.f32 %v3086, %v3374
        %v3519 = vmul.f32 %v3087, %v3375
        %v3520 = vmul.f32 %v3088, %v3376
        %v3521 = vmul.f32 %v3089, %v3377
        %v3522 = vmul.f32 %v3090, %v3378
        %v3523 = vmul.f32 %v3091, %v3379
        %v3524 = vmul.f32 %v3092, %v3380
        %v3525 = vmul.f32 %v3093, %v3381
        %v3526 = vmul.f32 %v3094, %v3382
        %v3527 = vmul.f32 %v3095, %v3383
        %v3528 = vmul.f32 %v3096, %v3384
        %v3529 = vmul.f32 %v3097, %v3385
        %v3530 = vmul.f32 %v3098, %v3386
        %v3531 = vmul.f32 %v3099, %v3387
        %v3532 = vmul.f32 %v3100, %v3388
        %v3533 = vmul.f32 %v3101, %v3389
        %v3534 = vmul.f32 %v3102, %v3390
        %v3535 = vmul.f32 %v3103, %v3391
        %v3536 = vmul.f32 %v3104, %v3392
        %v3537 = vmul.f32 %v3105, %v3393
        %v3538 = vmul.f32 %v3106, %v3394
        %v3539 = vmul.f32 %v3107, %v3395
        %v3540 = vmul.f32 %v3108, %v3396
        %v3541 = vmul.f32 %v3109, %v3397
        %v3542 = vmul.f32 %v3110, %v3398
        %v3543 = vmul.f32 %v3111, %v3399
        %v3544 = vmul.f32 %v3112, %v3400
        %v3545 = vmul.f32 %v3113, %v3401
        %v3546 = vmul.f32 %v3114, %v3402
        %v3547 = vmul.f32 %v3115, %v3403
        %v3548 = vmul.f32 %v3116, %v3404
        %v3549 = vmul.f32 %v3117, %v3405
        %v3550 = vmul.f32 %v3118, %v3406
        %v3551 = vmul.f32 %v3119, %v3407
        %v3552 = vmul.f32 %v3120, %v3408
        %v3553 = vmul.f32 %v3121, %v3409
        %v3554 = vmul.f32 %v3122, %v3410
        %v3555 = vmul.f32 %v3123, %v3411
        %v3556 = vmul.f32 %v3124, %v3412
        %v3557 = vmul.f32 %v3125, %v3413
        %v3558 = vmul.f32 %v3126, %v3414
        %v3559 = vmul.f32 %v3127, %v3415
        %v3560 = vmul.f32 %v3128, %v3416
        %v3561 = vmul.f32 %v3129, %v3417
        %v3562 = vmul.f32 %v3130, %v3418
        %v3563 = vmul.f32 %v3131, %v3419
        %v3564 = vmul.f32 %v3132, %v3420
        %v3565 = vmul.f32 %v3133, %v3421
        %v3566 = vmul.f32 %v3134, %v3422
        %v3567 = vmul.f32 %v3135, %v3423
        %v3568 = vmul.f32 %v3136, %v3424
        %v3569 = vmul.f32 %v3137, %v3425
        %v3570 = vmul.f32 %v3138, %v3426
        %v3571 = vmul.f32 %v3139, %v3427
        %v3572 = vmul.f32 %v3140, %v3428
        %v3573 = vmul.f32 %v3141, %v3429
        %v3574 = vmul.f32 %v3142, %v3430
        %v3575 = vmul.f32 %v3143, %v3431
        %v3576 = vmul.f32 %v3144, %v3432
        %v3577 = vmul.f32 %v3145, %v3433
        %v3578 = vmul.f32 %v3146, %v3434
        %v3579 = vmul.f32 %v3147, %v3435
        %v3580 = vmul.f32 %v3148, %v3436
        %v3581 = vmul.f32 %v3149, %v3437
        %v3582 = vmul.f32 %v3150, %v3438
        %v3583 = vmul.f32 %v3151, %v3439
        %v3584 = vmul.f32 %v3152, %v3440
        %v3585 = vmul.f32 %v3153, %v3441
        %v3586 = vmul.f32 %v3154, %v3442
        %v3587 = vmul.f32 %v3155, %v3443
        %v3588 = vmul.f32 %v3156, %v3444
        %v3589 = vmul.f32 %v3157, %v3445
        %v3590 = vmul.f32 %v3158, %v3446
        %v3591 = vmul.f32 %v3159, %v3447
        %v3592 = vmul.f32 %v3160, %v3448
        %v3593 = vmul.f32 %v3161, %v3449
        %v3594 = vmul.f32 %v1579, %v3450
        %v3595 = vmul.f32 %v1581, %v3450
        %v3596 = vmul.f32 %v1583, %v3450
        %v3597 = vmul.f32 %v1585, %v3451
        %v3598 = vmul.f32 %v1587, %v3451
        %v3599 = vmul.f32 %v1589, %v3451
        %v3600 = vmul.f32 %v1591, %v3452
        %v3601 = vmul.f32 %v1593, %v3452
        %v3602 = vmul.f32 %v1595, %v3452
        %v3603 = vmul.f32 %v1597, %v3453
        %v3604 = vmul.f32 %v1599, %v3453
        %v3605 = vmul.f32 %v1601, %v3453
        %v3606 = vmul.f32 %v1603, %v3454
        %v3607 = vmul.f32 %v1605, %v3454
        %v3608 = vmul.f32 %v1607, %v3454
        %v3609 = vmul.f32 %v1609, %v3455
        %v3610 = vmul.f32 %v1611, %v3455
        %v3611 = vmul.f32 %v1613, %v3455
        %v3612 = vmul.f32 %v1615, %v3456
        %v3613 = vmul.f32 %v1617, %v3456
        %v3614 = vmul.f32 %v1619, %v3456
        %v3615 = vmul.f32 %v1621, %v3457
        %v3616 = vmul.f32 %v1623, %v3457
        %v3617 = vmul.f32 %v1625, %v3457
        %v3618 = vmul.f32 %v1627, %v3458
        %v3619 = vmul.f32 %v1629, %v3458
        %v3620 = vmul.f32 %v1631, %v3458
        %v3621 = vmul.f32 %v1633, %v3459
        %v3622 = vmul.f32 %v1635, %v3459
        %v3623 = vmul.f32 %v1637, %v3459
        %v3624 = vmul.f32 %v1639, %v3460
        %v3625 = vmul.f32 %v1641, %v3460
        %v3626 = vmul.f32 %v1643, %v3460
        %v3627 = vmul.f32 %v1645, %v3461
        %v3628 = vmul.f32 %v1647, %v3461
        %v3629 = vmul.f32 %v1649, %v3461
        %v3630 = vmul.f32 %v1651, %v3462
        %v3631 = vmul.f32 %v1653, %v3462
        %v3632 = vmul.f32 %v1655, %v3462
        %v3633 = vmul.f32 %v1657, %v3463
        %v3634 = vmul.f32 %v1659, %v3463
        %v3635 = vmul.f32 %v1661, %v3463
        %v3636 = vmul.f32 %v1663, %v3464
        %v3637 = vmul.f32 %v1665, %v3464
        %v3638 = vmul.f32 %v1667, %v3464
        %v3639 = vmul.f32 %v1669, %v3465
        %v3640 = vmul.f32 %v1671, %v3465
        %v3641 = vmul.f32 %v1673, %v3465
        %v3642 = vmul.f32 %v1675, %v3466
        %v3643 = vmul.f32 %v1677, %v3466
        %v3644 = vmul.f32 %v1679, %v3466
        %v3645 = vmul.f32 %v1681, %v3467
        %v3646 = vmul.f32 %v1683, %v3467
        %v3647 = vmul.f32 %v1685, %v3467
        %v3648 = vmul.f32 %v1687, %v3468
        %v3649 = vmul.f32 %v1689, %v3468
        %v3650 = vmul.f32 %v1691, %v3468
        %v3651 = vmul.f32 %v1693, %v3469
        %v3652 = vmul.f32 %v1695, %v3469
        %v3653 = vmul.f32 %v1697, %v3469
        %v3654 = vmul.f32 %v1699, %v3470
        %v3655 = vmul.f32 %v1701, %v3470
        %v3656 = vmul.f32 %v1703, %v3470
        %v3657 = vmul.f32 %v1705, %v3471
        %v3658 = vmul.f32 %v1707, %v3471
        %v3659 = vmul.f32 %v1709, %v3471
        %v3660 = vmul.f32 %v1711, %v3472
        %v3661 = vmul.f32 %v1713, %v3472
        %v3662 = vmul.f32 %v1715, %v3472
        %v3663 = vmul.f32 %v1717, %v3473
        %v3664 = vmul.f32 %v1719, %v3473
        %v3665 = vmul.f32 %v1721, %v3473
        %v3666 = vmul.f32 %v1723, %v3474
        %v3667 = vmul.f32 %v1725, %v3474
        %v3668 = vmul.f32 %v1727, %v3474
        %v3669 = vmul.f32 %v1729, %v3475
        %v3670 = vmul.f32 %v1731, %v3475
        %v3671 = vmul.f32 %v1733, %v3475
        %v3672 = vmul.f32 %v1735, %v3476
        %v3673 = vmul.f32 %v1737, %v3476
        %v3674 = vmul.f32 %v1739, %v3476
        %v3675 = vmul.f32 %v1741, %v3477
        %v3676 = vmul.f32 %v1743, %v3477
        %v3677 = vmul.f32 %v1745, %v3477
        %v3678 = vmul.f32 %v1747, %v3478
        %v3679 = vmul.f32 %v1749, %v3478
        %v3680 = vmul.f32 %v1751, %v3478
        %v3681 = vmul.f32 %v1753, %v3479
        %v3682 = vmul.f32 %v1755, %v3479
        %v3683 = vmul.f32 %v1757, %v3479
        %v3684 = vmul.f32 %v1759, %v3480
        %v3685 = vmul.f32 %v1761, %v3480
        %v3686 = vmul.f32 %v1763, %v3480
        %v3687 = vmul.f32 %v1765, %v3481
        %v3688 = vmul.f32 %v1767, %v3481
        %v3689 = vmul.f32 %v1769, %v3481
        %v3690 = vmul.f32 %v1771, %v3482
        %v3691 = vmul.f32 %v1773, %v3482
        %v3692 = vmul.f32 %v1775, %v3482
        %v3693 = vmul.f32 %v1777, %v3483
        %v3694 = vmul.f32 %v1779, %v3483
        %v3695 = vmul.f32 %v1781, %v3483
        %v3696 = vmul.f32 %v1783, %v3484
        %v3697 = vmul.f32 %v1785, %v3484
        %v3698 = vmul.f32 %v1787, %v3484
        %v3699 = vmul.f32 %v1789, %v3485
        %v3700 = vmul.f32 %v1791, %v3485
        %v3701 = vmul.f32 %v1793, %v3485
        %v3702 = vmul.f32 %v1795, %v3486
        %v3703 = vmul.f32 %v1797, %v3486
        %v3704 = vmul.f32 %v1799, %v3486
        %v3705 = vmul.f32 %v1801, %v3487
        %v3706 = vmul.f32 %v1803, %v3487
        %v3707 = vmul.f32 %v1805, %v3487
        %v3708 = vmul.f32 %v1807, %v3488
        %v3709 = vmul.f32 %v1809, %v3488
        %v3710 = vmul.f32 %v1811, %v3488
        %v3711 = vmul.f32 %v1813, %v3489
        %v3712 = vmul.f32 %v1815, %v3489
        %v3713 = vmul.f32 %v1817, %v3489
        %v3714 = vmul.f32 %v1819, %v3490
        %v3715 = vmul.f32 %v1821, %v3490
        %v3716 = vmul.f32 %v1823, %v3490
        %v3717 = vmul.f32 %v1825, %v3491
        %v3718 = vmul.f32 %v1827, %v3491
        %v3719 = vmul.f32 %v1829, %v3491
        %v3720 = vmul.f32 %v1831, %v3492
        %v3721 = vmul.f32 %v1833, %v3492
        %v3722 = vmul.f32 %v1835, %v3492
        %v3723 = vmul.f32 %v1837, %v3493
        %v3724 = vmul.f32 %v1839, %v3493
        %v3725 = vmul.f32 %v1841, %v3493
        %v3726 = vmul.f32 %v1843, %v3494
        %v3727 = vmul.f32 %v1845, %v3494
        %v3728 = vmul.f32 %v1847, %v3494
        %v3729 = vmul.f32 %v1849, %v3495
        %v3730 = vmul.f32 %v1851, %v3495
        %v3731 = vmul.f32 %v1853, %v3495
        %v3732 = vmul.f32 %v1855, %v3496
        %v3733 = vmul.f32 %v1857, %v3496
        %v3734 = vmul.f32 %v1859, %v3496
        %v3735 = vmul.f32 %v1861, %v3497
        %v3736 = vmul.f32 %v1863, %v3497
        %v3737 = vmul.f32 %v1865, %v3497
        %v3738 = vmul.f32 %v1867, %v3498
        %v3739 = vmul.f32 %v1869, %v3498
        %v3740 = vmul.f32 %v1871, %v3498
        %v3741 = vmul.f32 %v1873, %v3499
        %v3742 = vmul.f32 %v1875, %v3499
        %v3743 = vmul.f32 %v1877, %v3499
        %v3744 = vmul.f32 %v1879, %v3500
        %v3745 = vmul.f32 %v1881, %v3500
        %v3746 = vmul.f32 %v1883, %v3500
        %v3747 = vmul.f32 %v1885, %v3501
        %v3748 = vmul.f32 %v1887, %v3501
        %v3749 = vmul.f32 %v1889, %v3501
        %v3750 = vmul.f32 %v1891, %v3502
        %v3751 = vmul.f32 %v1893, %v3502
        %v3752 = vmul.f32 %v1895, %v3502
        %v3753 = vmul.f32 %v1897, %v3503
        %v3754 = vmul.f32 %v1899, %v3503
        %v3755 = vmul.f32 %v1901, %v3503
        %v3756 = vmul.f32 %v1903, %v3504
        %v3757 = vmul.f32 %v1905, %v3504
        %v3758 = vmul.f32 %v1907, %v3504
        %v3759 = vmul.f32 %v1909, %v3505
        %v3760 = vmul.f32 %v1911, %v3505
        %v3761 = vmul.f32 %v1913, %v3505
        %v3762 = vmul.f32 %v1915, %v3506
        %v3763 = vmul.f32 %v1917, %v3506
        %v3764 = vmul.f32 %v1919, %v3506
        %v3765 = vmul.f32 %v1921, %v3507
        %v3766 = vmul.f32 %v1923, %v3507
        %v3767 = vmul.f32 %v1925, %v3507
        %v3768 = vmul.f32 %v1927, %v3508
        %v3769 = vmul.f32 %v1929, %v3508
        %v3770 = vmul.f32 %v1931, %v3508
        %v3771 = vmul.f32 %v1933, %v3509
        %v3772 = vmul.f32 %v1935, %v3509
        %v3773 = vmul.f32 %v1937, %v3509
        %v3774 = vmul.f32 %v1939, %v3510
        %v3775 = vmul.f32 %v1941, %v3510
        %v3776 = vmul.f32 %v1943, %v3510
        %v3777 = vmul.f32 %v1945, %v3511
        %v3778 = vmul.f32 %v1947, %v3511
        %v3779 = vmul.f32 %v1949, %v3511
        %v3780 = vmul.f32 %v1951, %v3512
        %v3781 = vmul.f32 %v1953, %v3512
        %v3782 = vmul.f32 %v1955, %v3512
        %v3783 = vmul.f32 %v1957, %v3513
        %v3784 = vmul.f32 %v1959, %v3513
        %v3785 = vmul.f32 %v1961, %v3513
        %v3786 = vmul.f32 %v1963, %v3514
        %v3787 = vmul.f32 %v1965, %v3514
        %v3788 = vmul.f32 %v1967, %v3514
        %v3789 = vmul.f32 %v1969, %v3515
        %v3790 = vmul.f32 %v1971, %v3515
        %v3791 = vmul.f32 %v1973, %v3515
        %v3792 = vmul.f32 %v1975, %v3516
        %v3793 = vmul.f32 %v1977, %v3516
        %v3794 = vmul.f32 %v1979, %v3516
        %v3795 = vmul.f32 %v1981, %v3517
        %v3796 = vmul.f32 %v1983, %v3517
        %v3797 = vmul.f32 %v1985, %v3517
        %v3798 = vmul.f32 %v1987, %v3518
        %v3799 = vmul.f32 %v1989, %v3518
        %v3800 = vmul.f32 %v1991, %v3518
        %v3801 = vmul.f32 %v1993, %v3519
        %v3802 = vmul.f32 %v1995, %v3519
        %v3803 = vmul.f32 %v1997, %v3519
        %v3804 = vmul.f32 %v1999, %v3520
        %v3805 = vmul.f32 %v2001, %v3520
        %v3806 = vmul.f32 %v2003, %v3520
        %v3807 = vmul.f32 %v2005, %v3521
        %v3808 = vmul.f32 %v2007, %v3521
        %v3809 = vmul.f32 %v2009, %v3521
        %v3810 = vmul.f32 %v2011, %v3522
        %v3811 = vmul.f32 %v2013, %v3522
        %v3812 = vmul.f32 %v2015, %v3522
        %v3813 = vmul.f32 %v2017, %v3523
        %v3814 = vmul.f32 %v2019, %v3523
        %v3815 = vmul.f32 %v2021, %v3523
        %v3816 = vmul.f32 %v2023, %v3524
        %v3817 = vmul.f32 %v2025, %v3524
        %v3818 = vmul.f32 %v2027, %v3524
        %v3819 = vmul.f32 %v2029, %v3525
        %v3820 = vmul.f32 %v2031, %v3525
        %v3821 = vmul.f32 %v2033, %v3525
        %v3822 = vmul.f32 %v2035, %v3526
        %v3823 = vmul.f32 %v2037, %v3526
        %v3824 = vmul.f32 %v2039, %v3526
        %v3825 = vmul.f32 %v2041, %v3527
        %v3826 = vmul.f32 %v2043, %v3527
        %v3827 = vmul.f32 %v2045, %v3527
        %v3828 = vmul.f32 %v2047, %v3528
        %v3829 = vmul.f32 %v2049, %v3528
        %v3830 = vmul.f32 %v2051, %v3528
        %v3831 = vmul.f32 %v2053, %v3529
        %v3832 = vmul.f32 %v2055, %v3529
        %v3833 = vmul.f32 %v2057, %v3529
        %v3834 = vmul.f32 %v2059, %v3530
        %v3835 = vmul.f32 %v2061, %v3530
        %v3836 = vmul.f32 %v2063, %v3530
        %v3837 = vmul.f32 %v2065, %v3531
        %v3838 = vmul.f32 %v2067, %v3531
        %v3839 = vmul.f32 %v2069, %v3531
        %v3840 = vmul.f32 %v2071, %v3532
        %v3841 = vmul.f32 %v2073, %v3532
        %v3842 = vmul.f32 %v2075, %v3532
        %v3843 = vmul.f32 %v2077, %v3533
        %v3844 = vmul.f32 %v2079, %v3533
        %v3845 = vmul.f32 %v2081, %v3533
        %v3846 = vmul.f32 %v2083, %v3534
        %v3847 = vmul.f32 %v2085, %v3534
        %v3848 = vmul.f32 %v2087, %v3534
        %v3849 = vmul.f32 %v2089, %v3535
        %v3850 = vmul.f32 %v2091, %v3535
        %v3851 = vmul.f32 %v2093, %v3535
        %v3852 = vmul.f32 %v2095, %v3536
        %v3853 = vmul.f32 %v2097, %v3536
        %v3854 = vmul.f32 %v2099, %v3536
        %v3855 = vmul.f32 %v2101, %v3537
        %v3856 = vmul.f32 %v2103, %v3537
        %v3857 = vmul.f32 %v2105, %v3537
        %v3858 = vmul.f32 %v2107, %v3538
        %v3859 = vmul.f32 %v2109, %v3538
        %v3860 = vmul.f32 %v2111, %v3538
        %v3861 = vmul.f32 %v2113, %v3539
        %v3862 = vmul.f32 %v2115, %v3539
        %v3863 = vmul.f32 %v2117, %v3539
        %v3864 = vmul.f32 %v2119, %v3540
        %v3865 = vmul.f32 %v2121, %v3540
        %v3866 = vmul.f32 %v2123, %v3540
        %v3867 = vmul.f32 %v2125, %v3541
        %v3868 = vmul.f32 %v2127, %v3541
        %v3869 = vmul.f32 %v2129, %v3541
        %v3870 = vmul.f32 %v2131, %v3542
        %v3871 = vmul.f32 %v2133, %v3542
        %v3872 = vmul.f32 %v2135, %v3542
        %v3873 = vmul.f32 %v2137, %v3543
        %v3874 = vmul.f32 %v2139, %v3543
        %v3875 = vmul.f32 %v2141, %v3543
        %v3876 = vmul.f32 %v2143, %v3544
        %v3877 = vmul.f32 %v2145, %v3544
        %v3878 = vmul.f32 %v2147, %v3544
        %v3879 = vmul.f32 %v2149, %v3545
        %v3880 = vmul.f32 %v2151, %v3545
        %v3881 = vmul.f32 %v2153, %v3545
        %v3882 = vmul.f32 %v2155, %v3546
        %v3883 = vmul.f32 %v2157, %v3546
        %v3884 = vmul.f32 %v2159, %v3546
        %v3885 = vmul.f32 %v2161, %v3547
        %v3886 = vmul.f32 %v2163, %v3547
        %v3887 = vmul.f32 %v2165, %v3547
        %v3888 = vmul.f32 %v2167, %v3548
        %v3889 = vmul.f32 %v2169, %v3548
        %v3890 = vmul.f32 %v2171, %v3548
        %v3891 = vmul.f32 %v2173, %v3549
        %v3892 = vmul.f32 %v2175, %v3549
        %v3893 = vmul.f32 %v2177, %v3549
        %v3894 = vmul.f32 %v2179, %v3550
        %v3895 = vmul.f32 %v2181, %v3550
        %v3896 = vmul.f32 %v2183, %v3550
        %v3897 = vmul.f32 %v2185, %v3551
        %v3898 = vmul.f32 %v2187, %v3551
        %v3899 = vmul.f32 %v2189, %v3551
        %v3900 = vmul.f32 %v2191, %v3552
        %v3901 = vmul.f32 %v2193, %v3552
        %v3902 = vmul.f32 %v2195, %v3552
        %v3903 = vmul.f32 %v2197, %v3553
        %v3904 = vmul.f32 %v2199, %v3553
        %v3905 = vmul.f32 %v2201, %v3553
        %v3906 = vmul.f32 %v2203, %v3554
        %v3907 = vmul.f32 %v2205, %v3554
        %v3908 = vmul.f32 %v2207, %v3554
        %v3909 = vmul.f32 %v2209, %v3555
        %v3910 = vmul.f32 %v2211, %v3555
        %v3911 = vmul.f32 %v2213, %v3555
        %v3912 = vmul.f32 %v2215, %v3556
        %v3913 = vmul.f32 %v2217, %v3556
        %v3914 = vmul.f32 %v2219, %v3556
        %v3915 = vmul.f32 %v2221, %v3557
        %v3916 = vmul.f32 %v2223, %v3557
        %v3917 = vmul.f32 %v2225, %v3557
        %v3918 = vmul.f32 %v2227, %v3558
        %v3919 = vmul.f32 %v2229, %v3558
        %v3920 = vmul.f32 %v2231, %v3558
        %v3921 = vmul.f32 %v2233, %v3559
        %v3922 = vmul.f32 %v2235, %v3559
        %v3923 = vmul.f32 %v2237, %v3559
        %v3924 = vmul.f32 %v2239, %v3560
        %v3925 = vmul.f32 %v2241, %v3560
        %v3926 = vmul.f32 %v2243, %v3560
        %v3927 = vmul.f32 %v2245, %v3561
        %v3928 = vmul.f32 %v2247, %v3561
        %v3929 = vmul.f32 %v2249, %v3561
        %v3930 = vmul.f32 %v2251, %v3562
        %v3931 = vmul.f32 %v2253, %v3562
        %v3932 = vmul.f32 %v2255, %v3562
        %v3933 = vmul.f32 %v2257, %v3563
        %v3934 = vmul.f32 %v2259, %v3563
        %v3935 = vmul.f32 %v2261, %v3563
        %v3936 = vmul.f32 %v2263, %v3564
        %v3937 = vmul.f32 %v2265, %v3564
        %v3938 = vmul.f32 %v2267, %v3564
        %v3939 = vmul.f32 %v2269, %v3565
        %v3940 = vmul.f32 %v2271, %v3565
        %v3941 = vmul.f32 %v2273, %v3565
        %v3942 = vmul.f32 %v2275, %v3566
        %v3943 = vmul.f32 %v2277, %v3566
        %v3944 = vmul.f32 %v2279, %v3566
        %v3945 = vmul.f32 %v2281, %v3567
        %v3946 = vmul.f32 %v2283, %v3567
        %v3947 = vmul.f32 %v2285, %v3567
        %v3948 = vmul.f32 %v2287, %v3568
        %v3949 = vmul.f32 %v2289, %v3568
        %v3950 = vmul.f32 %v2291, %v3568
        %v3951 = vmul.f32 %v2293, %v3569
        %v3952 = vmul.f32 %v2295, %v3569
        %v3953 = vmul.f32 %v2297, %v3569
        %v3954 = vmul.f32 %v2299, %v3570
        %v3955 = vmul.f32 %v2301, %v3570
        %v3956 = vmul.f32 %v2303, %v3570
        %v3957 = vmul.f32 %v2305, %v3571
        %v3958 = vmul.f32 %v2307, %v3571
        %v3959 = vmul.f32 %v2309, %v3571
        %v3960 = vmul.f32 %v2311, %v3572
        %v3961 = vmul.f32 %v2313, %v3572
        %v3962 = vmul.f32 %v2315, %v3572
        %v3963 = vmul.f32 %v2317, %v3573
        %v3964 = vmul.f32 %v2319, %v3573
        %v3965 = vmul.f32 %v2321, %v3573
        %v3966 = vmul.f32 %v2323, %v3574
        %v3967 = vmul.f32 %v2325, %v3574
        %v3968 = vmul.f32 %v2327, %v3574
        %v3969 = vmul.f32 %v2329, %v3575
        %v3970 = vmul.f32 %v2331, %v3575
        %v3971 = vmul.f32 %v2333, %v3575
        %v3972 = vmul.f32 %v2335, %v3576
        %v3973 = vmul.f32 %v2337, %v3576
        %v3974 = vmul.f32 %v2339, %v3576
        %v3975 = vmul.f32 %v2341, %v3577
        %v3976 = vmul.f32 %v2343, %v3577
        %v3977 = vmul.f32 %v2345, %v3577
        %v3978 = vmul.f32 %v2347, %v3578
        %v3979 = vmul.f32 %v2349, %v3578
        %v3980 = vmul.f32 %v2351, %v3578
        %v3981 = vmul.f32 %v2353, %v3579
        %v3982 = vmul.f32 %v2355, %v3579
        %v3983 = vmul.f32 %v2357, %v3579
        %v3984 = vmul.f32 %v2359, %v3580
        %v3985 = vmul.f32 %v2361, %v3580
        %v3986 = vmul.f32 %v2363, %v3580
        %v3987 = vmul.f32 %v2365, %v3581
        %v3988 = vmul.f32 %v2367, %v3581
        %v3989 = vmul.f32 %v2369, %v3581
        %v3990 = vmul.f32 %v2371, %v3582
        %v3991 = vmul.f32 %v2373, %v3582
        %v3992 = vmul.f32 %v2375, %v3582
        %v3993 = vmul.f32 %v2377, %v3583
        %v3994 = vmul.f32 %v2379, %v3583
        %v3995 = vmul.f32 %v2381, %v3583
        %v3996 = vmul.f32 %v2383, %v3584
        %v3997 = vmul.f32 %v2385, %v3584
        %v3998 = vmul.f32 %v2387, %v3584
        %v3999 = vmul.f32 %v2389, %v3585
        %v4000 = vmul.f32 %v2391, %v3585
        %v4001 = vmul.f32 %v2393, %v3585
        %v4002 = vmul.f32 %v2395, %v3586
        %v4003 = vmul.f32 %v2397, %v3586
        %v4004 = vmul.f32 %v2399, %v3586
        %v4005 = vmul.f32 %v2401, %v3587
        %v4006 = vmul.f32 %v2403, %v3587
        %v4007 = vmul.f32 %v2405, %v3587
        %v4008 = vmul.f32 %v2407, %v3588
        %v4009 = vmul.f32 %v2409, %v3588
        %v4010 = vmul.f32 %v2411, %v3588
        %v4011 = vmul.f32 %v2413, %v3589
        %v4012 = vmul.f32 %v2415, %v3589
        %v4013 = vmul.f32 %v2417, %v3589
        %v4014 = vmul.f32 %v2419, %v3590
        %v4015 = vmul.f32 %v2421, %v3590
        %v4016 = vmul.f32 %v2423, %v3590
        %v4017 = vmul.f32 %v2425, %v3591
        %v4018 = vmul.f32 %v2427, %v3591
        %v4019 = vmul.f32 %v2429, %v3591
        %v4020 = vmul.f32 %v2431, %v3592
        %v4021 = vmul.f32 %v2433, %v3592
        %v4022 = vmul.f32 %v2435, %v3592
        %v4023 = vmul.f32 %v2437, %v3593
        %v4024 = vmul.f32 %v2439, %v3593
        %v4025 = vmul.f32 %v2441, %v3593
        %4026 = vst [vmem:[%s135] sm:$0xff] %v3594
        %4027 = vst [vmem:[%s135 + $0x8] sm:$0xff] %v3595
        %4028 = vst [vmem:[%s135 + $0x10] sm:$0xff] %v3596
        %4029 = vst [vmem:[%s135 + $0x18] sm:$0xff] %v3597
        %4030 = vst [vmem:[%s135 + $0x20] sm:$0xff] %v3598
        %4031 = vst [vmem:[%s135 + $0x28] sm:$0xff] %v3599
        %4032 = vst [vmem:[%s135 + $0x30] sm:$0xff] %v3600
        %4033 = vst [vmem:[%s135 + $0x38] sm:$0xff] %v3601
        %4034 = vst [vmem:[%s135 + $0x40] sm:$0xff] %v3602
        %4035 = vst [vmem:[%s135 + $0x48] sm:$0xff] %v3603
        %4036 = vst [vmem:[%s135 + $0x50] sm:$0xff] %v3604
        %4037 = vst [vmem:[%s135 + $0x58] sm:$0xff] %v3605
        %4038 = vst [vmem:[%s135 + $0x60] sm:$0xff] %v3606
        %4039 = vst [vmem:[%s135 + $0x68] sm:$0xff] %v3607
        %4040 = vst [vmem:[%s135 + $0x70] sm:$0xff] %v3608
        %4041 = vst [vmem:[%s135 + $0x78] sm:$0xff] %v3609
        %4042 = vst [vmem:[%s135 + $0x80] sm:$0xff] %v3610
        %4043 = vst [vmem:[%s135 + $0x88] sm:$0xff] %v3611
        %4044 = vst [vmem:[%s135 + $0x90] sm:$0xff] %v3612
        %4045 = vst [vmem:[%s135 + $0x98] sm:$0xff] %v3613
        %4046 = vst [vmem:[%s135 + $0xa0] sm:$0xff] %v3614
        %4047 = vst [vmem:[%s135 + $0xa8] sm:$0xff] %v3615
        %4048 = vst [vmem:[%s135 + $0xb0] sm:$0xff] %v3616
        %4049 = vst [vmem:[%s135 + $0xb8] sm:$0xff] %v3617
        %4050 = vst [vmem:[%s135 + $0xc0] sm:$0xff] %v3618
        %4051 = vst [vmem:[%s135 + $0xc8] sm:$0xff] %v3619
        %4052 = vst [vmem:[%s135 + $0xd0] sm:$0xff] %v3620
        %4053 = vst [vmem:[%s135 + $0xd8] sm:$0xff] %v3621
        %4054 = vst [vmem:[%s135 + $0xe0] sm:$0xff] %v3622
        %4055 = vst [vmem:[%s135 + $0xe8] sm:$0xff] %v3623
        %4056 = vst [vmem:[%s135 + $0xf0] sm:$0xff] %v3624
        %4057 = vst [vmem:[%s135 + $0xf8] sm:$0xff] %v3625
        %4058 = vst [vmem:[%s135 + $0x100] sm:$0xff] %v3626
        %4059 = vst [vmem:[%s135 + $0x108] sm:$0xff] %v3627
        %4060 = vst [vmem:[%s135 + $0x110] sm:$0xff] %v3628
        %4061 = vst [vmem:[%s135 + $0x118] sm:$0xff] %v3629
        %4062 = vst [vmem:[%s135 + $0x120] sm:$0xff] %v3630
        %4063 = vst [vmem:[%s135 + $0x128] sm:$0xff] %v3631
        %4064 = vst [vmem:[%s135 + $0x130] sm:$0xff] %v3632
        %4065 = vst [vmem:[%s135 + $0x138] sm:$0xff] %v3633
        %4066 = vst [vmem:[%s135 + $0x140] sm:$0xff] %v3634
        %4067 = vst [vmem:[%s135 + $0x148] sm:$0xff] %v3635
        %4068 = vst [vmem:[%s135 + $0x150] sm:$0xff] %v3636
        %4069 = vst [vmem:[%s135 + $0x158] sm:$0xff] %v3637
        %4070 = vst [vmem:[%s135 + $0x160] sm:$0xff] %v3638
        %4071 = vst [vmem:[%s135 + $0x168] sm:$0xff] %v3639
        %4072 = vst [vmem:[%s135 + $0x170] sm:$0xff] %v3640
        %4073 = vst [vmem:[%s135 + $0x178] sm:$0xff] %v3641
        %4074 = vst [vmem:[%s135 + $0x180] sm:$0xff] %v3642
        %4075 = vst [vmem:[%s135 + $0x188] sm:$0xff] %v3643
        %4076 = vst [vmem:[%s135 + $0x190] sm:$0xff] %v3644
        %4077 = vst [vmem:[%s135 + $0x198] sm:$0xff] %v3645
        %4078 = vst [vmem:[%s135 + $0x1a0] sm:$0xff] %v3646
        %4079 = vst [vmem:[%s135 + $0x1a8] sm:$0xff] %v3647
        %4080 = vst [vmem:[%s135 + $0x1b0] sm:$0xff] %v3648
        %4081 = vst [vmem:[%s135 + $0x1b8] sm:$0xff] %v3649
        %4082 = vst [vmem:[%s135 + $0x1c0] sm:$0xff] %v3650
        %4083 = vst [vmem:[%s135 + $0x1c8] sm:$0xff] %v3651
        %4084 = vst [vmem:[%s135 + $0x1d0] sm:$0xff] %v3652
        %4085 = vst [vmem:[%s135 + $0x1d8] sm:$0xff] %v3653
        %4086 = vst [vmem:[%s135 + $0x1e0] sm:$0xff] %v3654
        %4087 = vst [vmem:[%s135 + $0x1e8] sm:$0xff] %v3655
        %4088 = vst [vmem:[%s135 + $0x1f0] sm:$0xff] %v3656
        %4089 = vst [vmem:[%s135 + $0x1f8] sm:$0xff] %v3657
        %4090 = vst [vmem:[%s135 + $0x200] sm:$0xff] %v3658
        %4091 = vst [vmem:[%s135 + $0x208] sm:$0xff] %v3659
        %4092 = vst [vmem:[%s135 + $0x210] sm:$0xff] %v3660
        %4093 = vst [vmem:[%s135 + $0x218] sm:$0xff] %v3661
        %4094 = vst [vmem:[%s135 + $0x220] sm:$0xff] %v3662
        %4095 = vst [vmem:[%s135 + $0x228] sm:$0xff] %v3663
        %4096 = vst [vmem:[%s135 + $0x230] sm:$0xff] %v3664
        %4097 = vst [vmem:[%s135 + $0x238] sm:$0xff] %v3665
        %4098 = vst [vmem:[%s135 + $0x240] sm:$0xff] %v3666
        %4099 = vst [vmem:[%s135 + $0x248] sm:$0xff] %v3667
        %4100 = vst [vmem:[%s135 + $0x250] sm:$0xff] %v3668
        %4101 = vst [vmem:[%s135 + $0x258] sm:$0xff] %v3669
        %4102 = vst [vmem:[%s135 + $0x260] sm:$0xff] %v3670
        %4103 = vst [vmem:[%s135 + $0x268] sm:$0xff] %v3671
        %4104 = vst [vmem:[%s135 + $0x270] sm:$0xff] %v3672
        %4105 = vst [vmem:[%s135 + $0x278] sm:$0xff] %v3673
        %4106 = vst [vmem:[%s135 + $0x280] sm:$0xff] %v3674
        %4107 = vst [vmem:[%s135 + $0x288] sm:$0xff] %v3675
        %4108 = vst [vmem:[%s135 + $0x290] sm:$0xff] %v3676
        %4109 = vst [vmem:[%s135 + $0x298] sm:$0xff] %v3677
        %4110 = vst [vmem:[%s135 + $0x2a0] sm:$0xff] %v3678
        %4111 = vst [vmem:[%s135 + $0x2a8] sm:$0xff] %v3679
        %4112 = vst [vmem:[%s135 + $0x2b0] sm:$0xff] %v3680
        %4113 = vst [vmem:[%s135 + $0x2b8] sm:$0xff] %v3681
        %4114 = vst [vmem:[%s135 + $0x2c0] sm:$0xff] %v3682
        %4115 = vst [vmem:[%s135 + $0x2c8] sm:$0xff] %v3683
        %4116 = vst [vmem:[%s135 + $0x2d0] sm:$0xff] %v3684
        %4117 = vst [vmem:[%s135 + $0x2d8] sm:$0xff] %v3685
        %4118 = vst [vmem:[%s135 + $0x2e0] sm:$0xff] %v3686
        %4119 = vst [vmem:[%s135 + $0x2e8] sm:$0xff] %v3687
        %4120 = vst [vmem:[%s135 + $0x2f0] sm:$0xff] %v3688
        %4121 = vst [vmem:[%s135 + $0x2f8] sm:$0xff] %v3689
        %4122 = vst [vmem:[%s135 + $0x300] sm:$0xff] %v3690
        %4123 = vst [vmem:[%s135 + $0x308] sm:$0xff] %v3691
        %4124 = vst [vmem:[%s135 + $0x310] sm:$0xff] %v3692
        %4125 = vst [vmem:[%s135 + $0x318] sm:$0xff] %v3693
        %4126 = vst [vmem:[%s135 + $0x320] sm:$0xff] %v3694
        %4127 = vst [vmem:[%s135 + $0x328] sm:$0xff] %v3695
        %4128 = vst [vmem:[%s135 + $0x330] sm:$0xff] %v3696
        %4129 = vst [vmem:[%s135 + $0x338] sm:$0xff] %v3697
        %4130 = vst [vmem:[%s135 + $0x340] sm:$0xff] %v3698
        %4131 = vst [vmem:[%s135 + $0x348] sm:$0xff] %v3699
        %4132 = vst [vmem:[%s135 + $0x350] sm:$0xff] %v3700
        %4133 = vst [vmem:[%s135 + $0x358] sm:$0xff] %v3701
        %4134 = vst [vmem:[%s135 + $0x360] sm:$0xff] %v3702
        %4135 = vst [vmem:[%s135 + $0x368] sm:$0xff] %v3703
        %4136 = vst [vmem:[%s135 + $0x370] sm:$0xff] %v3704
        %4137 = vst [vmem:[%s135 + $0x378] sm:$0xff] %v3705
        %4138 = vst [vmem:[%s135 + $0x380] sm:$0xff] %v3706
        %4139 = vst [vmem:[%s135 + $0x388] sm:$0xff] %v3707
        %4140 = vst [vmem:[%s135 + $0x390] sm:$0xff] %v3708
        %4141 = vst [vmem:[%s135 + $0x398] sm:$0xff] %v3709
        %4142 = vst [vmem:[%s135 + $0x3a0] sm:$0xff] %v3710
        %4143 = vst [vmem:[%s135 + $0x3a8] sm:$0xff] %v3711
        %4144 = vst [vmem:[%s135 + $0x3b0] sm:$0xff] %v3712
        %4145 = vst [vmem:[%s135 + $0x3b8] sm:$0xff] %v3713
        %4146 = vst [vmem:[%s135 + $0x3c0] sm:$0xff] %v3714
        %4147 = vst [vmem:[%s135 + $0x3c8] sm:$0xff] %v3715
        %4148 = vst [vmem:[%s135 + $0x3d0] sm:$0xff] %v3716
        %4149 = vst [vmem:[%s135 + $0x3d8] sm:$0xff] %v3717
        %4150 = vst [vmem:[%s135 + $0x3e0] sm:$0xff] %v3718
        %4151 = vst [vmem:[%s135 + $0x3e8] sm:$0xff] %v3719
        %4152 = vst [vmem:[%s135 + $0x3f0] sm:$0xff] %v3720
        %4153 = vst [vmem:[%s135 + $0x3f8] sm:$0xff] %v3721
        %4154 = vst [vmem:[%s135 + $0x400] sm:$0xff] %v3722
        %4155 = vst [vmem:[%s135 + $0x408] sm:$0xff] %v3723
        %4156 = vst [vmem:[%s135 + $0x410] sm:$0xff] %v3724
        %4157 = vst [vmem:[%s135 + $0x418] sm:$0xff] %v3725
        %4158 = vst [vmem:[%s135 + $0x420] sm:$0xff] %v3726
        %4159 = vst [vmem:[%s135 + $0x428] sm:$0xff] %v3727
        %4160 = vst [vmem:[%s135 + $0x430] sm:$0xff] %v3728
        %4161 = vst [vmem:[%s135 + $0x438] sm:$0xff] %v3729
        %4162 = vst [vmem:[%s135 + $0x440] sm:$0xff] %v3730
        %4163 = vst [vmem:[%s135 + $0x448] sm:$0xff] %v3731
        %4164 = vst [vmem:[%s135 + $0x450] sm:$0xff] %v3732
        %4165 = vst [vmem:[%s135 + $0x458] sm:$0xff] %v3733
        %4166 = vst [vmem:[%s135 + $0x460] sm:$0xff] %v3734
        %4167 = vst [vmem:[%s135 + $0x468] sm:$0xff] %v3735
        %4168 = vst [vmem:[%s135 + $0x470] sm:$0xff] %v3736
        %4169 = vst [vmem:[%s135 + $0x478] sm:$0xff] %v3737
        %4170 = vst [vmem:[%s135 + $0x480] sm:$0xff] %v3738
        %4171 = vst [vmem:[%s135 + $0x488] sm:$0xff] %v3739
        %4172 = vst [vmem:[%s135 + $0x490] sm:$0xff] %v3740
        %4173 = vst [vmem:[%s135 + $0x498] sm:$0xff] %v3741
        %4174 = vst [vmem:[%s135 + $0x4a0] sm:$0xff] %v3742
        %4175 = vst [vmem:[%s135 + $0x4a8] sm:$0xff] %v3743
        %4176 = vst [vmem:[%s135 + $0x4b0] sm:$0xff] %v3744
        %4177 = vst [vmem:[%s135 + $0x4b8] sm:$0xff] %v3745
        %4178 = vst [vmem:[%s135 + $0x4c0] sm:$0xff] %v3746
        %4179 = vst [vmem:[%s135 + $0x4c8] sm:$0xff] %v3747
        %4180 = vst [vmem:[%s135 + $0x4d0] sm:$0xff] %v3748
        %4181 = vst [vmem:[%s135 + $0x4d8] sm:$0xff] %v3749
        %4182 = vst [vmem:[%s135 + $0x4e0] sm:$0xff] %v3750
        %4183 = vst [vmem:[%s135 + $0x4e8] sm:$0xff] %v3751
        %4184 = vst [vmem:[%s135 + $0x4f0] sm:$0xff] %v3752
        %4185 = vst [vmem:[%s135 + $0x4f8] sm:$0xff] %v3753
        %4186 = vst [vmem:[%s135 + $0x500] sm:$0xff] %v3754
        %4187 = vst [vmem:[%s135 + $0x508] sm:$0xff] %v3755
        %4188 = vst [vmem:[%s135 + $0x510] sm:$0xff] %v3756
        %4189 = vst [vmem:[%s135 + $0x518] sm:$0xff] %v3757
        %4190 = vst [vmem:[%s135 + $0x520] sm:$0xff] %v3758
        %4191 = vst [vmem:[%s135 + $0x528] sm:$0xff] %v3759
        %4192 = vst [vmem:[%s135 + $0x530] sm:$0xff] %v3760
        %4193 = vst [vmem:[%s135 + $0x538] sm:$0xff] %v3761
        %4194 = vst [vmem:[%s135 + $0x540] sm:$0xff] %v3762
        %4195 = vst [vmem:[%s135 + $0x548] sm:$0xff] %v3763
        %4196 = vst [vmem:[%s135 + $0x550] sm:$0xff] %v3764
        %4197 = vst [vmem:[%s135 + $0x558] sm:$0xff] %v3765
        %4198 = vst [vmem:[%s135 + $0x560] sm:$0xff] %v3766
        %4199 = vst [vmem:[%s135 + $0x568] sm:$0xff] %v3767
        %4200 = vst [vmem:[%s135 + $0x570] sm:$0xff] %v3768
        %4201 = vst [vmem:[%s135 + $0x578] sm:$0xff] %v3769
        %4202 = vst [vmem:[%s135 + $0x580] sm:$0xff] %v3770
        %4203 = vst [vmem:[%s135 + $0x588] sm:$0xff] %v3771
        %4204 = vst [vmem:[%s135 + $0x590] sm:$0xff] %v3772
        %4205 = vst [vmem:[%s135 + $0x598] sm:$0xff] %v3773
        %4206 = vst [vmem:[%s135 + $0x5a0] sm:$0xff] %v3774
        %4207 = vst [vmem:[%s135 + $0x5a8] sm:$0xff] %v3775
        %4208 = vst [vmem:[%s135 + $0x5b0] sm:$0xff] %v3776
        %4209 = vst [vmem:[%s135 + $0x5b8] sm:$0xff] %v3777
        %4210 = vst [vmem:[%s135 + $0x5c0] sm:$0xff] %v3778
        %4211 = vst [vmem:[%s135 + $0x5c8] sm:$0xff] %v3779
        %4212 = vst [vmem:[%s135 + $0x5d0] sm:$0xff] %v3780
        %4213 = vst [vmem:[%s135 + $0x5d8] sm:$0xff] %v3781
        %4214 = vst [vmem:[%s135 + $0x5e0] sm:$0xff] %v3782
        %4215 = vst [vmem:[%s135 + $0x5e8] sm:$0xff] %v3783
        %4216 = vst [vmem:[%s135 + $0x5f0] sm:$0xff] %v3784
        %4217 = vst [vmem:[%s135 + $0x5f8] sm:$0xff] %v3785
        %4218 = vst [vmem:[%s135 + $0x600] sm:$0xff] %v3786
        %4219 = vst [vmem:[%s135 + $0x608] sm:$0xff] %v3787
        %4220 = vst [vmem:[%s135 + $0x610] sm:$0xff] %v3788
        %4221 = vst [vmem:[%s135 + $0x618] sm:$0xff] %v3789
        %4222 = vst [vmem:[%s135 + $0x620] sm:$0xff] %v3790
        %4223 = vst [vmem:[%s135 + $0x628] sm:$0xff] %v3791
        %4224 = vst [vmem:[%s135 + $0x630] sm:$0xff] %v3792
        %4225 = vst [vmem:[%s135 + $0x638] sm:$0xff] %v3793
        %4226 = vst [vmem:[%s135 + $0x640] sm:$0xff] %v3794
        %4227 = vst [vmem:[%s135 + $0x648] sm:$0xff] %v3795
        %4228 = vst [vmem:[%s135 + $0x650] sm:$0xff] %v3796
        %4229 = vst [vmem:[%s135 + $0x658] sm:$0xff] %v3797
        %4230 = vst [vmem:[%s135 + $0x660] sm:$0xff] %v3798
        %4231 = vst [vmem:[%s135 + $0x668] sm:$0xff] %v3799
        %4232 = vst [vmem:[%s135 + $0x670] sm:$0xff] %v3800
        %4233 = vst [vmem:[%s135 + $0x678] sm:$0xff] %v3801
        %4234 = vst [vmem:[%s135 + $0x680] sm:$0xff] %v3802
        %4235 = vst [vmem:[%s135 + $0x688] sm:$0xff] %v3803
        %4236 = vst [vmem:[%s135 + $0x690] sm:$0xff] %v3804
        %4237 = vst [vmem:[%s135 + $0x698] sm:$0xff] %v3805
        %4238 = vst [vmem:[%s135 + $0x6a0] sm:$0xff] %v3806
        %4239 = vst [vmem:[%s135 + $0x6a8] sm:$0xff] %v3807
        %4240 = vst [vmem:[%s135 + $0x6b0] sm:$0xff] %v3808
        %4241 = vst [vmem:[%s135 + $0x6b8] sm:$0xff] %v3809
        %4242 = vst [vmem:[%s135 + $0x6c0] sm:$0xff] %v3810
        %4243 = vst [vmem:[%s135 + $0x6c8] sm:$0xff] %v3811
        %4244 = vst [vmem:[%s135 + $0x6d0] sm:$0xff] %v3812
        %4245 = vst [vmem:[%s135 + $0x6d8] sm:$0xff] %v3813
        %4246 = vst [vmem:[%s135 + $0x6e0] sm:$0xff] %v3814
        %4247 = vst [vmem:[%s135 + $0x6e8] sm:$0xff] %v3815
        %4248 = vst [vmem:[%s135 + $0x6f0] sm:$0xff] %v3816
        %4249 = vst [vmem:[%s135 + $0x6f8] sm:$0xff] %v3817
        %4250 = vst [vmem:[%s135 + $0x700] sm:$0xff] %v3818
        %4251 = vst [vmem:[%s135 + $0x708] sm:$0xff] %v3819
        %4252 = vst [vmem:[%s135 + $0x710] sm:$0xff] %v3820
        %4253 = vst [vmem:[%s135 + $0x718] sm:$0xff] %v3821
        %4254 = vst [vmem:[%s135 + $0x720] sm:$0xff] %v3822
        %4255 = vst [vmem:[%s135 + $0x728] sm:$0xff] %v3823
        %4256 = vst [vmem:[%s135 + $0x730] sm:$0xff] %v3824
        %4257 = vst [vmem:[%s135 + $0x738] sm:$0xff] %v3825
        %4258 = vst [vmem:[%s135 + $0x740] sm:$0xff] %v3826
        %4259 = vst [vmem:[%s135 + $0x748] sm:$0xff] %v3827
        %4260 = vst [vmem:[%s135 + $0x750] sm:$0xff] %v3828
        %4261 = vst [vmem:[%s135 + $0x758] sm:$0xff] %v3829
        %4262 = vst [vmem:[%s135 + $0x760] sm:$0xff] %v3830
        %4263 = vst [vmem:[%s135 + $0x768] sm:$0xff] %v3831
        %4264 = vst [vmem:[%s135 + $0x770] sm:$0xff] %v3832
        %4265 = vst [vmem:[%s135 + $0x778] sm:$0xff] %v3833
        %4266 = vst [vmem:[%s135 + $0x780] sm:$0xff] %v3834
        %4267 = vst [vmem:[%s135 + $0x788] sm:$0xff] %v3835
        %4268 = vst [vmem:[%s135 + $0x790] sm:$0xff] %v3836
        %4269 = vst [vmem:[%s135 + $0x798] sm:$0xff] %v3837
        %4270 = vst [vmem:[%s135 + $0x7a0] sm:$0xff] %v3838
        %4271 = vst [vmem:[%s135 + $0x7a8] sm:$0xff] %v3839
        %4272 = vst [vmem:[%s135 + $0x7b0] sm:$0xff] %v3840
        %4273 = vst [vmem:[%s135 + $0x7b8] sm:$0xff] %v3841
        %4274 = vst [vmem:[%s135 + $0x7c0] sm:$0xff] %v3842
        %4275 = vst [vmem:[%s135 + $0x7c8] sm:$0xff] %v3843
        %4276 = vst [vmem:[%s135 + $0x7d0] sm:$0xff] %v3844
        %4277 = vst [vmem:[%s135 + $0x7d8] sm:$0xff] %v3845
        %4278 = vst [vmem:[%s135 + $0x7e0] sm:$0xff] %v3846
        %4279 = vst [vmem:[%s135 + $0x7e8] sm:$0xff] %v3847
        %4280 = vst [vmem:[%s135 + $0x7f0] sm:$0xff] %v3848
        %4281 = vst [vmem:[%s135 + $0x7f8] sm:$0xff] %v3849
        %4282 = vst [vmem:[%s135 + $0x800] sm:$0xff] %v3850
        %4283 = vst [vmem:[%s135 + $0x808] sm:$0xff] %v3851
        %4284 = vst [vmem:[%s135 + $0x810] sm:$0xff] %v3852
        %4285 = vst [vmem:[%s135 + $0x818] sm:$0xff] %v3853
        %4286 = vst [vmem:[%s135 + $0x820] sm:$0xff] %v3854
        %4287 = vst [vmem:[%s135 + $0x828] sm:$0xff] %v3855
        %4288 = vst [vmem:[%s135 + $0x830] sm:$0xff] %v3856
        %4289 = vst [vmem:[%s135 + $0x838] sm:$0xff] %v3857
        %4290 = vst [vmem:[%s135 + $0x840] sm:$0xff] %v3858
        %4291 = vst [vmem:[%s135 + $0x848] sm:$0xff] %v3859
        %4292 = vst [vmem:[%s135 + $0x850] sm:$0xff] %v3860
        %4293 = vst [vmem:[%s135 + $0x858] sm:$0xff] %v3861
        %4294 = vst [vmem:[%s135 + $0x860] sm:$0xff] %v3862
        %4295 = vst [vmem:[%s135 + $0x868] sm:$0xff] %v3863
        %4296 = vst [vmem:[%s135 + $0x870] sm:$0xff] %v3864
        %4297 = vst [vmem:[%s135 + $0x878] sm:$0xff] %v3865
        %4298 = vst [vmem:[%s135 + $0x880] sm:$0xff] %v3866
        %4299 = vst [vmem:[%s135 + $0x888] sm:$0xff] %v3867
        %4300 = vst [vmem:[%s135 + $0x890] sm:$0xff] %v3868
        %4301 = vst [vmem:[%s135 + $0x898] sm:$0xff] %v3869
        %4302 = vst [vmem:[%s135 + $0x8a0] sm:$0xff] %v3870
        %4303 = vst [vmem:[%s135 + $0x8a8] sm:$0xff] %v3871
        %4304 = vst [vmem:[%s135 + $0x8b0] sm:$0xff] %v3872
        %4305 = vst [vmem:[%s135 + $0x8b8] sm:$0xff] %v3873
        %4306 = vst [vmem:[%s135 + $0x8c0] sm:$0xff] %v3874
        %4307 = vst [vmem:[%s135 + $0x8c8] sm:$0xff] %v3875
        %4308 = vst [vmem:[%s135 + $0x8d0] sm:$0xff] %v3876
        %4309 = vst [vmem:[%s135 + $0x8d8] sm:$0xff] %v3877
        %4310 = vst [vmem:[%s135 + $0x8e0] sm:$0xff] %v3878
        %4311 = vst [vmem:[%s135 + $0x8e8] sm:$0xff] %v3879
        %4312 = vst [vmem:[%s135 + $0x8f0] sm:$0xff] %v3880
        %4313 = vst [vmem:[%s135 + $0x8f8] sm:$0xff] %v3881
        %4314 = vst [vmem:[%s135 + $0x900] sm:$0xff] %v3882
        %4315 = vst [vmem:[%s135 + $0x908] sm:$0xff] %v3883
        %4316 = vst [vmem:[%s135 + $0x910] sm:$0xff] %v3884
        %4317 = vst [vmem:[%s135 + $0x918] sm:$0xff] %v3885
        %4318 = vst [vmem:[%s135 + $0x920] sm:$0xff] %v3886
        %4319 = vst [vmem:[%s135 + $0x928] sm:$0xff] %v3887
        %4320 = vst [vmem:[%s135 + $0x930] sm:$0xff] %v3888
        %4321 = vst [vmem:[%s135 + $0x938] sm:$0xff] %v3889
        %4322 = vst [vmem:[%s135 + $0x940] sm:$0xff] %v3890
        %4323 = vst [vmem:[%s135 + $0x948] sm:$0xff] %v3891
        %4324 = vst [vmem:[%s135 + $0x950] sm:$0xff] %v3892
        %4325 = vst [vmem:[%s135 + $0x958] sm:$0xff] %v3893
        %4326 = vst [vmem:[%s135 + $0x960] sm:$0xff] %v3894
        %4327 = vst [vmem:[%s135 + $0x968] sm:$0xff] %v3895
        %4328 = vst [vmem:[%s135 + $0x970] sm:$0xff] %v3896
        %4329 = vst [vmem:[%s135 + $0x978] sm:$0xff] %v3897
        %4330 = vst [vmem:[%s135 + $0x980] sm:$0xff] %v3898
        %4331 = vst [vmem:[%s135 + $0x988] sm:$0xff] %v3899
        %4332 = vst [vmem:[%s135 + $0x990] sm:$0xff] %v3900
        %4333 = vst [vmem:[%s135 + $0x998] sm:$0xff] %v3901
        %4334 = vst [vmem:[%s135 + $0x9a0] sm:$0xff] %v3902
        %4335 = vst [vmem:[%s135 + $0x9a8] sm:$0xff] %v3903
        %4336 = vst [vmem:[%s135 + $0x9b0] sm:$0xff] %v3904
        %4337 = vst [vmem:[%s135 + $0x9b8] sm:$0xff] %v3905
        %4338 = vst [vmem:[%s135 + $0x9c0] sm:$0xff] %v3906
        %4339 = vst [vmem:[%s135 + $0x9c8] sm:$0xff] %v3907
        %4340 = vst [vmem:[%s135 + $0x9d0] sm:$0xff] %v3908
        %4341 = vst [vmem:[%s135 + $0x9d8] sm:$0xff] %v3909
        %4342 = vst [vmem:[%s135 + $0x9e0] sm:$0xff] %v3910
        %4343 = vst [vmem:[%s135 + $0x9e8] sm:$0xff] %v3911
        %4344 = vst [vmem:[%s135 + $0x9f0] sm:$0xff] %v3912
        %4345 = vst [vmem:[%s135 + $0x9f8] sm:$0xff] %v3913
        %4346 = vst [vmem:[%s135 + $0xa00] sm:$0xff] %v3914
        %4347 = vst [vmem:[%s135 + $0xa08] sm:$0xff] %v3915
        %4348 = vst [vmem:[%s135 + $0xa10] sm:$0xff] %v3916
        %4349 = vst [vmem:[%s135 + $0xa18] sm:$0xff] %v3917
        %4350 = vst [vmem:[%s135 + $0xa20] sm:$0xff] %v3918
        %4351 = vst [vmem:[%s135 + $0xa28] sm:$0xff] %v3919
        %4352 = vst [vmem:[%s135 + $0xa30] sm:$0xff] %v3920
        %4353 = vst [vmem:[%s135 + $0xa38] sm:$0xff] %v3921
        %4354 = vst [vmem:[%s135 + $0xa40] sm:$0xff] %v3922
        %4355 = vst [vmem:[%s135 + $0xa48] sm:$0xff] %v3923
        %4356 = vst [vmem:[%s135 + $0xa50] sm:$0xff] %v3924
        %4357 = vst [vmem:[%s135 + $0xa58] sm:$0xff] %v3925
        %4358 = vst [vmem:[%s135 + $0xa60] sm:$0xff] %v3926
        %4359 = vst [vmem:[%s135 + $0xa68] sm:$0xff] %v3927
        %4360 = vst [vmem:[%s135 + $0xa70] sm:$0xff] %v3928
        %4361 = vst [vmem:[%s135 + $0xa78] sm:$0xff] %v3929
        %4362 = vst [vmem:[%s135 + $0xa80] sm:$0xff] %v3930
        %4363 = vst [vmem:[%s135 + $0xa88] sm:$0xff] %v3931
        %4364 = vst [vmem:[%s135 + $0xa90] sm:$0xff] %v3932
        %4365 = vst [vmem:[%s135 + $0xa98] sm:$0xff] %v3933
        %4366 = vst [vmem:[%s135 + $0xaa0] sm:$0xff] %v3934
        %4367 = vst [vmem:[%s135 + $0xaa8] sm:$0xff] %v3935
        %4368 = vst [vmem:[%s135 + $0xab0] sm:$0xff] %v3936
        %4369 = vst [vmem:[%s135 + $0xab8] sm:$0xff] %v3937
        %4370 = vst [vmem:[%s135 + $0xac0] sm:$0xff] %v3938
        %4371 = vst [vmem:[%s135 + $0xac8] sm:$0xff] %v3939
        %4372 = vst [vmem:[%s135 + $0xad0] sm:$0xff] %v3940
        %4373 = vst [vmem:[%s135 + $0xad8] sm:$0xff] %v3941
        %4374 = vst [vmem:[%s135 + $0xae0] sm:$0xff] %v3942
        %4375 = vst [vmem:[%s135 + $0xae8] sm:$0xff] %v3943
        %4376 = vst [vmem:[%s135 + $0xaf0] sm:$0xff] %v3944
        %4377 = vst [vmem:[%s135 + $0xaf8] sm:$0xff] %v3945
        %4378 = vst [vmem:[%s135 + $0xb00] sm:$0xff] %v3946
        %4379 = vst [vmem:[%s135 + $0xb08] sm:$0xff] %v3947
        %4380 = vst [vmem:[%s135 + $0xb10] sm:$0xff] %v3948
        %4381 = vst [vmem:[%s135 + $0xb18] sm:$0xff] %v3949
        %4382 = vst [vmem:[%s135 + $0xb20] sm:$0xff] %v3950
        %4383 = vst [vmem:[%s135 + $0xb28] sm:$0xff] %v3951
        %4384 = vst [vmem:[%s135 + $0xb30] sm:$0xff] %v3952
        %4385 = vst [vmem:[%s135 + $0xb38] sm:$0xff] %v3953
        %4386 = vst [vmem:[%s135 + $0xb40] sm:$0xff] %v3954
        %4387 = vst [vmem:[%s135 + $0xb48] sm:$0xff] %v3955
        %4388 = vst [vmem:[%s135 + $0xb50] sm:$0xff] %v3956
        %4389 = vst [vmem:[%s135 + $0xb58] sm:$0xff] %v3957
        %4390 = vst [vmem:[%s135 + $0xb60] sm:$0xff] %v3958
        %4391 = vst [vmem:[%s135 + $0xb68] sm:$0xff] %v3959
        %4392 = vst [vmem:[%s135 + $0xb70] sm:$0xff] %v3960
        %4393 = vst [vmem:[%s135 + $0xb78] sm:$0xff] %v3961
        %4394 = vst [vmem:[%s135 + $0xb80] sm:$0xff] %v3962
        %4395 = vst [vmem:[%s135 + $0xb88] sm:$0xff] %v3963
        %4396 = vst [vmem:[%s135 + $0xb90] sm:$0xff] %v3964
        %4397 = vst [vmem:[%s135 + $0xb98] sm:$0xff] %v3965
        %4398 = vst [vmem:[%s135 + $0xba0] sm:$0xff] %v3966
        %4399 = vst [vmem:[%s135 + $0xba8] sm:$0xff] %v3967
        %4400 = vst [vmem:[%s135 + $0xbb0] sm:$0xff] %v3968
        %4401 = vst [vmem:[%s135 + $0xbb8] sm:$0xff] %v3969
        %4402 = vst [vmem:[%s135 + $0xbc0] sm:$0xff] %v3970
        %4403 = vst [vmem:[%s135 + $0xbc8] sm:$0xff] %v3971
        %4404 = vst [vmem:[%s135 + $0xbd0] sm:$0xff] %v3972
        %4405 = vst [vmem:[%s135 + $0xbd8] sm:$0xff] %v3973
        %4406 = vst [vmem:[%s135 + $0xbe0] sm:$0xff] %v3974
        %4407 = vst [vmem:[%s135 + $0xbe8] sm:$0xff] %v3975
        %4408 = vst [vmem:[%s135 + $0xbf0] sm:$0xff] %v3976
        %4409 = vst [vmem:[%s135 + $0xbf8] sm:$0xff] %v3977
        %4410 = vst [vmem:[%s135 + $0xc00] sm:$0xff] %v3978
        %4411 = vst [vmem:[%s135 + $0xc08] sm:$0xff] %v3979
        %4412 = vst [vmem:[%s135 + $0xc10] sm:$0xff] %v3980
        %4413 = vst [vmem:[%s135 + $0xc18] sm:$0xff] %v3981
        %4414 = vst [vmem:[%s135 + $0xc20] sm:$0xff] %v3982
        %4415 = vst [vmem:[%s135 + $0xc28] sm:$0xff] %v3983
        %4416 = vst [vmem:[%s135 + $0xc30] sm:$0xff] %v3984
        %4417 = vst [vmem:[%s135 + $0xc38] sm:$0xff] %v3985
        %4418 = vst [vmem:[%s135 + $0xc40] sm:$0xff] %v3986
        %4419 = vst [vmem:[%s135 + $0xc48] sm:$0xff] %v3987
        %4420 = vst [vmem:[%s135 + $0xc50] sm:$0xff] %v3988
        %4421 = vst [vmem:[%s135 + $0xc58] sm:$0xff] %v3989
        %4422 = vst [vmem:[%s135 + $0xc60] sm:$0xff] %v3990
        %4423 = vst [vmem:[%s135 + $0xc68] sm:$0xff] %v3991
        %4424 = vst [vmem:[%s135 + $0xc70] sm:$0xff] %v3992
        %4425 = vst [vmem:[%s135 + $0xc78] sm:$0xff] %v3993
        %4426 = vst [vmem:[%s135 + $0xc80] sm:$0xff] %v3994
        %4427 = vst [vmem:[%s135 + $0xc88] sm:$0xff] %v3995
        %4428 = vst [vmem:[%s135 + $0xc90] sm:$0xff] %v3996
        %4429 = vst [vmem:[%s135 + $0xc98] sm:$0xff] %v3997
        %4430 = vst [vmem:[%s135 + $0xca0] sm:$0xff] %v3998
        %4431 = vst [vmem:[%s135 + $0xca8] sm:$0xff] %v3999
        %4432 = vst [vmem:[%s135 + $0xcb0] sm:$0xff] %v4000
        %4433 = vst [vmem:[%s135 + $0xcb8] sm:$0xff] %v4001
        %4434 = vst [vmem:[%s135 + $0xcc0] sm:$0xff] %v4002
        %4435 = vst [vmem:[%s135 + $0xcc8] sm:$0xff] %v4003
        %4436 = vst [vmem:[%s135 + $0xcd0] sm:$0xff] %v4004
        %4437 = vst [vmem:[%s135 + $0xcd8] sm:$0xff] %v4005
        %4438 = vst [vmem:[%s135 + $0xce0] sm:$0xff] %v4006
        %4439 = vst [vmem:[%s135 + $0xce8] sm:$0xff] %v4007
        %4440 = vst [vmem:[%s135 + $0xcf0] sm:$0xff] %v4008
        %4441 = vst [vmem:[%s135 + $0xcf8] sm:$0xff] %v4009
        %4442 = vst [vmem:[%s135 + $0xd00] sm:$0xff] %v4010
        %4443 = vst [vmem:[%s135 + $0xd08] sm:$0xff] %v4011
        %4444 = vst [vmem:[%s135 + $0xd10] sm:$0xff] %v4012
        %4445 = vst [vmem:[%s135 + $0xd18] sm:$0xff] %v4013
        %4446 = vst [vmem:[%s135 + $0xd20] sm:$0xff] %v4014
        %4447 = vst [vmem:[%s135 + $0xd28] sm:$0xff] %v4015
        %4448 = vst [vmem:[%s135 + $0xd30] sm:$0xff] %v4016
        %4449 = vst [vmem:[%s135 + $0xd38] sm:$0xff] %v4017
        %4450 = vst [vmem:[%s135 + $0xd40] sm:$0xff] %v4018
        %4451 = vst [vmem:[%s135 + $0xd48] sm:$0xff] %v4019
        %4452 = vst [vmem:[%s135 + $0xd50] sm:$0xff] %v4020
        %4453 = vst [vmem:[%s135 + $0xd58] sm:$0xff] %v4021
        %4454 = vst [vmem:[%s135 + $0xd60] sm:$0xff] %v4022
        %4455 = vst [vmem:[%s135 + $0xd68] sm:$0xff] %v4023
        %4456 = vst [vmem:[%s135 + $0xd70] sm:$0xff] %v4024
        %4457 = vst [vmem:[%s135 + $0xd78] sm:$0xff] %v4025
        %s4458 = sand.u32 %s52, 1
        %s4459 = scalar_lea.sflag [#allocation4], %s4458
        %s4460 = sand.u32 %s52, 1
        %s4461 = smul.addr %s4460, 3456
        %s4462 = scalar_lea.vmem [#allocation5], %s4461
        // Predicated region
        $region29: #{tpu_custom_call.1} parent=23 // pred_check
          %p4463 = pneg %p62
        $region30: #{tpu_custom_call.1} parent=23 // pred_check_branch
          %4465 = sbr.rel (%p4463) target = $region32
        $region31: #{tpu_custom_call.1} parent=23 // pred_region
          %s4466 = smul.u32 144, %s18
          %s4468 = ssub.s32 55296, 55296
          %4469 = vsyncadd %s4459, %s4468
          %s4470 = smul.addr %s4466, 3
          %s4471 = smul.addr %s4470, 128
          %s4472 = scalar_lea.hbm %s1, %s4471
          %s4473 = sshll.u32 %s4462, 4
          %s4474 = int_to_ptr.vmem [resolvable:$true] %s4473
          %4479 = dma.vmem_to_hbm [thread:$0]  %s4474, 55296, %s4472, %s4459, 384, 384, 24
        $region32: #{tpu_custom_call.1} parent=23 // pred_fallthru
          _
      $region24: #{tpu_custom_call.1} parent=5 // pred_fallthru
        _
      %p4480 = scmp.le.s32.totalorder 2, %s13
      // Predicated region
      $region33: #{tpu_custom_call.1} parent=5 // pred_check
        %p4481 = pneg %p4480
      $region34: #{tpu_custom_call.1} parent=5 // pred_check_branch
        %4483 = sbr.rel (%p4481) target = $region36
      $region35: #{tpu_custom_call.1} parent=5 // pred_region
        %s4484 = ssub.s32 %s13, 2
        // Predicated region
        $region37: #{tpu_custom_call.1} parent=35 // pred_check
          %p4485 = pneg %p68
        $region38: #{tpu_custom_call.1} parent=35 // pred_check_branch
          %4487 = sbr.rel (%p4485) target = $region40
        $region39: #{tpu_custom_call.1} parent=35 // pred_region
          %s4488 = sand.u32 %s53, 1
          %s4489 = scalar_lea.sflag [#allocation4], %s4488
          %s4490 = sand.u32 %s53, 1
          %s4491 = smul.addr %s4490, 3456
          %s4492 = scalar_lea.vmem [#allocation5], %s4491
          %4493 = dma.done %s4489, 55296
        $region40: #{tpu_custom_call.1} parent=35 // pred_fallthru
          _
      $region36: #{tpu_custom_call.1} parent=5 // pred_fallthru
        _
    $region6: #{tpu_custom_call.1} parent=1 // loop_footer
      %s17 = sadd.s32 1, %s13
    $region7: #{tpu_custom_call.1} parent=1 // loop_footer_branch
      %12 = sbr.rel target = $region3
    $region8: #{tpu_custom_call.1} parent=1 // loop_exit
      _
    %4494 = vsyncpa [#allocation3], 1
    %s4495 = scalar_lea.sflag [#allocation3], 1
    %4496 = vsyncpa %s4495, 1
    %4497 = vsyncpa [#allocation4], 1
    %s4498 = scalar_lea.sflag [#allocation4], 1
    %4499 = vsyncpa %s4498, 1

</llo_original>
